<compile_context>
chip_gen: v6e
topology: v6e:2x2x1
jax: 0.10.0
libtpu: 0.0.40
codegen_flags: <defaults>
</compile_context>

<pallas_src>
import math
import functools

import jax
import jax.numpy as jnp
from jax.experimental import pallas as pl
from jax.experimental.pallas import tpu as pltpu

EPS = 1e-6
MXU_DTYPE = jnp.bfloat16          # MXU operand dtype (f32 accumulation)


def _query_vmem_limit():
    """Generation-aware scoped-VMEM request (25% headroom for Mosaic)."""
    try:
        cap = int(pltpu.get_tpu_info().vmem_capacity_bytes)
    except Exception:
        cap = 128 * 1024 * 1024
    return max(32 * 1024 * 1024, min(int(cap * 3 // 4), 100 * 1024 * 1024))


VMEM_LIMIT = _query_vmem_limit()


def _pick_tile(dim, target, align):
    """Largest tile <= target that is a multiple of `align` and divides `dim`,
    or the full dim when dim <= target.  Raises instead of silently creating a
    whole-dimension block when no aligned divisor exists."""
    if dim <= target:
        return dim
    t = (target // align) * align
    while t >= align:
        if dim % t == 0:
            return t
        t -= align
    raise ValueError(
        f"_pick_tile: no {align}-aligned tile <= {target} divides dim={dim}; "
        f"pad the dimension to a multiple of {align}.")


def _layernorm(x, gamma, beta):
    mu = jnp.mean(x, axis=-1, keepdims=True)
    var = jnp.mean(jnp.square(x - mu), axis=-1, keepdims=True)
    inv = jax.lax.rsqrt(var + EPS)
    return (x - mu) * inv * gamma + beta


# ---------------- fused LayerNorm + QKV projection (bf16 output) -------------
def _ln_qkv_kernel(x_ref, g_ref, bln_ref, w_ref, b_ref, o_ref, h_scr):
    j = pl.program_id(1)          # which of {q, k, v}
    n = pl.program_id(2)          # column tile within D

    @pl.when(jnp.logical_and(j == 0, n == 0))
    def _():
        h = _layernorm(x_ref[...], g_ref[...], bln_ref[...])   # f32 stats
        h_scr[...] = h.astype(MXU_DTYPE)                       # cached for all (j,n)

    y = jnp.dot(h_scr[...], w_ref[0], preferred_element_type=jnp.float32)
    o_ref[0] = (y + b_ref[0]).astype(o_ref.dtype)              # bf16 store


def ln_qkv_proj(x2d, gamma, beta, wqkv3, bqkv3):
    """LayerNorm(x) @ [Wq|Wk|Wv] + b, emitted as bf16 with shape (3, M, D)."""
    M, D = x2d.shape
    tm = _pick_tile(M, 512, 8)
    tn = _pick_tile(D, 512, 128)
    return pl.pallas_call(
        _ln_qkv_kernel,
        out_shape=jax.ShapeDtypeStruct((3, M, D), MXU_DTYPE),
        grid_spec=pltpu.PrefetchScalarGridSpec(
            num_scalar_prefetch=0,
            grid=(M // tm, 3, D // tn),
            in_specs=[
                pl.BlockSpec((tm, D), lambda i, j, n: (i, 0)),
                pl.BlockSpec((1, D), lambda i, j, n: (0, 0)),
                pl.BlockSpec((1, D), lambda i, j, n: (0, 0)),
                pl.BlockSpec((1, D, tn), lambda i, j, n: (j, 0, n)),
                pl.BlockSpec((1, 1, tn), lambda i, j, n: (j, 0, n)),
            ],
            out_specs=pl.BlockSpec((1, tm, tn), lambda i, j, n: (j, i, n)),
            scratch_shapes=[pltpu.VMEM((tm, D), MXU_DTYPE)],
        ),
        compiler_params=pltpu.CompilerParams(
            dimension_semantics=("parallel", "arbitrary", "arbitrary"),
            vmem_limit_bytes=VMEM_LIMIT),
    )(x2d, gamma.reshape(1, D), beta.reshape(1, D), wqkv3, bqkv3)


# -------- flash-style attention + output projection + residual ---------------
def _attn_kernel(q_ref, k_ref, v_ref, m_ref, wo_ref, bo_ref, xres_ref, o_ref,
                 q_scr, acc_scr, m_scr, l_scr, *, num_heads):
    ki = pl.program_id(2)
    H = num_heads
    tq, D = q_ref.shape[2], q_ref.shape[3]
    tk = k_ref.shape[2]
    Dh = D // H

    @pl.when(ki == 0)
    def _():
        # Cache the head-major q tile (1/sqrt(Dh) already folded into Wq/bq).
        q = q_ref[0, 0].reshape(tq, H, Dh)
        q_scr[...] = jnp.swapaxes(q, 0, 1)                     # (H, tq, Dh) bf16
        m_scr[...] = jnp.full_like(m_scr, -jnp.inf)
        l_scr[...] = jnp.zeros_like(l_scr)
        acc_scr[...] = jnp.zeros_like(acc_scr)

    k = jnp.swapaxes(k_ref[0, 0].reshape(tk, H, Dh), 0, 1)     # (H, tk, Dh)
    v = jnp.swapaxes(v_ref[0, 0].reshape(tk, H, Dh), 0, 1)     # (H, tk, Dh)

    # All heads batched into one MXU dot_general; scores/softmax in f32.
    s = jnp.einsum("hqd,hkd->hqk", q_scr[...], k,
                   preferred_element_type=jnp.float32)          # (H, tq, tk)
    s = s + m_ref[0]                                            # additive key mask

    m_prev = m_scr[...]
    m_new = jnp.maximum(m_prev, jnp.max(s, axis=-1, keepdims=True))
    alpha = jnp.exp(m_prev - m_new)
    p = jnp.exp(s - m_new)
    l_scr[...] = alpha * l_scr[...] + jnp.sum(p, axis=-1, keepdims=True)
    pv = jnp.einsum("hqk,hkd->hqd", p.astype(MXU_DTYPE), v,
                    preferred_element_type=jnp.float32)         # (H, tq, Dh)
    acc_scr[...] = alpha * acc_scr[...] + pv
    m_scr[...] = m_new

    @pl.when(ki == pl.num_programs(2) - 1)
    def _():
        a = acc_scr[...] * pl.reciprocal(l_scr[...], approx=True)   # (H, tq, Dh)
        a2 = jnp.swapaxes(a, 0, 1).reshape(tq, D)                   # (tq, D) lane-dense
        y = jnp.dot(a2.astype(MXU_DTYPE), wo_ref[...],
                    preferred_element_type=jnp.float32)
        o_ref[0] = (y + bo_ref[...] + xres_ref[0]).astype(o_ref.dtype)


def attn_out_residual(qkv3, mask_bias, wo_bf16, bo, x, num_heads):
    _, B, S, D = qkv3.shape
    Dh = D // num_heads
    tq = _pick_tile(S, 256, 8)
    tk = _pick_tile(S, 512, 128)
    kernel = functools.partial(_attn_kernel, num_heads=num_heads)
    return pl.pallas_call(
        kernel,
        out_shape=jax.ShapeDtypeStruct((B, S, D), x.dtype),
        grid_spec=pltpu.PrefetchScalarGridSpec(
            num_scalar_prefetch=0,
            grid=(B, S // tq, S // tk),
            in_specs=[
                pl.BlockSpec((1, 1, tq, D), lambda b, qi, ki: (0, b, qi, 0)),  # q
                pl.BlockSpec((1, 1, tk, D), lambda b, qi, ki: (1, b, ki, 0)),  # k
                pl.BlockSpec((1, 1, tk, D), lambda b, qi, ki: (2, b, ki, 0)),  # v
                pl.BlockSpec((1, 1, tk), lambda b, qi, ki: (b, 0, ki)),        # mask
                pl.BlockSpec((D, D), lambda b, qi, ki: (0, 0)),                # wo
                pl.BlockSpec((1, D), lambda b, qi, ki: (0, 0)),                # bo
                pl.BlockSpec((1, tq, D), lambda b, qi, ki: (b, qi, 0)),        # residual
            ],
            out_specs=pl.BlockSpec((1, tq, D), lambda b, qi, ki: (b, qi, 0)),
            scratch_shapes=[
                pltpu.VMEM((num_heads, tq, Dh), MXU_DTYPE),    # cached q tile
                pltpu.VMEM((num_heads, tq, Dh), jnp.float32),  # online acc
                pltpu.VMEM((num_heads, tq, 1), jnp.float32),   # running max
                pltpu.VMEM((num_heads, tq, 1), jnp.float32),   # running sum
            ],
        ),
        compiler_params=pltpu.CompilerParams(
            dimension_semantics=("parallel", "parallel", "arbitrary"),
            vmem_limit_bytes=VMEM_LIMIT),
    )(qkv3, qkv3, qkv3, mask_bias, wo_bf16, bo.reshape(1, D), x)


# --------- fused FFN: LN2 + W1 + ReLU + W2 + bias + residual, k-tiled --------
def _ffn_kernel(x_ref, g_ref, bln_ref, w1_ref, b1_ref, w2_ref, b2_ref, o_ref,
                h_scr):
    k = pl.program_id(1)

    @pl.when(k == 0)
    def _():
        h = _layernorm(x_ref[...], g_ref[...], bln_ref[...])
        h_scr[...] = h.astype(MXU_DTYPE)
        o_ref[...] = jnp.zeros_like(o_ref)          # f32 output is the accumulator

    f = jnp.dot(h_scr[...], w1_ref[...], preferred_element_type=jnp.float32)
    f = jnp.maximum(f + b1_ref[...], 0.0)
    o_ref[...] += jnp.dot(f.astype(MXU_DTYPE), w2_ref[...],
                          preferred_element_type=jnp.float32)

    @pl.when(k == pl.num_programs(1) - 1)
    def _():
        o_ref[...] += b2_ref[...] + x_ref[...]


def ffn_block(x2d, gamma, beta, w1_bf16, b1, w2_bf16, b2):
    M, D = x2d.shape
    F = w1_bf16.shape[1]
    tm = _pick_tile(M, 512, 8)
    tf = _pick_tile(F, 512, 128)
    return pl.pallas_call(
        _ffn_kernel,
        out_shape=jax.ShapeDtypeStruct((M, D), jnp.float32),
        grid_spec=pltpu.PrefetchScalarGridSpec(
            num_scalar_prefetch=0,
            grid=(M // tm, F // tf),
            in_specs=[
                pl.BlockSpec((tm, D), lambda i, k: (i, 0)),
                pl.BlockSpec((1, D), lambda i, k: (0, 0)),
                pl.BlockSpec((1, D), lambda i, k: (0, 0)),
                pl.BlockSpec((D, tf), lambda i, k: (0, k)),
                pl.BlockSpec((1, tf), lambda i, k: (0, k)),
                pl.BlockSpec((tf, D), lambda i, k: (k, 0)),
                pl.BlockSpec((1, D), lambda i, k: (0, 0)),
            ],
            out_specs=pl.BlockSpec((tm, D), lambda i, k: (i, 0)),
            scratch_shapes=[pltpu.VMEM((tm, D), MXU_DTYPE)],
        ),
        compiler_params=pltpu.CompilerParams(
            dimension_semantics=("parallel", "arbitrary"),
            vmem_limit_bytes=VMEM_LIMIT),
    )(x2d, gamma.reshape(1, D), beta.reshape(1, D), w1_bf16, b1.reshape(1, F),
      w2_bf16, b2.reshape(1, D))


# ------------------------------ final LayerNorm ------------------------------
def _ln_kernel(x_ref, g_ref, b_ref, o_ref):
    o_ref[...] = _layernorm(x_ref[...], g_ref[...], b_ref[...]).astype(o_ref.dtype)


def layernorm(x2d, gamma, beta):
    M, D = x2d.shape
    tm = _pick_tile(M, 512, 8)
    return pl.pallas_call(
        _ln_kernel,
        out_shape=jax.ShapeDtypeStruct((M, D), x2d.dtype),
        grid_spec=pltpu.PrefetchScalarGridSpec(
            num_scalar_prefetch=0,
            grid=(M // tm,),
            in_specs=[
                pl.BlockSpec((tm, D), lambda i: (i, 0)),
                pl.BlockSpec((1, D), lambda i: (0, 0)),
                pl.BlockSpec((1, D), lambda i: (0, 0)),
            ],
            out_specs=pl.BlockSpec((tm, D), lambda i: (i, 0)),
        ),
        compiler_params=pltpu.CompilerParams(
            dimension_semantics=("parallel",),
            vmem_limit_bytes=VMEM_LIMIT),
    )(x2d, gamma.reshape(1, D), beta.reshape(1, D))


# ------------------------------- Encoder glue --------------------------------
def encoder_layer(x, mask_bias, p, num_heads):
    B, S, D = x.shape
    x2d = x.reshape(B * S, D)

    # --- self-attention sublayer: LN1 fused into QKV, flash attn + Wo + res ---
    qkv = ln_qkv_proj(x2d, p["ln1_g"], p["ln1_b"], p["wqkv"], p["bqkv"])  # (3, M, D) bf16
    qkv3 = qkv.reshape(3, B, S, D)                                        # free reshape
    x = attn_out_residual(qkv3, mask_bias, p["wo"], p["bo"], x, num_heads)

    # --- feed-forward sublayer: LN2 + W1 + ReLU + W2 + residual, one kernel ---
    x2d = ffn_block(x.reshape(B * S, D), p["ln2_g"], p["ln2_b"],
                    p["w1"], p["b1"], p["w2"], p["b2"])
    return x2d.reshape(B, S, D)


def encoder_forward(x, mask, params, num_heads):
    B, S, D = x.shape
    # mask: [B, S], 1 = keep, 0 = masked -> additive key bias [B, 1, S] (f32)
    mask_bias = ((1.0 - mask) * -1e9).astype(jnp.float32).reshape(B, 1, S)
    for layer_p in params["layers"]:
        x = encoder_layer(x, mask_bias, layer_p, num_heads)
    out2d = layernorm(x.reshape(B * S, D), params["norm_g"], params["norm_b"])
    return out2d.reshape(B, S, D)


# ------------------------------ Parameter init -------------------------------
def init_params(key, num_layers, d_model, d_ff):
    def dense(k, din, dout):
        return jax.random.normal(k, (din, dout), jnp.float32) * 0.02

    layers = []
    keys = jax.random.split(key, num_layers)
    for lk in keys:
        ks = jax.random.split(lk, 6)
        layers.append(dict(
            ln1_g=jnp.ones((d_model,), jnp.float32),
            ln1_b=jnp.zeros((d_model,), jnp.float32),
            wq=dense(ks[0], d_model, d_model), bq=jnp.zeros((d_model,), jnp.float32),
            wk=dense(ks[1], d_model, d_model), bk=jnp.zeros((d_model,), jnp.float32),
            wv=dense(ks[2], d_model, d_model), bv=jnp.zeros((d_model,), jnp.float32),
            wo=dense(ks[3], d_model, d_model), bo=jnp.zeros((d_model,), jnp.float32),
            ln2_g=jnp.ones((d_model,), jnp.float32),
            ln2_b=jnp.zeros((d_model,), jnp.float32),
            w1=dense(ks[4], d_model, d_ff), b1=jnp.zeros((d_ff,), jnp.float32),
            w2=dense(ks[5], d_ff, d_model), b2=jnp.zeros((d_model,), jnp.float32),
        ))
    return dict(
        layers=layers,
        norm_g=jnp.ones((d_model,), jnp.float32),
        norm_b=jnp.zeros((d_model,), jnp.float32),
    )


def prepare_params(params_f32, num_heads):
    """Stack Q/K/V weights into a (3, D, D) bf16 operand, fold 1/sqrt(Dh) into
    Wq/bq, and pre-cast all MXU weight operands to bf16 (LN/bias stay f32)."""
    layers = []
    for p in params_f32["layers"]:
        d_model = p["wq"].shape[0]
        scale = 1.0 / math.sqrt(d_model // num_heads)
        wqkv = jnp.stack([p["wq"] * scale, p["wk"], p["wv"]], axis=0).astype(MXU_DTYPE)
        bqkv = jnp.stack([p["bq"] * scale, p["bk"], p["bv"]],
                         axis=0).reshape(3, 1, d_model)
        layers.append(dict(
            ln1_g=p["ln1_g"], ln1_b=p["ln1_b"],
            wqkv=wqkv, bqkv=bqkv,
            wo=p["wo"].astype(MXU_DTYPE), bo=p["bo"],
            ln2_g=p["ln2_g"], ln2_b=p["ln2_b"],
            w1=p["w1"].astype(MXU_DTYPE), b1=p["b1"],
            w2=p["w2"].astype(MXU_DTYPE), b2=p["b2"],
        ))
    return dict(layers=layers,
                norm_g=params_f32["norm_g"], norm_b=params_f32["norm_b"])


# --------------------------- pure-JAX f32 reference ---------------------------
def _reference_forward(x, mask, params_f32, num_heads):
    B, S, D = x.shape
    Dh = D // num_heads
    bias = ((1.0 - mask) * -1e9).reshape(B, 1, 1, S)

    def ln(v, g, b):
        mu = jnp.mean(v, -1, keepdims=True)
        var = jnp.mean(jnp.square(v - mu), -1, keepdims=True)
        return (v - mu) * jax.lax.rsqrt(var + EPS) * g + b

    for p in params_f32["layers"]:
        h = ln(x, p["ln1_g"], p["ln1_b"])
        q = h @ p["wq"] + p["bq"]
        k = h @ p["wk"] + p["bk"]
        v = h @ p["wv"] + p["bv"]

        def heads(t):
            return t.reshape(B, S, num_heads, Dh).transpose(0, 2, 1, 3)

        qh, kh, vh = heads(q), heads(k), heads(v)
        s = jnp.einsum("bhqd,bhkd->bhqk", qh, kh) / math.sqrt(Dh) + bias
        pa = jax.nn.softmax(s, axis=-1)
        a = jnp.einsum("bhqk,bhkd->bhqd", pa, vh).transpose(0, 2, 1, 3).reshape(B, S, D)
        x = x + a @ p["wo"] + p["bo"]
        h = ln(x, p["ln2_g"], p["ln2_b"])
        f = jnp.maximum(h @ p["w1"] + p["b1"], 0.0)
        x = x + f @ p["w2"] + p["b2"]
    return ln(x, params_f32["norm_g"], params_f32["norm_b"])


if __name__ == "__main__":
    B, S, D, H, F, L = 2, 8, 32, 4, 64, 2

    key = jax.random.PRNGKey(0)
    kx, kp = jax.random.split(key)
    x = jax.random.normal(kx, (B, S, D), jnp.float32)
    # keep all positions in batch 0; mask out the last 2 key positions of batch 1
    mask = jnp.ones((B, S), jnp.float32).at[1, 6:].set(0.0)

    params_f32 = init_params(kp, L, D, F)
    params = prepare_params(params_f32, H)

    fwd = jax.jit(functools.partial(encoder_forward, num_heads=H))
    out = fwd(x, mask, params)
    jax.block_until_ready(out)

    assert out.shape == (B, S, D)
    assert jnp.all(jnp.isfinite(out))

    ref = _reference_forward(x, mask, params_f32, H)
    err = float(jnp.max(jnp.abs(out - ref)))
    assert err < 0.1, f"max abs diff vs f32 reference too large: {err}"
    print("KERNEL_OK")
</pallas_src>

<mosaic_0001>
module attributes {stable_mosaic.version = 11 : i64} {
  func.func @_ln_qkv_kernel(%arg0: i32, %arg1: i32, %arg2: i32, %arg3: memref<16x32xf32, #tpu.memory_space<vmem>>, %arg4: memref<1x32xf32, #tpu.memory_space<vmem>>, %arg5: memref<1x32xf32, #tpu.memory_space<vmem>>, %arg6: memref<1x32x32xbf16, #tpu.memory_space<vmem>>, %arg7: memref<1x1x32xf32, #tpu.memory_space<vmem>>, %arg8: memref<1x16x32xbf16, #tpu.memory_space<vmem>>, %arg9: memref<16x32xbf16, #tpu.memory_space<vmem>>) attributes {dimension_semantics = [#tpu.dimension_semantics<parallel>, #tpu.dimension_semantics<arbitrary>, #tpu.dimension_semantics<arbitrary>], iteration_bounds = array<i64: 1, 3, 1>, scalar_prefetch = 0 : i64, scratch_operands = 1 : i64, tpu.core_type = #tpu.core_type<tc>, window_params = [{transform_indices = @transform_0, window_bounds = array<i64: 16, 32>}, {pipeline_mode = #tpu.pipeline_mode<synchronous>, transform_indices = @transform_1, window_bounds = array<i64: 1, 32>}, {pipeline_mode = #tpu.pipeline_mode<synchronous>, transform_indices = @transform_2, window_bounds = array<i64: 1, 32>}, {transform_indices = @transform_3, window_bounds = array<i64: 1, 32, 32>}, {transform_indices = @transform_4, window_bounds = array<i64: 1, 1, 32>}, {transform_indices = @transform_5, window_bounds = array<i64: 1, 16, 32>}]} {
    %c0_i32 = arith.constant 0 : i32
    %0 = arith.cmpi eq, %arg1, %c0_i32 : i32
    %c0_i32_0 = arith.constant 0 : i32
    %1 = arith.cmpi eq, %arg2, %c0_i32_0 : i32
    %2 = arith.andi %0, %1 : i1
    %3 = arith.extui %2 : i1 to i32
    %c0_i32_1 = arith.constant 0 : i32
    %4 = arith.cmpi ne, %3, %c0_i32_1 : i32
    scf.if %4 {
      %c0_12 = arith.constant 0 : index
      %c0_13 = arith.constant 0 : index
      %17 = vector.load %arg3[%c0_12, %c0_13] : memref<16x32xf32, #tpu.memory_space<vmem>>, vector<16x32xf32>
      %c0_14 = arith.constant 0 : index
      %c0_15 = arith.constant 0 : index
      %18 = vector.load %arg4[%c0_14, %c0_15] : memref<1x32xf32, #tpu.memory_space<vmem>>, vector<1x32xf32>
      %c0_16 = arith.constant 0 : index
      %c0_17 = arith.constant 0 : index
      %19 = vector.load %arg5[%c0_16, %c0_17] : memref<1x32xf32, #tpu.memory_space<vmem>>, vector<1x32xf32>
      %cst_18 = arith.constant dense<0.000000e+00> : vector<16xf32>
      %20 = vector.multi_reduction <add>, %17, %cst_18 [1] : vector<16x32xf32> to vector<16xf32>
      %21 = vector.shape_cast %20 : vector<16xf32> to vector<16x1xf32>
      %cst_19 = arith.constant 3.200000e+01 : f32
      %22 = vector.broadcast %cst_19 : f32 to vector<16x1xf32>
      %23 = arith.divf %21, %22 : vector<16x1xf32>
      %24 = vector.broadcast %23 : vector<16x1xf32> to vector<16x32xf32>
      %25 = arith.subf %17, %24 : vector<16x32xf32>
      %26 = arith.mulf %25, %25 : vector<16x32xf32>
      %cst_20 = arith.constant dense<0.000000e+00> : vector<16xf32>
      %27 = vector.multi_reduction <add>, %26, %cst_20 [1] : vector<16x32xf32> to vector<16xf32>
      %28 = vector.shape_cast %27 : vector<16xf32> to vector<16x1xf32>
      %cst_21 = arith.constant 3.200000e+01 : f32
      %29 = vector.broadcast %cst_21 : f32 to vector<16x1xf32>
      %30 = arith.divf %28, %29 : vector<16x1xf32>
      %cst_22 = arith.constant 9.99999997E-7 : f32
      %31 = vector.broadcast %cst_22 : f32 to vector<16x1xf32>
      %32 = arith.addf %30, %31 : vector<16x1xf32>
      %33 = math.rsqrt %32 : vector<16x1xf32>
      %34 = vector.broadcast %23 : vector<16x1xf32> to vector<16x32xf32>
      %35 = arith.subf %17, %34 : vector<16x32xf32>
      %36 = vector.broadcast %33 : vector<16x1xf32> to vector<16x32xf32>
      %37 = arith.mulf %35, %36 : vector<16x32xf32>
      %38 = vector.broadcast %18 : vector<1x32xf32> to vector<16x32xf32>
      %39 = arith.mulf %37, %38 : vector<16x32xf32>
      %40 = vector.broadcast %19 : vector<1x32xf32> to vector<16x32xf32>
      %41 = arith.addf %39, %40 : vector<16x32xf32>
      %42 = arith.truncf %41 : vector<16x32xf32> to vector<16x32xbf16>
      %c0_23 = arith.constant 0 : index
      %c0_24 = arith.constant 0 : index
      %43 = vector.load %arg9[%c0_23, %c0_24] : memref<16x32xbf16, #tpu.memory_space<vmem>>, vector<16x32xbf16>
      tpu.vector_store %arg9[%c0_23, %c0_24], %42 {strides = array<i32>} : memref<16x32xbf16, #tpu.memory_space<vmem>>, vector<16x32xbf16>,
    } else {
    }
    %c0 = arith.constant 0 : index
    %c0_2 = arith.constant 0 : index
    %5 = vector.load %arg9[%c0, %c0_2] : memref<16x32xbf16, #tpu.memory_space<vmem>>, vector<16x32xbf16>
    %c0_3 = arith.constant 0 : index
    %c0_4 = arith.constant 0 : index
    %c0_5 = arith.constant 0 : index
    %6 = vector.load %arg6[%c0_3, %c0_4, %c0_5] : memref<1x32x32xbf16, #tpu.memory_space<vmem>>, vector<1x32x32xbf16>
    %7 = vector.shape_cast %6 : vector<1x32x32xbf16> to vector<32x32xbf16>
    %cst = arith.constant dense<0.000000e+00> : vector<16x32xf32>
    %8 = tpu.matmul %5, %7, %cst {dimension_numbers = #tpu.dot_dimension_numbers<[1], [0], [0], [1], [0, 0, 1, 1], [], []>} : vector<16x32xbf16>, vector<32x32xbf16>, vector<16x32xf32> -> vector<16x32xf32>
    %c0_6 = arith.constant 0 : index
    %c0_7 = arith.constant 0 : index
    %c0_8 = arith.constant 0 : index
    %9 = vector.load %arg7[%c0_6, %c0_7, %c0_8] : memref<1x1x32xf32, #tpu.memory_space<vmem>>, vector<1x1x32xf32>
    %10 = vector.shape_cast %9 : vector<1x1x32xf32> to vector<1x32xf32>
    %11 = vector.broadcast %10 : vector<1x32xf32> to vector<16x32xf32>
    %12 = arith.addf %8, %11 : vector<16x32xf32>
    %13 = arith.truncf %12 : vector<16x32xf32> to vector<16x32xbf16>
    %c0_9 = arith.constant 0 : index
    %c0_10 = arith.constant 0 : index
    %c0_11 = arith.constant 0 : index
    %14 = vector.load %arg8[%c0_9, %c0_10, %c0_11] : memref<1x16x32xbf16, #tpu.memory_space<vmem>>, vector<1x16x32xbf16>
    %15 = vector.shape_cast %14 : vector<1x16x32xbf16> to vector<16x32xbf16>
    %16 = vector.shape_cast %13 : vector<16x32xbf16> to vector<1x16x32xbf16>
    tpu.vector_store %arg8[%c0_9, %c0_10, %c0_11], %16 {strides = array<i32>} : memref<1x16x32xbf16, #tpu.memory_space<vmem>>, vector<1x16x32xbf16>,
    return
  }
  func.func @transform_0(%arg0: i32, %arg1: i32, %arg2: i32) -> (i32, i32) {
    %c0_i32 = arith.constant 0 : i32
    %c0_i32_0 = arith.constant 0 : i32
    return %arg0, %c0_i32 : i32, i32
  }
  func.func @transform_1(%arg0: i32, %arg1: i32, %arg2: i32) -> (i32, i32) {
    %c0_i32 = arith.constant 0 : i32
    %c0_i32_0 = arith.constant 0 : i32
    %c0_i32_1 = arith.constant 0 : i32
    return %c0_i32, %c0_i32_0 : i32, i32
  }
  func.func @transform_2(%arg0: i32, %arg1: i32, %arg2: i32) -> (i32, i32) {
    %c0_i32 = arith.constant 0 : i32
    %c0_i32_0 = arith.constant 0 : i32
    %c0_i32_1 = arith.constant 0 : i32
    return %c0_i32, %c0_i32_0 : i32, i32
  }
  func.func @transform_3(%arg0: i32, %arg1: i32, %arg2: i32) -> (i32, i32, i32) {
    %c0_i32 = arith.constant 0 : i32
    %c0_i32_0 = arith.constant 0 : i32
    return %arg1, %c0_i32, %arg2 : i32, i32, i32
  }
  func.func @transform_4(%arg0: i32, %arg1: i32, %arg2: i32) -> (i32, i32, i32) {
    %c0_i32 = arith.constant 0 : i32
    %c0_i32_0 = arith.constant 0 : i32
    return %arg1, %c0_i32, %arg2 : i32, i32, i32
  }
  func.func @transform_5(%arg0: i32, %arg1: i32, %arg2: i32) -> (i32, i32, i32) {
    %c0_i32 = arith.constant 0 : i32
    return %arg1, %arg0, %arg2 : i32, i32, i32
  }
}

module attributes {stable_mosaic.version = 11 : i64} {
  func.func @_attn_kernel(%arg0: i32, %arg1: i32, %arg2: i32, %arg3: memref<1x1x8x32xbf16, #tpu.memory_space<vmem>>, %arg4: memref<1x1x8x32xbf16, #tpu.memory_space<vmem>>, %arg5: memref<1x1x8x32xbf16, #tpu.memory_space<vmem>>, %arg6: memref<1x1x8xf32, #tpu.memory_space<vmem>>, %arg7: memref<32x32xbf16, #tpu.memory_space<vmem>>, %arg8: memref<1x32xf32, #tpu.memory_space<vmem>>, %arg9: memref<1x8x32xf32, #tpu.memory_space<vmem>>, %arg10: memref<1x8x32xf32, #tpu.memory_space<vmem>>, %arg11: memref<4x8x8xbf16, #tpu.memory_space<vmem>>, %arg12: memref<4x8x8xf32, #tpu.memory_space<vmem>>, %arg13: memref<4x8x1xf32, #tpu.memory_space<vmem>>, %arg14: memref<4x8x1xf32, #tpu.memory_space<vmem>>) attributes {dimension_semantics = [#tpu.dimension_semantics<parallel>, #tpu.dimension_semantics<parallel>, #tpu.dimension_semantics<arbitrary>], iteration_bounds = array<i64: 2, 1, 1>, scalar_prefetch = 0 : i64, scratch_operands = 4 : i64, tpu.core_type = #tpu.core_type<tc>, window_params = [{transform_indices = @transform_0, window_bounds = array<i64: 1, 1, 8, 32>}, {transform_indices = @transform_1, window_bounds = array<i64: 1, 1, 8, 32>}, {transform_indices = @transform_2, window_bounds = array<i64: 1, 1, 8, 32>}, {transform_indices = @transform_3, window_bounds = array<i64: 1, 1, 8>}, {pipeline_mode = #tpu.pipeline_mode<synchronous>, transform_indices = @transform_4, window_bounds = array<i64: 32, 32>}, {pipeline_mode = #tpu.pipeline_mode<synchronous>, transform_indices = @transform_5, window_bounds = array<i64: 1, 32>}, {transform_indices = @transform_6, window_bounds = array<i64: 1, 8, 32>}, {transform_indices = @transform_7, window_bounds = array<i64: 1, 8, 32>}]} {
    %c0_i32 = arith.constant 0 : i32
    %0 = arith.cmpi eq, %arg2, %c0_i32 : i32
    %1 = arith.extui %0 : i1 to i32
    %c0_i32_0 = arith.constant 0 : i32
    %2 = arith.cmpi ne, %1, %c0_i32_0 : i32
    scf.if %2 {
      %c0_37 = arith.constant 0 : index
      %c0_38 = arith.constant 0 : index
      %c0_39 = arith.constant 0 : index
      %c0_40 = arith.constant 0 : index
      %44 = vector.load %arg3[%c0_37, %c0_38, %c0_39, %c0_40] : memref<1x1x8x32xbf16, #tpu.memory_space<vmem>>, vector<1x1x8x32xbf16>
      %45 = vector.shape_cast %44 : vector<1x1x8x32xbf16> to vector<8x32xbf16>
      %46 = vector.shape_cast %45 : vector<8x32xbf16> to vector<8x4x8xbf16>
      %47 = tpu.transpose %46, [1, 0, 2] : vector<8x4x8xbf16> -> vector<4x8x8xbf16>
      %c0_41 = arith.constant 0 : index
      %c0_42 = arith.constant 0 : index
      %c0_43 = arith.constant 0 : index
      %48 = vector.load %arg11[%c0_41, %c0_42, %c0_43] : memref<4x8x8xbf16, #tpu.memory_space<vmem>>, vector<4x8x8xbf16>
      tpu.vector_store %arg11[%c0_41, %c0_42, %c0_43], %47 {strides = array<i32>} : memref<4x8x8xbf16, #tpu.memory_space<vmem>>, vector<4x8x8xbf16>,
      %cst_44 = arith.constant 0xFF800000 : f32
      %49 = vector.broadcast %cst_44 : f32 to vector<4x8x1xf32>
      %c0_45 = arith.constant 0 : index
      %c0_46 = arith.constant 0 : index
      %c0_47 = arith.constant 0 : index
      %50 = vector.load %arg13[%c0_45, %c0_46, %c0_47] : memref<4x8x1xf32, #tpu.memory_space<vmem>>, vector<4x8x1xf32>
      tpu.vector_store %arg13[%c0_45, %c0_46, %c0_47], %49 {strides = array<i32>} : memref<4x8x1xf32, #tpu.memory_space<vmem>>, vector<4x8x1xf32>,
      %cst_48 = arith.constant 0.000000e+00 : f32
      %51 = vector.broadcast %cst_48 : f32 to vector<4x8x1xf32>
      %c0_49 = arith.constant 0 : index
      %c0_50 = arith.constant 0 : index
      %c0_51 = arith.constant 0 : index
      %52 = vector.load %arg14[%c0_49, %c0_50, %c0_51] : memref<4x8x1xf32, #tpu.memory_space<vmem>>, vector<4x8x1xf32>
      tpu.vector_store %arg14[%c0_49, %c0_50, %c0_51], %51 {strides = array<i32>} : memref<4x8x1xf32, #tpu.memory_space<vmem>>, vector<4x8x1xf32>,
      %cst_52 = arith.constant 0.000000e+00 : f32
      %53 = vector.broadcast %cst_52 : f32 to vector<4x8x8xf32>
      %c0_53 = arith.constant 0 : index
      %c0_54 = arith.constant 0 : index
      %c0_55 = arith.constant 0 : index
      %54 = vector.load %arg12[%c0_53, %c0_54, %c0_55] : memref<4x8x8xf32, #tpu.memory_space<vmem>>, vector<4x8x8xf32>
      tpu.vector_store %arg12[%c0_53, %c0_54, %c0_55], %53 {strides = array<i32>} : memref<4x8x8xf32, #tpu.memory_space<vmem>>, vector<4x8x8xf32>,
    } else {
    }
    %c0 = arith.constant 0 : index
    %c0_1 = arith.constant 0 : index
    %c0_2 = arith.constant 0 : index
    %c0_3 = arith.constant 0 : index
    %3 = vector.load %arg4[%c0, %c0_1, %c0_2, %c0_3] : memref<1x1x8x32xbf16, #tpu.memory_space<vmem>>, vector<1x1x8x32xbf16>
    %4 = vector.shape_cast %3 : vector<1x1x8x32xbf16> to vector<8x32xbf16>
    %5 = vector.shape_cast %4 : vector<8x32xbf16> to vector<8x4x8xbf16>
    %6 = tpu.transpose %5, [1, 0, 2] : vector<8x4x8xbf16> -> vector<4x8x8xbf16>
    %c0_4 = arith.constant 0 : index
    %c0_5 = arith.constant 0 : index
    %c0_6 = arith.constant 0 : index
    %c0_7 = arith.constant 0 : index
    %7 = vector.load %arg5[%c0_4, %c0_5, %c0_6, %c0_7] : memref<1x1x8x32xbf16, #tpu.memory_space<vmem>>, vector<1x1x8x32xbf16>
    %8 = vector.shape_cast %7 : vector<1x1x8x32xbf16> to vector<8x32xbf16>
    %9 = vector.shape_cast %8 : vector<8x32xbf16> to vector<8x4x8xbf16>
    %10 = tpu.transpose %9, [1, 0, 2] : vector<8x4x8xbf16> -> vector<4x8x8xbf16>
    %c0_8 = arith.constant 0 : index
    %c0_9 = arith.constant 0 : index
    %c0_10 = arith.constant 0 : index
    %11 = vector.load %arg11[%c0_8, %c0_9, %c0_10] : memref<4x8x8xbf16, #tpu.memory_space<vmem>>, vector<4x8x8xbf16>
    "tpu.trace_start"() <{level = 10 : i32, message = "hqd,hkd->hqk"}> : () -> ()
    %cst = arith.constant dense<0.000000e+00> : vector<4x8x8xf32>
    %12 = tpu.matmul %11, %6, %cst {dimension_numbers = #tpu.dot_dimension_numbers<[2], [2], [1], [1], [0, 0, 0, 1, 1, 1], [0], [0]>} : vector<4x8x8xbf16>, vector<4x8x8xbf16>, vector<4x8x8xf32> -> vector<4x8x8xf32>
    "tpu.trace_stop"() : () -> ()
    %c0_11 = arith.constant 0 : index
    %c0_12 = arith.constant 0 : index
    %c0_13 = arith.constant 0 : index
    %13 = vector.load %arg6[%c0_11, %c0_12, %c0_13] : memref<1x1x8xf32, #tpu.memory_space<vmem>>, vector<1x1x8xf32>
    %14 = vector.shape_cast %13 : vector<1x1x8xf32> to vector<1x8xf32>
    %15 = vector.shape_cast %14 : vector<1x8xf32> to vector<1x1x8xf32>
    %16 = vector.broadcast %15 : vector<1x1x8xf32> to vector<4x8x8xf32>
    %17 = arith.addf %12, %16 : vector<4x8x8xf32>
    %c0_14 = arith.constant 0 : index
    %c0_15 = arith.constant 0 : index
    %c0_16 = arith.constant 0 : index
    %18 = vector.load %arg13[%c0_14, %c0_15, %c0_16] : memref<4x8x1xf32, #tpu.memory_space<vmem>>, vector<4x8x1xf32>
    %cst_17 = arith.constant dense<0xFF800000> : vector<4x8xf32>
    %19 = vector.multi_reduction <maximumf>, %17, %cst_17 [2] : vector<4x8x8xf32> to vector<4x8xf32>
    %20 = vector.shape_cast %19 : vector<4x8xf32> to vector<4x8x1xf32>
    %21 = arith.maximumf %18, %20 : vector<4x8x1xf32>
    %22 = arith.subf %18, %21 : vector<4x8x1xf32>
    %23 = math.exp %22 : vector<4x8x1xf32>
    %24 = vector.broadcast %21 : vector<4x8x1xf32> to vector<4x8x8xf32>
    %25 = arith.subf %17, %24 : vector<4x8x8xf32>
    %26 = math.exp %25 : vector<4x8x8xf32>
    %c0_18 = arith.constant 0 : index
    %c0_19 = arith.constant 0 : index
    %c0_20 = arith.constant 0 : index
    %27 = vector.load %arg14[%c0_18, %c0_19, %c0_20] : memref<4x8x1xf32, #tpu.memory_space<vmem>>, vector<4x8x1xf32>
    %28 = arith.mulf %23, %27 : vector<4x8x1xf32>
    %cst_21 = arith.constant dense<0.000000e+00> : vector<4x8xf32>
    %29 = vector.multi_reduction <add>, %26, %cst_21 [2] : vector<4x8x8xf32> to vector<4x8xf32>
    %30 = vector.shape_cast %29 : vector<4x8xf32> to vector<4x8x1xf32>
    %31 = arith.addf %28, %30 : vector<4x8x1xf32>
    %c0_22 = arith.constant 0 : index
    %c0_23 = arith.constant 0 : index
    %c0_24 = arith.constant 0 : index
    %32 = vector.load %arg14[%c0_22, %c0_23, %c0_24] : memref<4x8x1xf32, #tpu.memory_space<vmem>>, vector<4x8x1xf32>
    tpu.vector_store %arg14[%c0_22, %c0_23, %c0_24], %31 {strides = array<i32>} : memref<4x8x1xf32, #tpu.memory_space<vmem>>, vector<4x8x1xf32>,
    %33 = arith.truncf %26 : vector<4x8x8xf32> to vector<4x8x8xbf16>
    "tpu.trace_start"() <{level = 10 : i32, message = "hqk,hkd->hqd"}> : () -> ()
    %cst_25 = arith.constant dense<0.000000e+00> : vector<4x8x8xf32>
    %34 = tpu.matmul %33, %10, %cst_25 {dimension_numbers = #tpu.dot_dimension_numbers<[2], [1], [1], [2], [0, 0, 0, 1, 1, 2], [0], [0]>} : vector<4x8x8xbf16>, vector<4x8x8xbf16>, vector<4x8x8xf32> -> vector<4x8x8xf32>
    "tpu.trace_stop"() : () -> ()
    %c0_26 = arith.constant 0 : index
    %c0_27 = arith.constant 0 : index
    %c0_28 = arith.constant 0 : index
    %35 = vector.load %arg12[%c0_26, %c0_27, %c0_28] : memref<4x8x8xf32, #tpu.memory_space<vmem>>, vector<4x8x8xf32>
    %36 = vector.broadcast %23 : vector<4x8x1xf32> to vector<4x8x8xf32>
    %37 = arith.mulf %36, %35 : vector<4x8x8xf32>
    %38 = arith.addf %37, %34 : vector<4x8x8xf32>
    %c0_29 = arith.constant 0 : index
    %c0_30 = arith.constant 0 : index
    %c0_31 = arith.constant 0 : index
    %39 = vector.load %arg12[%c0_29, %c0_30, %c0_31] : memref<4x8x8xf32, #tpu.memory_space<vmem>>, vector<4x8x8xf32>
    tpu.vector_store %arg12[%c0_29, %c0_30, %c0_31], %38 {strides = array<i32>} : memref<4x8x8xf32, #tpu.memory_space<vmem>>, vector<4x8x8xf32>,
    %c0_32 = arith.constant 0 : index
    %c0_33 = arith.constant 0 : index
    %c0_34 = arith.constant 0 : index
    %40 = vector.load %arg13[%c0_32, %c0_33, %c0_34] : memref<4x8x1xf32, #tpu.memory_space<vmem>>, vector<4x8x1xf32>
    tpu.vector_store %arg13[%c0_32, %c0_33, %c0_34], %21 {strides = array<i32>} : memref<4x8x1xf32, #tpu.memory_space<vmem>>, vector<4x8x1xf32>,
    %c0_i32_35 = arith.constant 0 : i32
    %41 = arith.cmpi eq, %arg2, %c0_i32_35 : i32
    %42 = arith.extui %41 : i1 to i32
    %c0_i32_36 = arith.constant 0 : i32
    %43 = arith.cmpi ne, %42, %c0_i32_36 : i32
    scf.if %43 {
      %c0_37 = arith.constant 0 : index
      %c0_38 = arith.constant 0 : index
      %c0_39 = arith.constant 0 : index
      %44 = vector.load %arg12[%c0_37, %c0_38, %c0_39] : memref<4x8x8xf32, #tpu.memory_space<vmem>>, vector<4x8x8xf32>
      %c0_40 = arith.constant 0 : index
      %c0_41 = arith.constant 0 : index
      %c0_42 = arith.constant 0 : index
      %45 = vector.load %arg14[%c0_40, %c0_41, %c0_42] : memref<4x8x1xf32, #tpu.memory_space<vmem>>, vector<4x8x1xf32>
      %46 = tpu.reciprocal %45 {approx = true} : vector<4x8x1xf32> -> vector<4x8x1xf32>
      %47 = vector.broadcast %46 : vector<4x8x1xf32> to vector<4x8x8xf32>
      %48 = arith.mulf %44, %47 : vector<4x8x8xf32>
      %49 = tpu.transpose %48, [1, 0, 2] : vector<4x8x8xf32> -> vector<8x4x8xf32>
      %50 = vector.shape_cast %49 : vector<8x4x8xf32> to vector<8x32xf32>
      %51 = arith.truncf %50 : vector<8x32xf32> to vector<8x32xbf16>
      %c0_43 = arith.constant 0 : index
      %c0_44 = arith.constant 0 : index
      %52 = vector.load %arg7[%c0_43, %c0_44] : memref<32x32xbf16, #tpu.memory_space<vmem>>, vector<32x32xbf16>
      %cst_45 = arith.constant dense<0.000000e+00> : vector<8x32xf32>
      %53 = tpu.matmul %51, %52, %cst_45 {dimension_numbers = #tpu.dot_dimension_numbers<[1], [0], [0], [1], [0, 0, 1, 1], [], []>} : vector<8x32xbf16>, vector<32x32xbf16>, vector<8x32xf32> -> vector<8x32xf32>
      %c0_46 = arith.constant 0 : index
      %c0_47 = arith.constant 0 : index
      %54 = vector.load %arg8[%c0_46, %c0_47] : memref<1x32xf32, #tpu.memory_space<vmem>>, vector<1x32xf32>
      %55 = vector.broadcast %54 : vector<1x32xf32> to vector<8x32xf32>
      %56 = arith.addf %53, %55 : vector<8x32xf32>
      %c0_48 = arith.constant 0 : index
      %c0_49 = arith.constant 0 : index
      %c0_50 = arith.constant 0 : index
      %57 = vector.load %arg9[%c0_48, %c0_49, %c0_50] : memref<1x8x32xf32, #tpu.memory_space<vmem>>, vector<1x8x32xf32>
      %58 = vector.shape_cast %57 : vector<1x8x32xf32> to vector<8x32xf32>
      %59 = arith.addf %56, %58 : vector<8x32xf32>
      %c0_51 = arith.constant 0 : index
      %c0_52 = arith.constant 0 : index
      %c0_53 = arith.constant 0 : index
      %60 = vector.load %arg10[%c0_51, %c0_52, %c0_53] : memref<1x8x32xf32, #tpu.memory_space<vmem>>, vector<1x8x32xf32>
      %61 = vector.shape_cast %60 : vector<1x8x32xf32> to vector<8x32xf32>
      %62 = vector.shape_cast %59 : vector<8x32xf32> to vector<1x8x32xf32>
      tpu.vector_store %arg10[%c0_51, %c0_52, %c0_53], %62 {strides = array<i32>} : memref<1x8x32xf32, #tpu.memory_space<vmem>>, vector<1x8x32xf32>,
    } else {
    }
    return
  }
  func.func @transform_0(%arg0: i32, %arg1: i32, %arg2: i32) -> (i32, i32, i32, i32) {
    %c0_i32 = arith.constant 0 : i32
    %c0_i32_0 = arith.constant 0 : i32
    %c0_i32_1 = arith.constant 0 : i32
    return %c0_i32, %arg0, %arg1, %c0_i32_0 : i32, i32, i32, i32
  }
  func.func @transform_1(%arg0: i32, %arg1: i32, %arg2: i32) -> (i32, i32, i32, i32) {
    %c1_i32 = arith.constant 1 : i32
    %c0_i32 = arith.constant 0 : i32
    %c0_i32_0 = arith.constant 0 : i32
    return %c1_i32, %arg0, %arg2, %c0_i32 : i32, i32, i32, i32
  }
  func.func @transform_2(%arg0: i32, %arg1: i32, %arg2: i32) -> (i32, i32, i32, i32) {
    %c2_i32 = arith.constant 2 : i32
    %c0_i32 = arith.constant 0 : i32
    %c0_i32_0 = arith.constant 0 : i32
    return %c2_i32, %arg0, %arg2, %c0_i32 : i32, i32, i32, i32
  }
  func.func @transform_3(%arg0: i32, %arg1: i32, %arg2: i32) -> (i32, i32, i32) {
    %c0_i32 = arith.constant 0 : i32
    %c0_i32_0 = arith.constant 0 : i32
    return %arg0, %c0_i32, %arg2 : i32, i32, i32
  }
  func.func @transform_4(%arg0: i32, %arg1: i32, %arg2: i32) -> (i32, i32) {
    %c0_i32 = arith.constant 0 : i32
    %c0_i32_0 = arith.constant 0 : i32
    %c0_i32_1 = arith.constant 0 : i32
    return %c0_i32, %c0_i32_0 : i32, i32
  }
  func.func @transform_5(%arg0: i32, %arg1: i32, %arg2: i32) -> (i32, i32) {
    %c0_i32 = arith.constant 0 : i32
    %c0_i32_0 = arith.constant 0 : i32
    %c0_i32_1 = arith.constant 0 : i32
    return %c0_i32, %c0_i32_0 : i32, i32
  }
  func.func @transform_6(%arg0: i32, %arg1: i32, %arg2: i32) -> (i32, i32, i32) {
    %c0_i32 = arith.constant 0 : i32
    %c0_i32_0 = arith.constant 0 : i32
    return %arg0, %arg1, %c0_i32 : i32, i32, i32
  }
  func.func @transform_7(%arg0: i32, %arg1: i32, %arg2: i32) -> (i32, i32, i32) {
    %c0_i32 = arith.constant 0 : i32
    %c0_i32_0 = arith.constant 0 : i32
    return %arg0, %arg1, %c0_i32 : i32, i32, i32
  }
}

module attributes {stable_mosaic.version = 11 : i64} {
  func.func @_ln_qkv_kernel(%arg0: i32, %arg1: i32, %arg2: i32, %arg3: memref<16x32xf32, #tpu.memory_space<vmem>>, %arg4: memref<1x32xf32, #tpu.memory_space<vmem>>, %arg5: memref<1x32xf32, #tpu.memory_space<vmem>>, %arg6: memref<1x32x32xbf16, #tpu.memory_space<vmem>>, %arg7: memref<1x1x32xf32, #tpu.memory_space<vmem>>, %arg8: memref<1x16x32xbf16, #tpu.memory_space<vmem>>, %arg9: memref<16x32xbf16, #tpu.memory_space<vmem>>) attributes {dimension_semantics = [#tpu.dimension_semantics<parallel>, #tpu.dimension_semantics<arbitrary>, #tpu.dimension_semantics<arbitrary>], iteration_bounds = array<i64: 1, 3, 1>, scalar_prefetch = 0 : i64, scratch_operands = 1 : i64, tpu.core_type = #tpu.core_type<tc>, window_params = [{transform_indices = @transform_0, window_bounds = array<i64: 16, 32>}, {pipeline_mode = #tpu.pipeline_mode<synchronous>, transform_indices = @transform_1, window_bounds = array<i64: 1, 32>}, {pipeline_mode = #tpu.pipeline_mode<synchronous>, transform_indices = @transform_2, window_bounds = array<i64: 1, 32>}, {transform_indices = @transform_3, window_bounds = array<i64: 1, 32, 32>}, {transform_indices = @transform_4, window_bounds = array<i64: 1, 1, 32>}, {transform_indices = @transform_5, window_bounds = array<i64: 1, 16, 32>}]} {
    %c0_i32 = arith.constant 0 : i32
    %0 = arith.cmpi eq, %arg1, %c0_i32 : i32
    %c0_i32_0 = arith.constant 0 : i32
    %1 = arith.cmpi eq, %arg2, %c0_i32_0 : i32
    %2 = arith.andi %0, %1 : i1
    %3 = arith.extui %2 : i1 to i32
    %c0_i32_1 = arith.constant 0 : i32
    %4 = arith.cmpi ne, %3, %c0_i32_1 : i32
    scf.if %4 {
      %c0_12 = arith.constant 0 : index
      %c0_13 = arith.constant 0 : index
      %17 = vector.load %arg3[%c0_12, %c0_13] : memref<16x32xf32, #tpu.memory_space<vmem>>, vector<16x32xf32>
      %c0_14 = arith.constant 0 : index
      %c0_15 = arith.constant 0 : index
      %18 = vector.load %arg4[%c0_14, %c0_15] : memref<1x32xf32, #tpu.memory_space<vmem>>, vector<1x32xf32>
      %c0_16 = arith.constant 0 : index
      %c0_17 = arith.constant 0 : index
      %19 = vector.load %arg5[%c0_16, %c0_17] : memref<1x32xf32, #tpu.memory_space<vmem>>, vector<1x32xf32>
      %cst_18 = arith.constant dense<0.000000e+00> : vector<16xf32>
      %20 = vector.multi_reduction <add>, %17, %cst_18 [1] : vector<16x32xf32> to vector<16xf32>
      %21 = vector.shape_cast %20 : vector<16xf32> to vector<16x1xf32>
      %cst_19 = arith.constant 3.200000e+01 : f32
      %22 = vector.broadcast %cst_19 : f32 to vector<16x1xf32>
      %23 = arith.divf %21, %22 : vector<16x1xf32>
      %24 = vector.broadcast %23 : vector<16x1xf32> to vector<16x32xf32>
      %25 = arith.subf %17, %24 : vector<16x32xf32>
      %26 = arith.mulf %25, %25 : vector<16x32xf32>
      %cst_20 = arith.constant dense<0.000000e+00> : vector<16xf32>
      %27 = vector.multi_reduction <add>, %26, %cst_20 [1] : vector<16x32xf32> to vector<16xf32>
      %28 = vector.shape_cast %27 : vector<16xf32> to vector<16x1xf32>
      %cst_21 = arith.constant 3.200000e+01 : f32
      %29 = vector.broadcast %cst_21 : f32 to vector<16x1xf32>
      %30 = arith.divf %28, %29 : vector<16x1xf32>
      %cst_22 = arith.constant 9.99999997E-7 : f32
      %31 = vector.broadcast %cst_22 : f32 to vector<16x1xf32>
      %32 = arith.addf %30, %31 : vector<16x1xf32>
      %33 = math.rsqrt %32 : vector<16x1xf32>
      %34 = vector.broadcast %23 : vector<16x1xf32> to vector<16x32xf32>
      %35 = arith.subf %17, %34 : vector<16x32xf32>
      %36 = vector.broadcast %33 : vector<16x1xf32> to vector<16x32xf32>
      %37 = arith.mulf %35, %36 : vector<16x32xf32>
      %38 = vector.broadcast %18 : vector<1x32xf32> to vector<16x32xf32>
      %39 = arith.mulf %37, %38 : vector<16x32xf32>
      %40 = vector.broadcast %19 : vector<1x32xf32> to vector<16x32xf32>
      %41 = arith.addf %39, %40 : vector<16x32xf32>
      %42 = arith.truncf %41 : vector<16x32xf32> to vector<16x32xbf16>
      %c0_23 = arith.constant 0 : index
      %c0_24 = arith.constant 0 : index
      %43 = vector.load %arg9[%c0_23, %c0_24] : memref<16x32xbf16, #tpu.memory_space<vmem>>, vector<16x32xbf16>
      tpu.vector_store %arg9[%c0_23, %c0_24], %42 {strides = array<i32>} : memref<16x32xbf16, #tpu.memory_space<vmem>>, vector<16x32xbf16>,
    } else {
    }
    %c0 = arith.constant 0 : index
    %c0_2 = arith.constant 0 : index
    %5 = vector.load %arg9[%c0, %c0_2] : memref<16x32xbf16, #tpu.memory_space<vmem>>, vector<16x32xbf16>
    %c0_3 = arith.constant 0 : index
    %c0_4 = arith.constant 0 : index
    %c0_5 = arith.constant 0 : index
    %6 = vector.load %arg6[%c0_3, %c0_4, %c0_5] : memref<1x32x32xbf16, #tpu.memory_space<vmem>>, vector<1x32x32xbf16>
    %7 = vector.shape_cast %6 : vector<1x32x32xbf16> to vector<32x32xbf16>
    %cst = arith.constant dense<0.000000e+00> : vector<16x32xf32>
    %8 = tpu.matmul %5, %7, %cst {dimension_numbers = #tpu.dot_dimension_numbers<[1], [0], [0], [1], [0, 0, 1, 1], [], []>} : vector<16x32xbf16>, vector<32x32xbf16>, vector<16x32xf32> -> vector<16x32xf32>
    %c0_6 = arith.constant 0 : index
    %c0_7 = arith.constant 0 : index
    %c0_8 = arith.constant 0 : index
    %9 = vector.load %arg7[%c0_6, %c0_7, %c0_8] : memref<1x1x32xf32, #tpu.memory_space<vmem>>, vector<1x1x32xf32>
    %10 = vector.shape_cast %9 : vector<1x1x32xf32> to vector<1x32xf32>
    %11 = vector.broadcast %10 : vector<1x32xf32> to vector<16x32xf32>
    %12 = arith.addf %8, %11 : vector<16x32xf32>
    %13 = arith.truncf %12 : vector<16x32xf32> to vector<16x32xbf16>
    %c0_9 = arith.constant 0 : index
    %c0_10 = arith.constant 0 : index
    %c0_11 = arith.constant 0 : index
    %14 = vector.load %arg8[%c0_9, %c0_10, %c0_11] : memref<1x16x32xbf16, #tpu.memory_space<vmem>>, vector<1x16x32xbf16>
    %15 = vector.shape_cast %14 : vector<1x16x32xbf16> to vector<16x32xbf16>
    %16 = vector.shape_cast %13 : vector<16x32xbf16> to vector<1x16x32xbf16>
    tpu.vector_store %arg8[%c0_9, %c0_10, %c0_11], %16 {strides = array<i32>} : memref<1x16x32xbf16, #tpu.memory_space<vmem>>, vector<1x16x32xbf16>,
    return
  }
  func.func @transform_0(%arg0: i32, %arg1: i32, %arg2: i32) -> (i32, i32) {
    %c0_i32 = arith.constant 0 : i32
    %c0_i32_0 = arith.constant 0 : i32
    return %arg0, %c0_i32 : i32, i32
  }
  func.func @transform_1(%arg0: i32, %arg1: i32, %arg2: i32) -> (i32, i32) {
    %c0_i32 = arith.constant 0 : i32
    %c0_i32_0 = arith.constant 0 : i32
    %c0_i32_1 = arith.constant 0 : i32
    return %c0_i32, %c0_i32_0 : i32, i32
  }
  func.func @transform_2(%arg0: i32, %arg1: i32, %arg2: i32) -> (i32, i32) {
    %c0_i32 = arith.constant 0 : i32
    %c0_i32_0 = arith.constant 0 : i32
    %c0_i32_1 = arith.constant 0 : i32
    return %c0_i32, %c0_i32_0 : i32, i32
  }
  func.func @transform_3(%arg0: i32, %arg1: i32, %arg2: i32) -> (i32, i32, i32) {
    %c0_i32 = arith.constant 0 : i32
    %c0_i32_0 = arith.constant 0 : i32
    return %arg1, %c0_i32, %arg2 : i32, i32, i32
  }
  func.func @transform_4(%arg0: i32, %arg1: i32, %arg2: i32) -> (i32, i32, i32) {
    %c0_i32 = arith.constant 0 : i32
    %c0_i32_0 = arith.constant 0 : i32
    return %arg1, %c0_i32, %arg2 : i32, i32, i32
  }
  func.func @transform_5(%arg0: i32, %arg1: i32, %arg2: i32) -> (i32, i32, i32) {
    %c0_i32 = arith.constant 0 : i32
    return %arg1, %arg0, %arg2 : i32, i32, i32
  }
}

module attributes {stable_mosaic.version = 11 : i64} {
  func.func @_ffn_kernel(%arg0: i32, %arg1: i32, %arg2: memref<16x32xf32, #tpu.memory_space<vmem>>, %arg3: memref<1x32xf32, #tpu.memory_space<vmem>>, %arg4: memref<1x32xf32, #tpu.memory_space<vmem>>, %arg5: memref<32x64xbf16, #tpu.memory_space<vmem>>, %arg6: memref<1x64xf32, #tpu.memory_space<vmem>>, %arg7: memref<64x32xbf16, #tpu.memory_space<vmem>>, %arg8: memref<1x32xf32, #tpu.memory_space<vmem>>, %arg9: memref<16x32xf32, #tpu.memory_space<vmem>>, %arg10: memref<16x32xbf16, #tpu.memory_space<vmem>>) attributes {dimension_semantics = [#tpu.dimension_semantics<parallel>, #tpu.dimension_semantics<arbitrary>], iteration_bounds = array<i64: 1, 1>, scalar_prefetch = 0 : i64, scratch_operands = 1 : i64, tpu.core_type = #tpu.core_type<tc>, window_params = [{transform_indices = @transform_0, window_bounds = array<i64: 16, 32>}, {pipeline_mode = #tpu.pipeline_mode<synchronous>, transform_indices = @transform_1, window_bounds = array<i64: 1, 32>}, {pipeline_mode = #tpu.pipeline_mode<synchronous>, transform_indices = @transform_2, window_bounds = array<i64: 1, 32>}, {transform_indices = @transform_3, window_bounds = array<i64: 32, 64>}, {transform_indices = @transform_4, window_bounds = array<i64: 1, 64>}, {transform_indices = @transform_5, window_bounds = array<i64: 64, 32>}, {pipeline_mode = #tpu.pipeline_mode<synchronous>, transform_indices = @transform_6, window_bounds = array<i64: 1, 32>}, {transform_indices = @transform_7, window_bounds = array<i64: 16, 32>}]} {
    %c0_i32 = arith.constant 0 : i32
    %0 = arith.cmpi eq, %arg1, %c0_i32 : i32
    %1 = arith.extui %0 : i1 to i32
    %c0_i32_0 = arith.constant 0 : i32
    %2 = arith.cmpi ne, %1, %c0_i32_0 : i32
    scf.if %2 {
      %c0_16 = arith.constant 0 : index
      %c0_17 = arith.constant 0 : index
      %20 = vector.load %arg2[%c0_16, %c0_17] : memref<16x32xf32, #tpu.memory_space<vmem>>, vector<16x32xf32>
      %c0_18 = arith.constant 0 : index
      %c0_19 = arith.constant 0 : index
      %21 = vector.load %arg3[%c0_18, %c0_19] : memref<1x32xf32, #tpu.memory_space<vmem>>, vector<1x32xf32>
      %c0_20 = arith.constant 0 : index
      %c0_21 = arith.constant 0 : index
      %22 = vector.load %arg4[%c0_20, %c0_21] : memref<1x32xf32, #tpu.memory_space<vmem>>, vector<1x32xf32>
      %cst_22 = arith.constant dense<0.000000e+00> : vector<16xf32>
      %23 = vector.multi_reduction <add>, %20, %cst_22 [1] : vector<16x32xf32> to vector<16xf32>
      %24 = vector.shape_cast %23 : vector<16xf32> to vector<16x1xf32>
      %cst_23 = arith.constant 3.200000e+01 : f32
      %25 = vector.broadcast %cst_23 : f32 to vector<16x1xf32>
      %26 = arith.divf %24, %25 : vector<16x1xf32>
      %27 = vector.broadcast %26 : vector<16x1xf32> to vector<16x32xf32>
      %28 = arith.subf %20, %27 : vector<16x32xf32>
      %29 = arith.mulf %28, %28 : vector<16x32xf32>
      %cst_24 = arith.constant dense<0.000000e+00> : vector<16xf32>
      %30 = vector.multi_reduction <add>, %29, %cst_24 [1] : vector<16x32xf32> to vector<16xf32>
      %31 = vector.shape_cast %30 : vector<16xf32> to vector<16x1xf32>
      %cst_25 = arith.constant 3.200000e+01 : f32
      %32 = vector.broadcast %cst_25 : f32 to vector<16x1xf32>
      %33 = arith.divf %31, %32 : vector<16x1xf32>
      %cst_26 = arith.constant 9.99999997E-7 : f32
      %34 = vector.broadcast %cst_26 : f32 to vector<16x1xf32>
      %35 = arith.addf %33, %34 : vector<16x1xf32>
      %36 = math.rsqrt %35 : vector<16x1xf32>
      %37 = vector.broadcast %26 : vector<16x1xf32> to vector<16x32xf32>
      %38 = arith.subf %20, %37 : vector<16x32xf32>
      %39 = vector.broadcast %36 : vector<16x1xf32> to vector<16x32xf32>
      %40 = arith.mulf %38, %39 : vector<16x32xf32>
      %41 = vector.broadcast %21 : vector<1x32xf32> to vector<16x32xf32>
      %42 = arith.mulf %40, %41 : vector<16x32xf32>
      %43 = vector.broadcast %22 : vector<1x32xf32> to vector<16x32xf32>
      %44 = arith.addf %42, %43 : vector<16x32xf32>
      %45 = arith.truncf %44 : vector<16x32xf32> to vector<16x32xbf16>
      %c0_27 = arith.constant 0 : index
      %c0_28 = arith.constant 0 : index
      %46 = vector.load %arg10[%c0_27, %c0_28] : memref<16x32xbf16, #tpu.memory_space<vmem>>, vector<16x32xbf16>
      tpu.vector_store %arg10[%c0_27, %c0_28], %45 {strides = array<i32>} : memref<16x32xbf16, #tpu.memory_space<vmem>>, vector<16x32xbf16>,
      %cst_29 = arith.constant 0.000000e+00 : f32
      %47 = vector.broadcast %cst_29 : f32 to vector<16x32xf32>
      %c0_30 = arith.constant 0 : index
      %c0_31 = arith.constant 0 : index
      %48 = vector.load %arg9[%c0_30, %c0_31] : memref<16x32xf32, #tpu.memory_space<vmem>>, vector<16x32xf32>
      tpu.vector_store %arg9[%c0_30, %c0_31], %47 {strides = array<i32>} : memref<16x32xf32, #tpu.memory_space<vmem>>, vector<16x32xf32>,
    } else {
    }
    %c0 = arith.constant 0 : index
    %c0_1 = arith.constant 0 : index
    %3 = vector.load %arg10[%c0, %c0_1] : memref<16x32xbf16, #tpu.memory_space<vmem>>, vector<16x32xbf16>
    %c0_2 = arith.constant 0 : index
    %c0_3 = arith.constant 0 : index
    %4 = vector.load %arg5[%c0_2, %c0_3] : memref<32x64xbf16, #tpu.memory_space<vmem>>, vector<32x64xbf16>
    %cst = arith.constant dense<0.000000e+00> : vector<16x64xf32>
    %5 = tpu.matmul %3, %4, %cst {dimension_numbers = #tpu.dot_dimension_numbers<[1], [0], [0], [1], [0, 0, 1, 1], [], []>} : vector<16x32xbf16>, vector<32x64xbf16>, vector<16x64xf32> -> vector<16x64xf32>
    %c0_4 = arith.constant 0 : index
    %c0_5 = arith.constant 0 : index
    %6 = vector.load %arg6[%c0_4, %c0_5] : memref<1x64xf32, #tpu.memory_space<vmem>>, vector<1x64xf32>
    %7 = vector.broadcast %6 : vector<1x64xf32> to vector<16x64xf32>
    %8 = arith.addf %5, %7 : vector<16x64xf32>
    %cst_6 = arith.constant 0.000000e+00 : f32
    %9 = vector.broadcast %cst_6 : f32 to vector<16x64xf32>
    %10 = arith.maximumf %8, %9 : vector<16x64xf32>
    %c0_7 = arith.constant 0 : index
    %c0_8 = arith.constant 0 : index
    %11 = vector.load %arg9[%c0_7, %c0_8] : memref<16x32xf32, #tpu.memory_space<vmem>>, vector<16x32xf32>
    %12 = arith.truncf %10 : vector<16x64xf32> to vector<16x64xbf16>
    %c0_9 = arith.constant 0 : index
    %c0_10 = arith.constant 0 : index
    %13 = vector.load %arg7[%c0_9, %c0_10] : memref<64x32xbf16, #tpu.memory_space<vmem>>, vector<64x32xbf16>
    %cst_11 = arith.constant dense<0.000000e+00> : vector<16x32xf32>
    %14 = tpu.matmul %12, %13, %cst_11 {dimension_numbers = #tpu.dot_dimension_numbers<[1], [0], [0], [1], [0, 0, 1, 1], [], []>} : vector<16x64xbf16>, vector<64x32xbf16>, vector<16x32xf32> -> vector<16x32xf32>
    %15 = arith.addf %11, %14 : vector<16x32xf32>
    %c0_12 = arith.constant 0 : index
    %c0_13 = arith.constant 0 : index
    %16 = vector.load %arg9[%c0_12, %c0_13] : memref<16x32xf32, #tpu.memory_space<vmem>>, vector<16x32xf32>
    tpu.vector_store %arg9[%c0_12, %c0_13], %15 {strides = array<i32>} : memref<16x32xf32, #tpu.memory_space<vmem>>, vector<16x32xf32>,
    %c0_i32_14 = arith.constant 0 : i32
    %17 = arith.cmpi eq, %arg1, %c0_i32_14 : i32
    %18 = arith.extui %17 : i1 to i32
    %c0_i32_15 = arith.constant 0 : i32
    %19 = arith.cmpi ne, %18, %c0_i32_15 : i32
    scf.if %19 {
      %c0_16 = arith.constant 0 : index
      %c0_17 = arith.constant 0 : index
      %20 = vector.load %arg9[%c0_16, %c0_17] : memref<16x32xf32, #tpu.memory_space<vmem>>, vector<16x32xf32>
      %c0_18 = arith.constant 0 : index
      %c0_19 = arith.constant 0 : index
      %21 = vector.load %arg8[%c0_18, %c0_19] : memref<1x32xf32, #tpu.memory_space<vmem>>, vector<1x32xf32>
      %c0_20 = arith.constant 0 : index
      %c0_21 = arith.constant 0 : index
      %22 = vector.load %arg2[%c0_20, %c0_21] : memref<16x32xf32, #tpu.memory_space<vmem>>, vector<16x32xf32>
      %23 = vector.broadcast %21 : vector<1x32xf32> to vector<16x32xf32>
      %24 = arith.addf %23, %22 : vector<16x32xf32>
      %25 = arith.addf %20, %24 : vector<16x32xf32>
      %c0_22 = arith.constant 0 : index
      %c0_23 = arith.constant 0 : index
      %26 = vector.load %arg9[%c0_22, %c0_23] : memref<16x32xf32, #tpu.memory_space<vmem>>, vector<16x32xf32>
      tpu.vector_store %arg9[%c0_22, %c0_23], %25 {strides = array<i32>} : memref<16x32xf32, #tpu.memory_space<vmem>>, vector<16x32xf32>,
    } else {
    }
    return
  }
  func.func @transform_0(%arg0: i32, %arg1: i32) -> (i32, i32) {
    %c0_i32 = arith.constant 0 : i32
    %c0_i32_0 = arith.constant 0 : i32
    return %arg0, %c0_i32 : i32, i32
  }
  func.func @transform_1(%arg0: i32, %arg1: i32) -> (i32, i32) {
    %c0_i32 = arith.constant 0 : i32
    %c0_i32_0 = arith.constant 0 : i32
    %c0_i32_1 = arith.constant 0 : i32
    return %c0_i32, %c0_i32_0 : i32, i32
  }
  func.func @transform_2(%arg0: i32, %arg1: i32) -> (i32, i32) {
    %c0_i32 = arith.constant 0 : i32
    %c0_i32_0 = arith.constant 0 : i32
    %c0_i32_1 = arith.constant 0 : i32
    return %c0_i32, %c0_i32_0 : i32, i32
  }
  func.func @transform_3(%arg0: i32, %arg1: i32) -> (i32, i32) {
    %c0_i32 = arith.constant 0 : i32
    %c0_i32_0 = arith.constant 0 : i32
    return %c0_i32, %arg1 : i32, i32
  }
  func.func @transform_4(%arg0: i32, %arg1: i32) -> (i32, i32) {
    %c0_i32 = arith.constant 0 : i32
    %c0_i32_0 = arith.constant 0 : i32
    return %c0_i32, %arg1 : i32, i32
  }
  func.func @transform_5(%arg0: i32, %arg1: i32) -> (i32, i32) {
    %c0_i32 = arith.constant 0 : i32
    %c0_i32_0 = arith.constant 0 : i32
    return %arg1, %c0_i32 : i32, i32
  }
  func.func @transform_6(%arg0: i32, %arg1: i32) -> (i32, i32) {
    %c0_i32 = arith.constant 0 : i32
    %c0_i32_0 = arith.constant 0 : i32
    %c0_i32_1 = arith.constant 0 : i32
    return %c0_i32, %c0_i32_0 : i32, i32
  }
  func.func @transform_7(%arg0: i32, %arg1: i32) -> (i32, i32) {
    %c0_i32 = arith.constant 0 : i32
    %c0_i32_0 = arith.constant 0 : i32
    return %arg0, %c0_i32 : i32, i32
  }
}

module attributes {stable_mosaic.version = 11 : i64} {
  func.func @_ln_kernel(%arg0: i32, %arg1: memref<16x32xf32, #tpu.memory_space<vmem>>, %arg2: memref<1x32xf32, #tpu.memory_space<vmem>>, %arg3: memref<1x32xf32, #tpu.memory_space<vmem>>, %arg4: memref<16x32xf32, #tpu.memory_space<vmem>>) attributes {dimension_semantics = [#tpu.dimension_semantics<parallel>], iteration_bounds = array<i64: 1>, scalar_prefetch = 0 : i64, scratch_operands = 0 : i64, tpu.core_type = #tpu.core_type<tc>, window_params = [{transform_indices = @transform_0, window_bounds = array<i64: 16, 32>}, {pipeline_mode = #tpu.pipeline_mode<synchronous>, transform_indices = @transform_1, window_bounds = array<i64: 1, 32>}, {pipeline_mode = #tpu.pipeline_mode<synchronous>, transform_indices = @transform_2, window_bounds = array<i64: 1, 32>}, {transform_indices = @transform_3, window_bounds = array<i64: 16, 32>}]} {
    %c0 = arith.constant 0 : index
    %c0_0 = arith.constant 0 : index
    %0 = vector.load %arg1[%c0, %c0_0] : memref<16x32xf32, #tpu.memory_space<vmem>>, vector<16x32xf32>
    %c0_1 = arith.constant 0 : index
    %c0_2 = arith.constant 0 : index
    %1 = vector.load %arg2[%c0_1, %c0_2] : memref<1x32xf32, #tpu.memory_space<vmem>>, vector<1x32xf32>
    %c0_3 = arith.constant 0 : index
    %c0_4 = arith.constant 0 : index
    %2 = vector.load %arg3[%c0_3, %c0_4] : memref<1x32xf32, #tpu.memory_space<vmem>>, vector<1x32xf32>
    %cst = arith.constant dense<0.000000e+00> : vector<16xf32>
    %3 = vector.multi_reduction <add>, %0, %cst [1] : vector<16x32xf32> to vector<16xf32>
    %4 = vector.shape_cast %3 : vector<16xf32> to vector<16x1xf32>
    %cst_5 = arith.constant 3.200000e+01 : f32
    %5 = vector.broadcast %cst_5 : f32 to vector<16x1xf32>
    %6 = arith.divf %4, %5 : vector<16x1xf32>
    %7 = vector.broadcast %6 : vector<16x1xf32> to vector<16x32xf32>
    %8 = arith.subf %0, %7 : vector<16x32xf32>
    %9 = arith.mulf %8, %8 : vector<16x32xf32>
    %cst_6 = arith.constant dense<0.000000e+00> : vector<16xf32>
    %10 = vector.multi_reduction <add>, %9, %cst_6 [1] : vector<16x32xf32> to vector<16xf32>
    %11 = vector.shape_cast %10 : vector<16xf32> to vector<16x1xf32>
    %cst_7 = arith.constant 3.200000e+01 : f32
    %12 = vector.broadcast %cst_7 : f32 to vector<16x1xf32>
    %13 = arith.divf %11, %12 : vector<16x1xf32>
    %cst_8 = arith.constant 9.99999997E-7 : f32
    %14 = vector.broadcast %cst_8 : f32 to vector<16x1xf32>
    %15 = arith.addf %13, %14 : vector<16x1xf32>
    %16 = math.rsqrt %15 : vector<16x1xf32>
    %17 = vector.broadcast %6 : vector<16x1xf32> to vector<16x32xf32>
    %18 = arith.subf %0, %17 : vector<16x32xf32>
    %19 = vector.broadcast %16 : vector<16x1xf32> to vector<16x32xf32>
    %20 = arith.mulf %18, %19 : vector<16x32xf32>
    %21 = vector.broadcast %1 : vector<1x32xf32> to vector<16x32xf32>
    %22 = arith.mulf %20, %21 : vector<16x32xf32>
    %23 = vector.broadcast %2 : vector<1x32xf32> to vector<16x32xf32>
    %24 = arith.addf %22, %23 : vector<16x32xf32>
    %c0_9 = arith.constant 0 : index
    %c0_10 = arith.constant 0 : index
    %25 = vector.load %arg4[%c0_9, %c0_10] : memref<16x32xf32, #tpu.memory_space<vmem>>, vector<16x32xf32>
    tpu.vector_store %arg4[%c0_9, %c0_10], %24 {strides = array<i32>} : memref<16x32xf32, #tpu.memory_space<vmem>>, vector<16x32xf32>,
    return
  }
  func.func @transform_0(%arg0: i32) -> (i32, i32) {
    %c0_i32 = arith.constant 0 : i32
    %c0_i32_0 = arith.constant 0 : i32
    return %arg0, %c0_i32 : i32, i32
  }
  func.func @transform_1(%arg0: i32) -> (i32, i32) {
    %c0_i32 = arith.constant 0 : i32
    %c0_i32_0 = arith.constant 0 : i32
    %c0_i32_1 = arith.constant 0 : i32
    return %c0_i32, %c0_i32_0 : i32, i32
  }
  func.func @transform_2(%arg0: i32) -> (i32, i32) {
    %c0_i32 = arith.constant 0 : i32
    %c0_i32_0 = arith.constant 0 : i32
    %c0_i32_1 = arith.constant 0 : i32
    return %c0_i32, %c0_i32_0 : i32, i32
  }
  func.func @transform_3(%arg0: i32) -> (i32, i32) {
    %c0_i32 = arith.constant 0 : i32
    %c0_i32_0 = arith.constant 0 : i32
    return %arg0, %c0_i32 : i32, i32
  }
}

</mosaic_0001>

<llo_original>
// kernel: encoder_forward.7
$region0: #{encoder_forward.7}
  #allocation0 [shape = 'u32[]', space=smem, size = 0x4, offset = 0x4, fixed_abs, tag = 'smem constant byte address 0x4 - core index']
  #allocation1 [shape = 'u32[144,128]{1,0:T(1,128)}', space=vmem, size = 0x12000, scoped, tag = 'internal scratch']
  #allocation2 [shape = 'bf16[16,32]{1,0:T(8,128)(2,1)}', space=vmem, size = 0x1000, scoped, tag = 'scratch operand']
  %s0 = inlined_call_operand.vmem [shape: f32[16,32], index: 0, kind: input, shape index: {}]
  %s1 = inlined_call_operand.vmem [shape: f32[1,32], index: 1, kind: input, shape index: {}]
  %s2 = inlined_call_operand.vmem [shape: f32[1,32], index: 2, kind: input, shape index: {}]
  %s3 = inlined_call_operand.hbm [shape: bf16[3,32,32], index: 3, kind: input, shape index: {}]
  %s4 = inlined_call_operand.vmem [shape: f32[3,1,32], index: 4, kind: input, shape index: {}]
  %s5 = inlined_call_operand.vmem [shape: bf16[3,16,32], index: 5, kind: output, shape index: {}]
  %s6 = sld [smem:[#allocation0]]
  $region61: #{encoder_forward.7} parent=0
    _
  %s8 = ssub.s32 1, %s6
  %s9 = scalar_select 0, %s8, %s6
  $region1: #{encoder_forward.7} parent=0
    #allocation3 [shape = 'u8[16384]{0}', space=vmem, size = 0x4000, scoped, tag = 'input window, operand 3']
    #allocation4 [shape = 's32[2]{0}', space=sflag, size = 0x8, scoped, tag = 'scoped memory for encoder_forward.7']
    %10 = vsyncpa [#allocation4], 0
    %s11 = scalar_lea.sflag [#allocation4], 1
    %12 = vsyncpa %s11, 0
    loop: start=0, step=1, limit=5
    $region2: #{encoder_forward.7} parent=1 // loop_pre_header
      _
    $region3: #{encoder_forward.7} parent=1 // loop_header
      %s14 = sphi 0, %s18
      %p15 = scmp.ge.s32.totalorder %s14, 5
      %s21 = sphi 0, %s40
      %s22 = sphi 0, %s36
      %s23 = sphi 0, %s32
      %s24 = sphi 0, %s21
      %s25 = sphi 0, %s22
      %s26 = sphi 0, %s23
      %s27 = sphi 0, %s24
      %s28 = sphi 0, %s25
      %s29 = sphi 0, %s26
      %s43 = sphi 0, %s45
      %s46 = sphi 0, %s43
      %s47 = sphi 0, %s46
      %s63 = sphi 0, %s47
      %s67 = sphi 0, %s67
      %s69 = sphi 0, %s67
      %s70 = sphi 0, %s69
      %s84 = sphi 0, %s70
      %s88 = sphi 0, %s88
      %s90 = sphi 0, %s88
      %s91 = sphi 0, %s90
      %s105 = sphi 0, %s91
      %s113 = sphi 0, %s115
      %s116 = sphi 0, %s113
      %s117 = sphi 0, %s116
      %s133 = sphi 0, %s117
      %s141 = sphi 0, %s143
      %s144 = sphi 0, %s141
      %s145 = sphi 0, %s144
      %s161 = sphi 0, %s145
      %s171 = sphi 0, %s173
      %s174 = sphi 0, %s171
      %s175 = sphi 0, %s174
      %s191 = sphi 0, %s175
    $region4: #{encoder_forward.7} parent=1 // loop_header_branch
      %17 = sbr.rel (%p15) target = $region8
    $region5: #{encoder_forward.7} parent=1 // loop_body
      %s19 = ssub.s32 %s14, 1
      %s20 = ssub.s32 %s14, 2
      %s30 = sadd.s32 1, %s23
      %p31 = scmp.ge.s32.totalorder %s30, 1
      %s32 = scalar_select %p31, 0, %s30
      %s33 = sadd.s32 1, %s22
      %s34 = scalar_select %p31, %s33, %s22
      %p35 = scmp.ge.s32.totalorder %s34, 3
      %s36 = scalar_select %p35, 0, %s34
      %s37 = sadd.s32 1, %s21
      %s38 = scalar_select %p35, %s37, %s21
      %p39 = scmp.ge.s32.totalorder %s38, 1
      %s40 = scalar_select %p39, 0, %s38
      %s41 = ssub.s32 %s21, %s40
      %p42 = scmp.eq.s32.totalorder %s41, 0
      %s44 = sadd.s32 %s43, 1
      %s45 = scalar_select %p42, %s43, %s44
      %p48 = pneg %p42
      %p49 = scmp.eq.s32.totalorder %s14, 2
      %p50 = por %p48, %p49
      %p51 = scmp.ne.s32.totalorder %s43, %s46
      %p52 = scmp.eq.s32.totalorder %s14, 0
      %p53 = por %p51, %p52
      %p54 = scmp.ne.s32.totalorder %s43, %s46
      %p55 = scmp.eq.s32.totalorder %s19, 2
      %p56 = por %p54, %p55
      %p57 = scmp.ne.s32.totalorder %s46, %s47
      %p58 = scmp.eq.s32.totalorder %s19, 0
      %p59 = por %p57, %p58
      %p60 = scmp.ne.s32.totalorder %s46, %s47
      %p61 = scmp.eq.s32.totalorder %s20, 2
      %p62 = por %p60, %p61
      %p64 = scmp.ne.s32.totalorder %s47, %s63
      %p65 = scmp.eq.s32.totalorder %s20, 0
      %p66 = por %p64, %p65
      %s68 = sadd.s32 %s67, 1
      %p71 = scmp.eq.s32.totalorder %s14, 2
      %p72 = scmp.ne.s32.totalorder %s67, %s69
      %p73 = scmp.eq.s32.totalorder %s14, 0
      %p74 = por %p72, %p73
      %p75 = scmp.ne.s32.totalorder %s67, %s69
      %p76 = scmp.eq.s32.totalorder %s19, 2
      %p77 = por %p75, %p76
      %p78 = scmp.ne.s32.totalorder %s69, %s70
      %p79 = scmp.eq.s32.totalorder %s19, 0
      %p80 = por %p78, %p79
      %p81 = scmp.ne.s32.totalorder %s69, %s70
      %p82 = scmp.eq.s32.totalorder %s20, 2
      %p83 = por %p81, %p82
      %p85 = scmp.ne.s32.totalorder %s70, %s84
      %p86 = scmp.eq.s32.totalorder %s20, 0
      %p87 = por %p85, %p86
      %s89 = sadd.s32 %s88, 1
      %p92 = scmp.eq.s32.totalorder %s14, 2
      %p93 = scmp.ne.s32.totalorder %s88, %s90
      %p94 = scmp.eq.s32.totalorder %s14, 0
      %p95 = por %p93, %p94
      %p96 = scmp.ne.s32.totalorder %s88, %s90
      %p97 = scmp.eq.s32.totalorder %s19, 2
      %p98 = por %p96, %p97
      %p99 = scmp.ne.s32.totalorder %s90, %s91
      %p100 = scmp.eq.s32.totalorder %s19, 0
      %p101 = por %p99, %p100
      %p102 = scmp.ne.s32.totalorder %s90, %s91
      %p103 = scmp.eq.s32.totalorder %s20, 2
      %p104 = por %p102, %p103
      %p106 = scmp.ne.s32.totalorder %s91, %s105
      %p107 = scmp.eq.s32.totalorder %s20, 0
      %p108 = por %p106, %p107
      %s109 = ssub.s32 %s22, %s36
      %s110 = ssub.s32 %s23, %s32
      %s111 = sor.u32 %s109, %s110
      %p112 = scmp.eq.s32.totalorder %s111, 0
      %s114 = sadd.s32 %s113, 1
      %s115 = scalar_select %p112, %s113, %s114
      %p118 = pneg %p112
      %p119 = scmp.eq.s32.totalorder %s14, 2
      %p120 = por %p118, %p119
      %p121 = scmp.ne.s32.totalorder %s113, %s116
      %p122 = scmp.eq.s32.totalorder %s14, 0
      %p123 = por %p121, %p122
      %p124 = scmp.ne.s32.totalorder %s113, %s116
      %p125 = scmp.eq.s32.totalorder %s19, 2
      %p126 = por %p124, %p125
      %p127 = scmp.ne.s32.totalorder %s116, %s117
      %p128 = scmp.eq.s32.totalorder %s19, 0
      %p129 = por %p127, %p128
      %p130 = scmp.ne.s32.totalorder %s116, %s117
      %p131 = scmp.eq.s32.totalorder %s20, 2
      %p132 = por %p130, %p131
      %p134 = scmp.ne.s32.totalorder %s117, %s133
      %p135 = scmp.eq.s32.totalorder %s20, 0
      %p136 = por %p134, %p135
      %s137 = ssub.s32 %s22, %s36
      %s138 = ssub.s32 %s23, %s32
      %s139 = sor.u32 %s137, %s138
      %p140 = scmp.eq.s32.totalorder %s139, 0
      %s142 = sadd.s32 %s141, 1
      %s143 = scalar_select %p140, %s141, %s142
      %p146 = pneg %p140
      %p147 = scmp.eq.s32.totalorder %s14, 2
      %p148 = por %p146, %p147
      %p149 = scmp.ne.s32.totalorder %s141, %s144
      %p150 = scmp.eq.s32.totalorder %s14, 0
      %p151 = por %p149, %p150
      %p152 = scmp.ne.s32.totalorder %s141, %s144
      %p153 = scmp.eq.s32.totalorder %s19, 2
      %p154 = por %p152, %p153
      %p155 = scmp.ne.s32.totalorder %s144, %s145
      %p156 = scmp.eq.s32.totalorder %s19, 0
      %p157 = por %p155, %p156
      %p158 = scmp.ne.s32.totalorder %s144, %s145
      %p159 = scmp.eq.s32.totalorder %s20, 2
      %p160 = por %p158, %p159
      %p162 = scmp.ne.s32.totalorder %s145, %s161
      %p163 = scmp.eq.s32.totalorder %s20, 0
      %p164 = por %p162, %p163
      %s165 = ssub.s32 %s22, %s36
      %s166 = ssub.s32 %s21, %s40
      %s167 = sor.u32 %s165, %s166
      %s168 = ssub.s32 %s23, %s32
      %s169 = sor.u32 %s167, %s168
      %p170 = scmp.eq.s32.totalorder %s169, 0
      %s172 = sadd.s32 %s171, 1
      %s173 = scalar_select %p170, %s171, %s172
      %p176 = pneg %p170
      %p177 = scmp.eq.s32.totalorder %s14, 2
      %p178 = por %p176, %p177
      %p179 = scmp.ne.s32.totalorder %s171, %s174
      %p180 = scmp.eq.s32.totalorder %s14, 0
      %p181 = por %p179, %p180
      %p182 = scmp.ne.s32.totalorder %s171, %s174
      %p183 = scmp.eq.s32.totalorder %s19, 2
      %p184 = por %p182, %p183
      %p185 = scmp.ne.s32.totalorder %s174, %s175
      %p186 = scmp.eq.s32.totalorder %s19, 0
      %p187 = por %p185, %p186
      %p188 = scmp.ne.s32.totalorder %s174, %s175
      %p189 = scmp.eq.s32.totalorder %s20, 2
      %p190 = por %p188, %p189
      %p192 = scmp.ne.s32.totalorder %s175, %s191
      %p193 = scmp.eq.s32.totalorder %s20, 0
      %p194 = por %p192, %p193
      %p195 = scmp.le.s32.totalorder 1, %s14
      %p196 = scmp.lt.s32.totalorder %s14, 4
      %p197 = pnand %p195, %p196
      %p198 = pneg %p197
      // Predicated region
      $region9: #{encoder_forward.7} parent=5 // pred_check
        _
      $region10: #{encoder_forward.7} parent=5 // pred_check_branch
        %200 = sbr.rel (%p197) target = $region12
      $region11: #{encoder_forward.7} parent=5 // pred_region
        %s201 = ssub.s32 %s14, 1
        // Predicated region
        $region13: #{encoder_forward.7} parent=11 // pred_check
          %p202 = pneg %p59
        $region14: #{encoder_forward.7} parent=11 // pred_check_branch
          %204 = sbr.rel (%p202) target = $region16
        $region15: #{encoder_forward.7} parent=11 // pred_region
          %s205 = smul.u32 2, %s24
          %p206 = scmp.lt.s32.totalorder %s205, 1
          %s207 = scalar_select %p206, %s205, 1
          %s208 = smul.addr %s207, 8
          %s209 = scalar_lea.vmem %s0, %s208
          %s210 = smul.u32 2, %s24
        $region16: #{encoder_forward.7} parent=11 // pred_fallthru
          _
        // Predicated region
        $region17: #{encoder_forward.7} parent=11 // pred_check
          %p211 = pneg %p80
        $region18: #{encoder_forward.7} parent=11 // pred_check_branch
          %213 = sbr.rel (%p211) target = $region20
        $region19: #{encoder_forward.7} parent=11 // pred_region
          _
        $region20: #{encoder_forward.7} parent=11 // pred_fallthru
          _
        // Predicated region
        $region21: #{encoder_forward.7} parent=11 // pred_check
          %p214 = pneg %p101
        $region22: #{encoder_forward.7} parent=11 // pred_check_branch
          %216 = sbr.rel (%p214) target = $region24
        $region23: #{encoder_forward.7} parent=11 // pred_region
          _
        $region24: #{encoder_forward.7} parent=11 // pred_fallthru
          _
      $region12: #{encoder_forward.7} parent=5 // pred_fallthru
        _
      %p217 = scmp.lt.s32.totalorder %s14, 3
      // Predicated region
      $region25: #{encoder_forward.7} parent=5 // pred_check
        %p218 = pneg %p217
      $region26: #{encoder_forward.7} parent=5 // pred_check_branch
        %220 = sbr.rel (%p218) target = $region28
      $region27: #{encoder_forward.7} parent=5 // pred_region
        // Predicated region
        $region29: #{encoder_forward.7} parent=27 // pred_check
          %p221 = pneg %p123
        $region30: #{encoder_forward.7} parent=27 // pred_check_branch
          %223 = sbr.rel (%p221) target = $region32
        $region31: #{encoder_forward.7} parent=27 // pred_region
          %s224 = sand.u32 %s113, 1
          %s225 = scalar_lea.sflag [#allocation4], %s224
          %s226 = sand.u32 %s113, 1
          %s227 = smul.addr %s226, 16
          %s228 = scalar_lea.vmem [#allocation3], %s227
          %s230 = ssub.s32 256, 256
          %231 = vsyncadd %s225, %s230
          %s232 = smul.addr %s22, 4
          %s233 = sadd.s32 %s23, %s232
          %s234 = smul.addr %s233, 64
          %s235 = scalar_lea.hbm %s3, %s234
          %s236 = sshll.u32 %s228, 4
          %s237 = int_to_ptr.vmem [resolvable:$true] %s236
          %242 = dma.hbm_to_vmem [thread:$0]  %s235, 256, %s237, %s225, 64, 64, 4
        $region32: #{encoder_forward.7} parent=27 // pred_fallthru
          _
        // Predicated region
        $region33: #{encoder_forward.7} parent=27 // pred_check
          %p243 = pneg %p151
        $region34: #{encoder_forward.7} parent=27 // pred_check_branch
          %245 = sbr.rel (%p243) target = $region36
        $region35: #{encoder_forward.7} parent=27 // pred_region
          %p246 = scmp.lt.s32.totalorder %s22, 2
          %s247 = scalar_select %p246, %s22, 2
          %p248 = scmp.lt.s32.totalorder %s23, 0
          %s249 = scalar_select %p248, %s23, 0
          %s250 = sadd.s32 %s249, %s247
          %s251 = scalar_lea.vmem %s4, %s250
        $region36: #{encoder_forward.7} parent=27 // pred_fallthru
          _
      $region28: #{encoder_forward.7} parent=5 // pred_fallthru
        _
      %p252 = scmp.le.s32.totalorder 1, %s14
      %p253 = scmp.lt.s32.totalorder %s14, 4
      %p254 = pnand %p252, %p253
      %p255 = pneg %p254
      // Predicated region
      $region37: #{encoder_forward.7} parent=5 // pred_check
        _
      $region38: #{encoder_forward.7} parent=5 // pred_check_branch
        %257 = sbr.rel (%p254) target = $region40
      $region39: #{encoder_forward.7} parent=5 // pred_region
        %s258 = ssub.s32 %s14, 1
        %s259 = sand.u32 %s116, 1
        %s260 = scalar_lea.sflag [#allocation4], %s259
        %s261 = sand.u32 %s116, 1
        %s262 = smul.addr %s261, 16
        %s263 = scalar_lea.vmem [#allocation3], %s262
        // Predicated region
        $region41: #{encoder_forward.7} parent=39 // pred_check
          %p264 = pneg %p129
        $region42: #{encoder_forward.7} parent=39 // pred_check_branch
          %266 = sbr.rel (%p264) target = $region44
        $region43: #{encoder_forward.7} parent=39 // pred_region
          %267 = dma.done %s260, 256
        $region44: #{encoder_forward.7} parent=39 // pred_fallthru
          _
        %s268 = smul.u32 2, %s24
        %p269 = scmp.lt.s32.totalorder %s268, 1
        %s270 = scalar_select %p269, %s268, 1
        %s271 = smul.addr %s270, 8
        %s272 = scalar_lea.vmem %s0, %s271
        %p273 = pneg %p59
        %p274 = pneg %p56
        %p275 = pneg %p80
        %p276 = pneg %p77
        %p277 = pneg %p101
        %p278 = pneg %p98
        %s279 = sand.u32 %s116, 1
        %s280 = scalar_lea.sflag [#allocation4], %s279
        %s281 = sand.u32 %s116, 1
        %s282 = smul.addr %s281, 16
        %s283 = scalar_lea.vmem [#allocation3], %s282
        %p284 = pneg %p129
        %p285 = pneg %p126
        %p286 = scmp.lt.s32.totalorder %s25, 2
        %s287 = scalar_select %p286, %s25, 2
        %p288 = scmp.lt.s32.totalorder %s26, 0
        %s289 = scalar_select %p288, %s26, 0
        %s290 = sadd.s32 %s289, %s287
        %s291 = scalar_lea.vmem %s4, %s290
        %p292 = pneg %p157
        %p293 = pneg %p154
        %p294 = pneg %p187
        %p295 = pneg %p184
        %s296 = smul.u32 2, %s24
        %p297 = scmp.lt.s32.totalorder %s25, 2
        %s298 = scalar_select %p297, %s25, 2
        %p299 = scmp.lt.s32.totalorder %s296, 1
        %s300 = scalar_select %p299, %s296, 1
        %p301 = scmp.lt.s32.totalorder %s26, 0
        %s302 = scalar_select %p301, %s26, 0
        %s303 = sadd.s32 %s302, %s300
        %s304 = smul.addr %s298, 2
        %s305 = sadd.s32 %s303, %s304
        %s306 = smul.addr %s305, 4
        %s307 = scalar_lea.vmem %s5, %s306
        %s308 = smul.u32 2, %s24
        %p309 = scmp.lt.s32.totalorder %s308, 1
        %s310 = scalar_select %p309, %s308, 1
        %s311 = smul.addr %s310, 8
        %s312 = scalar_lea.vmem %s0, %s311
        %s313 = smul.u32 2, %s24
        %p314 = scmp.lt.s32.totalorder %s25, 2
        %s315 = scalar_select %p314, %s25, 2
        %p316 = scmp.lt.s32.totalorder %s26, 0
        %s317 = scalar_select %p316, %s26, 0
        %s318 = sadd.s32 %s317, %s315
        %s319 = scalar_lea.vmem %s4, %s318
        %s320 = smul.u32 2, %s24
        %p321 = scmp.lt.s32.totalorder %s25, 2
        %s322 = scalar_select %p321, %s25, 2
        %p323 = scmp.lt.s32.totalorder %s320, 1
        %s324 = scalar_select %p323, %s320, 1
        %p325 = scmp.lt.s32.totalorder %s26, 0
        %s326 = scalar_select %p325, %s26, 0
        %s327 = sadd.s32 %s326, %s324
        %s328 = smul.addr %s322, 2
        %s329 = sadd.s32 %s327, %s328
        %s330 = smul.addr %s329, 4
        %s331 = scalar_lea.vmem %s5, %s330
        %s332 = smul.u32 2, %s24
        %p334 = scmp.eq.s32.totalorder %s25, 0
        %p335 = scmp.eq.s32.totalorder %s26, 0
        %p336 = pnand %p334, %p335
        %p337 = pneg %p336
        // Predicated region
        $region45: #{encoder_forward.7} parent=39 // pred_check
          _
        $region46: #{encoder_forward.7} parent=39 // pred_check_branch
          %339 = sbr.rel (%p336) target = $region48
        $region47: #{encoder_forward.7} parent=39 // pred_region
          %v340 = vld [vmem:[%s312] sm:$0xff]
          %v341 = vld [vmem:[%s312 + $0x8] sm:$0xff]
          %v342 = vld [vmem:[%s1] sm:$0x1]
          %v343 = vld [vmem:[%s2] sm:$0x1]
          %vm344 = vcmask 261120
          %v345 = vsel %vm344, %v340, 0.0
          %346 = vadd.xlane.f32.xlu0 %v345
          %v347 = vpop.xlane.xlu0 %346
          %v348 = vsel %vm344, %v341, 0.0
          %349 = vadd.xlane.f32.xlu0 %v348
          %v350 = vpop.xlane.xlu0 %349
          %v351 = vrcp.pop 32.0
          %v352 = vmul.f32 %v347, %v351
          %v353 = vmul.f32 %v350, %v351
          %v354 = vsub.f32 %v340, %v352
          %v355 = vsub.f32 %v341, %v353
          %v356 = vmul.f32 %v354, %v354
          %v357 = vmul.f32 %v355, %v355
          %v358 = vsel %vm344, %v356, 0.0
          %359 = vadd.xlane.f32.xlu0 %v358
          %v360 = vpop.xlane.xlu0 %359
          %v361 = vsel %vm344, %v357, 0.0
          %362 = vadd.xlane.f32.xlu0 %v361
          %v363 = vpop.xlane.xlu0 %362
          %v364 = vmul.f32 %v360, %v351
          %v365 = vmul.f32 %v363, %v351
          %v366 = vadd.f32 %v364, 1e-06
          %v367 = vadd.f32 %v365, 1e-06
          %v368 = vrsqrt.pop %v366
          %v369 = vrsqrt.pop %v367
          %v370 = vmul.f32 %v354, %v368
          %v371 = vmul.f32 %v355, %v369
          %v373 = vlaneseq
          %v374 = vshrl.u32 %v373, 7
          %v375 = vsub.s32 0, %v374
          %v376 = vrot.slane %v342, %v375
          %v378 = vmul.f32 %v370, %v376
          %v379 = vmul.f32 %v371, %v376
          %v381 = vlaneseq
          %v382 = vshrl.u32 %v381, 7
          %v383 = vsub.s32 0, %v382
          %v384 = vrot.slane %v343, %v383
          %v386 = vadd.f32 %v378, %v384
          %v387 = vadd.f32 %v379, %v384
          %v388 = vpack.c.bf16 %v387, %v386
          %v390 = vunpack.c.l.b16 %v388
          %v391 = vunpack.c.h.b16 %v388
          %v392 = vpack.c.b16 %v390, %v390
          %v393 = vpack.c.b16 %v391, %v391
          %vm396 = vcmask 257024
          %397 = vst.msk [vmem:[#allocation2] sm:$0xf] %vm396, %v392
          %398 = vst.msk [vmem:[#allocation2 + $0x4] sm:$0xf] %vm396, %v393
        $region48: #{encoder_forward.7} parent=39 // pred_fallthru
          _
        %v399 = vld [vmem:[#allocation2] sm:$0xf]
        %v400 = vld [vmem:[#allocation2 + $0x4] sm:$0xf]
        %v401 = vld [vmem:[%s263] sm:$0xf]
        %v402 = vld [vmem:[%s263 + $0x4] sm:$0xf]
        %v403 = vld [vmem:[%s263 + $0x8] sm:$0xf]
        %v404 = vld [vmem:[%s263 + $0xc] sm:$0xf]
        %v405 = vld [vmem:[%s319] sm:$0x1]
        %v407 = vlaneseq
        %v408 = vshrl.u32 %v407, 7
        %v409 = vsub.s32 0, %v408
        %v410 = vrot.slane %v405, %v409
        %v414 = vunpack.c.l.b16 %v399
        %v415 = vunpack.c.l.b16 %v400
        %v416 = vpack.c.b16 %v415, %v414
        %v421 = vunpack.c.l.b16 %v401
        %v422 = vunpack.c.l.b16 %v402
        %v423 = vunpack.c.l.b16 %v403
        %v424 = vunpack.c.l.b16 %v404
        %v425 = vpack.c.b16 %v422, %v421
        %v426 = vpack.c.b16 %v424, %v423
        %vm429 = vcmask 261120
        %v431 = vsel %vm429, %v416, 0
        %433 = vmatprep.subr.bf16.mxu0 0
        %434 = vmatpush1.bf16.msra.mxu0 0
        %435 = vmatprep.subr.bf16.mxu0 0
        %436 = vmatpush1.bf16.msra.mxu0 0
        %437 = vmatprep.subr.bf16.mxu0 0
        %438 = vmatpush1.bf16.msra.mxu0 0
        %439 = vmatprep.subr.bf16.mxu0 0
        %440 = vmatpush1.bf16.msra.mxu0 0
        %441 = vmatprep.subr.bf16.mxu0 0
        %442 = vmatpush1.bf16.msra.mxu0 0
        %443 = vmatprep.subr.bf16.mxu0 0
        %444 = vmatpush1.bf16.msra.mxu0 0
        %445 = vmatprep.subr.bf16.mxu0 0
        %446 = vmatpush1.bf16.msra.mxu0 %v426
        %447 = vmatprep.subr.bf16.mxu0 0
        %448 = vmatpush1.bf16.msra.mxu0 %v425
        %449 = vmatprep.subr.bf16.mxu0 0
        %450 = vmatpush2.bf16.msra.mxu0 0
        %451 = vmatprep.subr.bf16.mxu0 0
        %452 = vmatpush2.bf16.msra.mxu0 0
        %453 = vmatprep.subr.bf16.mxu0 0
        %454 = vmatpush2.bf16.msra.mxu0 0
        %455 = vmatprep.subr.bf16.mxu0 0
        %456 = vmatpush2.bf16.msra.mxu0 0
        %457 = vmatprep.subr.bf16.mxu0 0
        %458 = vmatpush2.bf16.msra.mxu0 0
        %459 = vmatprep.subr.bf16.mxu0 0
        %460 = vmatpush2.bf16.msra.mxu0 0
        %461 = vmatprep.subr.bf16.mxu0 0
        %462 = vmatpush2.bf16.msra.mxu0 0
        %463 = vmatprep.subr.bf16.mxu0 0
        %464 = vmatpush2.bf16.msra.mxu0 0
        %465 = vmatprep.mubr.bf16.mxu0 0
        %466 = vmatmul.mubr.bf16.gmra.mxu0 %v431
        %v467 = vpop.f32.mrf.mxu0
        %v468 = vadd.f32 %v410, %v467
        %v469 = vpop.f32.mrf.mxu0
        %v470 = vpop.f32.mrf.mxu0
        %v471 = vadd.f32 %v410, %v470
        %v472 = vpop.f32.mrf.mxu0
        %473 = vdwg.mxu0
        %v474 = vpack.c.bf16 %v471, %v468
        %v476 = vunpack.c.l.b16 %v474
        %v477 = vunpack.c.h.b16 %v474
        %v478 = vpack.c.b16 %v476, %v476
        %v479 = vpack.c.b16 %v477, %v477
        %vm482 = vcmask 257024
        %483 = vst.msk [vmem:[%s331] sm:$0xf] %vm482, %v478
        %484 = vst.msk [vmem:[%s331 + $0x4] sm:$0xf] %vm482, %v479
        %s485 = smul.u32 2, %s24
        %p486 = scmp.lt.s32.totalorder %s25, 2
        %s487 = scalar_select %p486, %s25, 2
        %p488 = scmp.lt.s32.totalorder %s485, 1
        %s489 = scalar_select %p488, %s485, 1
        %p490 = scmp.lt.s32.totalorder %s26, 0
        %s491 = scalar_select %p490, %s26, 0
        %s492 = sadd.s32 %s491, %s489
        %s493 = smul.addr %s487, 2
        %s494 = sadd.s32 %s492, %s493
        %s495 = smul.addr %s494, 4
        %s496 = scalar_lea.vmem %s5, %s495
        // Predicated region
        $region49: #{encoder_forward.7} parent=39 // pred_check
          %p497 = pneg %p184
        $region50: #{encoder_forward.7} parent=39 // pred_check_branch
          %499 = sbr.rel (%p497) target = $region52
        $region51: #{encoder_forward.7} parent=39 // pred_region
          %s500 = smul.u32 2, %s24
        $region52: #{encoder_forward.7} parent=39 // pred_fallthru
          _
      $region40: #{encoder_forward.7} parent=5 // pred_fallthru
        _
      %p501 = scmp.le.s32.totalorder 2, %s14
      // Predicated region
      $region53: #{encoder_forward.7} parent=5 // pred_check
        %p502 = pneg %p501
      $region54: #{encoder_forward.7} parent=5 // pred_check_branch
        %504 = sbr.rel (%p502) target = $region56
      $region55: #{encoder_forward.7} parent=5 // pred_region
        %s505 = ssub.s32 %s14, 2
        // Predicated region
        $region57: #{encoder_forward.7} parent=55 // pred_check
          %p506 = pneg %p190
        $region58: #{encoder_forward.7} parent=55 // pred_check_branch
          %508 = sbr.rel (%p506) target = $region60
        $region59: #{encoder_forward.7} parent=55 // pred_region
          %s509 = smul.u32 2, %s27
          %p510 = scmp.lt.s32.totalorder %s28, 2
          %s511 = scalar_select %p510, %s28, 2
          %p512 = scmp.lt.s32.totalorder %s509, 1
          %s513 = scalar_select %p512, %s509, 1
          %p514 = scmp.lt.s32.totalorder %s29, 0
          %s515 = scalar_select %p514, %s29, 0
          %s516 = sadd.s32 %s515, %s513
          %s517 = smul.addr %s511, 2
          %s518 = sadd.s32 %s516, %s517
          %s519 = smul.addr %s518, 4
          %s520 = scalar_lea.vmem %s5, %s519
        $region60: #{encoder_forward.7} parent=55 // pred_fallthru
          _
      $region56: #{encoder_forward.7} parent=5 // pred_fallthru
        _
    $region6: #{encoder_forward.7} parent=1 // loop_footer
      %s18 = sadd.s32 1, %s14
    $region7: #{encoder_forward.7} parent=1 // loop_footer_branch
      %13 = sbr.rel target = $region3
    $region8: #{encoder_forward.7} parent=1 // loop_exit
      _
    %521 = vsyncpa [#allocation4], 1
    %s522 = scalar_lea.sflag [#allocation4], 1
    %523 = vsyncpa %s522, 1

// kernel: encoder_forward.9
$region0: #{encoder_forward.9}
  #allocation0 [shape = 'u32[]', space=smem, size = 0x4, offset = 0x4, fixed_abs, tag = 'smem constant byte address 0x4 - core index']
  #allocation1 [shape = 'u32[144,128]{1,0:T(1,128)}', space=vmem, size = 0x12000, scoped, tag = 'internal scratch']
  #allocation2 [shape = 'bf16[16,32]{1,0:T(8,128)(2,1)}', space=vmem, size = 0x1000, scoped, tag = 'scratch operand']
  %s0 = inlined_call_operand.vmem [shape: f32[16,32], index: 0, kind: input, shape index: {}]
  %s1 = inlined_call_operand.vmem [shape: f32[1,32], index: 1, kind: input, shape index: {}]
  %s2 = inlined_call_operand.vmem [shape: f32[1,32], index: 2, kind: input, shape index: {}]
  %s3 = inlined_call_operand.vmem [shape: bf16[32,64], index: 3, kind: input, shape index: {}]
  %s4 = inlined_call_operand.vmem [shape: f32[1,64], index: 4, kind: input, shape index: {}]
  %s5 = inlined_call_operand.vmem [shape: bf16[64,32], index: 5, kind: input, shape index: {}]
  %s6 = inlined_call_operand.vmem [shape: f32[1,32], index: 6, kind: input, shape index: {}]
  %s7 = inlined_call_operand.vmem [shape: f32[16,32], index: 7, kind: output, shape index: {}]
  %s8 = sld [smem:[#allocation0]]
  $region46: #{encoder_forward.9} parent=0
    _
  %s10 = ssub.s32 1, %s8
  %s11 = scalar_select 0, %s10, %s8
  // Predicated region
  $region2: #{encoder_forward.9} parent=0 // pred_check
    _
  $region3: #{encoder_forward.9} parent=0 // pred_check_branch
    %13 = sbr.rel (0) target = $region5
  $region4: #{encoder_forward.9} parent=0 // pred_region
    _
  $region5: #{encoder_forward.9} parent=0 // pred_fallthru
    _
  // Predicated region
  $region6: #{encoder_forward.9} parent=0 // pred_check
    _
  $region7: #{encoder_forward.9} parent=0 // pred_check_branch
    %15 = sbr.rel (0) target = $region9
  $region8: #{encoder_forward.9} parent=0 // pred_region
    _
  $region9: #{encoder_forward.9} parent=0 // pred_fallthru
    _
  // Predicated region
  $region10: #{encoder_forward.9} parent=0 // pred_check
    _
  $region11: #{encoder_forward.9} parent=0 // pred_check_branch
    %17 = sbr.rel (0) target = $region13
  $region12: #{encoder_forward.9} parent=0 // pred_region
    _
  $region13: #{encoder_forward.9} parent=0 // pred_fallthru
    _
  // Predicated region
  $region14: #{encoder_forward.9} parent=0 // pred_check
    _
  $region15: #{encoder_forward.9} parent=0 // pred_check_branch
    %19 = sbr.rel (0) target = $region17
  $region16: #{encoder_forward.9} parent=0 // pred_region
    _
  $region17: #{encoder_forward.9} parent=0 // pred_fallthru
    _
  // Predicated region
  $region18: #{encoder_forward.9} parent=0 // pred_check
    _
  $region19: #{encoder_forward.9} parent=0 // pred_check_branch
    %21 = sbr.rel (0) target = $region21
  $region20: #{encoder_forward.9} parent=0 // pred_region
    _
  $region21: #{encoder_forward.9} parent=0 // pred_fallthru
    _
  // Predicated region
  $region22: #{encoder_forward.9} parent=0 // pred_check
    _
  $region23: #{encoder_forward.9} parent=0 // pred_check_branch
    %23 = sbr.rel (0) target = $region25
  $region24: #{encoder_forward.9} parent=0 // pred_region
    _
  $region25: #{encoder_forward.9} parent=0 // pred_fallthru
    _
  // Predicated region
  $region26: #{encoder_forward.9} parent=0 // pred_check
    _
  $region27: #{encoder_forward.9} parent=0 // pred_check_branch
    %25 = sbr.rel (0) target = $region29
  $region28: #{encoder_forward.9} parent=0 // pred_region
    _
  $region29: #{encoder_forward.9} parent=0 // pred_fallthru
    _
  %p27 = scmp.eq.s32.totalorder 0, 0
  // Predicated region
  $region30: #{encoder_forward.9} parent=0 // pred_check
    %p28 = pneg %p27
  $region31: #{encoder_forward.9} parent=0 // pred_check_branch
    %30 = sbr.rel (%p28) target = $region33
  $region32: #{encoder_forward.9} parent=0 // pred_region
    %v31 = vld [vmem:[%s0] sm:$0xff]
    %v32 = vld [vmem:[%s0 + $0x8] sm:$0xff]
    %v33 = vld [vmem:[%s1] sm:$0x1]
    %v34 = vld [vmem:[%s2] sm:$0x1]
    %vm35 = vcmask 261120
    %v36 = vsel %vm35, %v31, 0.0
    %37 = vadd.xlane.f32.xlu0 %v36
    %v38 = vpop.xlane.xlu0 %37
    %v39 = vsel %vm35, %v32, 0.0
    %40 = vadd.xlane.f32.xlu0 %v39
    %v41 = vpop.xlane.xlu0 %40
    %v42 = vrcp.pop 32.0
    %v43 = vmul.f32 %v38, %v42
    %v44 = vmul.f32 %v41, %v42
    %v45 = vsub.f32 %v31, %v43
    %v46 = vsub.f32 %v32, %v44
    %v47 = vmul.f32 %v45, %v45
    %v48 = vmul.f32 %v46, %v46
    %v49 = vsel %vm35, %v47, 0.0
    %50 = vadd.xlane.f32.xlu0 %v49
    %v51 = vpop.xlane.xlu0 %50
    %v52 = vsel %vm35, %v48, 0.0
    %53 = vadd.xlane.f32.xlu0 %v52
    %v54 = vpop.xlane.xlu0 %53
    %v55 = vmul.f32 %v51, %v42
    %v56 = vmul.f32 %v54, %v42
    %v57 = vadd.f32 %v55, 1e-06
    %v58 = vadd.f32 %v56, 1e-06
    %v59 = vrsqrt.pop %v57
    %v60 = vrsqrt.pop %v58
    %v61 = vmul.f32 %v45, %v59
    %v62 = vmul.f32 %v46, %v60
    %v64 = vlaneseq
    %v65 = vshrl.u32 %v64, 7
    %v66 = vsub.s32 0, %v65
    %v67 = vrot.slane %v33, %v66
    %v69 = vmul.f32 %v61, %v67
    %v70 = vmul.f32 %v62, %v67
    %v72 = vlaneseq
    %v73 = vshrl.u32 %v72, 7
    %v74 = vsub.s32 0, %v73
    %v75 = vrot.slane %v34, %v74
    %v77 = vadd.f32 %v69, %v75
    %v78 = vadd.f32 %v70, %v75
    %v79 = vpack.c.bf16 %v78, %v77
    %v81 = vunpack.c.l.b16 %v79
    %v82 = vunpack.c.h.b16 %v79
    %v83 = vpack.c.b16 %v81, %v81
    %v84 = vpack.c.b16 %v82, %v82
    %vm87 = vcmask 257024
    %88 = vst.msk [vmem:[#allocation2] sm:$0xf] %vm87, %v83
    %89 = vst.msk [vmem:[#allocation2 + $0x4] sm:$0xf] %vm87, %v84
    %90 = vst.msk [vmem:[%s7] sm:$0xff] %vm35, 0.0
    %91 = vst.msk [vmem:[%s7 + $0x8] sm:$0xff] %vm35, 0.0
  $region33: #{encoder_forward.9} parent=0 // pred_fallthru
    _
  %v92 = vld [vmem:[#allocation2] sm:$0xf]
  %v93 = vld [vmem:[#allocation2 + $0x4] sm:$0xf]
  %v94 = vld [vmem:[%s3] sm:$0xf]
  %v95 = vld [vmem:[%s3 + $0x4] sm:$0xf]
  %v96 = vld [vmem:[%s3 + $0x8] sm:$0xf]
  %v97 = vld [vmem:[%s3 + $0xc] sm:$0xf]
  %v98 = vld [vmem:[%s4] sm:$0x1]
  %v100 = vlaneseq
  %v101 = vshrl.u32 %v100, 7
  %v102 = vsub.s32 0, %v101
  %v103 = vrot.slane %v98, %v102
  %v107 = vunpack.c.l.b16 %v92
  %v108 = vunpack.c.l.b16 %v93
  %v109 = vpack.c.b16 %v108, %v107
  %v114 = vunpack.c.l.b16 %v94
  %v115 = vunpack.c.l.b16 %v95
  %v116 = vunpack.c.l.b16 %v96
  %v117 = vunpack.c.l.b16 %v97
  %v118 = vpack.c.b16 %v115, %v114
  %v119 = vpack.c.b16 %v117, %v116
  %vm122 = vcmask 261120
  %v124 = vsel %vm122, %v109, 0
  %126 = vmatprep.subr.bf16.mxu0 0
  %127 = vmatpush1.bf16.msra.mxu0 0
  %128 = vmatprep.subr.bf16.mxu0 0
  %129 = vmatpush1.bf16.msra.mxu0 0
  %130 = vmatprep.subr.bf16.mxu0 0
  %131 = vmatpush1.bf16.msra.mxu0 0
  %132 = vmatprep.subr.bf16.mxu0 0
  %133 = vmatpush1.bf16.msra.mxu0 0
  %134 = vmatprep.subr.bf16.mxu0 0
  %135 = vmatpush1.bf16.msra.mxu0 0
  %136 = vmatprep.subr.bf16.mxu0 0
  %137 = vmatpush1.bf16.msra.mxu0 0
  %138 = vmatprep.subr.bf16.mxu0 0
  %139 = vmatpush1.bf16.msra.mxu0 %v119
  %140 = vmatprep.subr.bf16.mxu0 0
  %141 = vmatpush1.bf16.msra.mxu0 %v118
  %142 = vmatprep.subr.bf16.mxu0 0
  %143 = vmatpush2.bf16.msra.mxu0 0
  %144 = vmatprep.subr.bf16.mxu0 0
  %145 = vmatpush2.bf16.msra.mxu0 0
  %146 = vmatprep.subr.bf16.mxu0 0
  %147 = vmatpush2.bf16.msra.mxu0 0
  %148 = vmatprep.subr.bf16.mxu0 0
  %149 = vmatpush2.bf16.msra.mxu0 0
  %150 = vmatprep.subr.bf16.mxu0 0
  %151 = vmatpush2.bf16.msra.mxu0 0
  %152 = vmatprep.subr.bf16.mxu0 0
  %153 = vmatpush2.bf16.msra.mxu0 0
  %154 = vmatprep.subr.bf16.mxu0 0
  %155 = vmatpush2.bf16.msra.mxu0 0
  %156 = vmatprep.subr.bf16.mxu0 0
  %157 = vmatpush2.bf16.msra.mxu0 0
  %158 = vmatprep.mubr.bf16.mxu0 0
  %159 = vmatmul.mubr.bf16.gmra.mxu0 %v124
  %v160 = vpop.f32.mrf.mxu0
  %v161 = vadd.f32 %v103, %v160
  %v162 = vpop.f32.mrf.mxu0
  %v163 = vpop.f32.mrf.mxu0
  %v164 = vadd.f32 %v103, %v163
  %v165 = vpop.f32.mrf.mxu0
  %166 = vdwg.mxu0
  %v167 = vmax.f32 %v161, 0.0
  %v168 = vmax.f32 %v164, 0.0
  %v169 = vld [vmem:[%s7] sm:$0xff]
  %v170 = vld [vmem:[%s7 + $0x8] sm:$0xff]
  %v171 = vpack.c.bf16 %v168, %v167
  %v172 = vld [vmem:[%s5] sm:$0xf]
  %v173 = vld [vmem:[%s5 + $0x4] sm:$0xf]
  %v174 = vld [vmem:[%s5 + $0x8] sm:$0xf]
  %v175 = vld [vmem:[%s5 + $0xc] sm:$0xf]
  %v176 = vld [vmem:[%s5 + $0x10] sm:$0xf]
  %v177 = vld [vmem:[%s5 + $0x14] sm:$0xf]
  %v178 = vld [vmem:[%s5 + $0x18] sm:$0xf]
  %v179 = vld [vmem:[%s5 + $0x1c] sm:$0xf]
  %v188 = vunpack.c.l.b16 %v172
  %v189 = vunpack.c.l.b16 %v173
  %v190 = vunpack.c.l.b16 %v174
  %v191 = vunpack.c.l.b16 %v175
  %v192 = vunpack.c.l.b16 %v176
  %v193 = vunpack.c.l.b16 %v177
  %v194 = vunpack.c.l.b16 %v178
  %v195 = vunpack.c.l.b16 %v179
  %v196 = vpack.c.b16 %v189, %v188
  %v197 = vpack.c.b16 %v191, %v190
  %v198 = vpack.c.b16 %v193, %v192
  %v199 = vpack.c.b16 %v195, %v194
  %vm204 = vcmask 523264
  %v206 = vsel %vm204, %v171, 0
  %208 = vmatprep.subr.bf16.mxu0 0
  %209 = vmatpush1.bf16.msra.mxu0 0
  %210 = vmatprep.subr.bf16.mxu0 0
  %211 = vmatpush1.bf16.msra.mxu0 0
  %212 = vmatprep.subr.bf16.mxu0 0
  %213 = vmatpush1.bf16.msra.mxu0 0
  %214 = vmatprep.subr.bf16.mxu0 0
  %215 = vmatpush1.bf16.msra.mxu0 0
  %216 = vmatprep.subr.bf16.mxu0 0
  %217 = vmatpush1.bf16.msra.mxu0 %v199
  %218 = vmatprep.subr.bf16.mxu0 0
  %219 = vmatpush1.bf16.msra.mxu0 %v198
  %220 = vmatprep.subr.bf16.mxu0 0
  %221 = vmatpush1.bf16.msra.mxu0 %v197
  %222 = vmatprep.subr.bf16.mxu0 0
  %223 = vmatpush1.bf16.msra.mxu0 %v196
  %224 = vmatprep.subr.bf16.mxu0 0
  %225 = vmatpush2.bf16.msra.mxu0 0
  %226 = vmatprep.subr.bf16.mxu0 0
  %227 = vmatpush2.bf16.msra.mxu0 0
  %228 = vmatprep.subr.bf16.mxu0 0
  %229 = vmatpush2.bf16.msra.mxu0 0
  %230 = vmatprep.subr.bf16.mxu0 0
  %231 = vmatpush2.bf16.msra.mxu0 0
  %232 = vmatprep.subr.bf16.mxu0 0
  %233 = vmatpush2.bf16.msra.mxu0 0
  %234 = vmatprep.subr.bf16.mxu0 0
  %235 = vmatpush2.bf16.msra.mxu0 0
  %236 = vmatprep.subr.bf16.mxu0 0
  %237 = vmatpush2.bf16.msra.mxu0 0
  %238 = vmatprep.subr.bf16.mxu0 0
  %239 = vmatpush2.bf16.msra.mxu0 0
  %240 = vmatprep.mubr.bf16.mxu0 0
  %241 = vmatmul.mubr.bf16.gmra.mxu0 %v206
  %v242 = vpop.f32.mrf.mxu0
  %v243 = vadd.f32 0.0, %v242
  %v244 = vpop.f32.mrf.mxu0
  %v245 = vpop.f32.mrf.mxu0
  %v246 = vadd.f32 0.0, %v245
  %v247 = vpop.f32.mrf.mxu0
  %248 = vdwg.mxu0
  %v249 = vadd.f32 %v169, %v243
  %v250 = vadd.f32 %v170, %v246
  %251 = vst.msk [vmem:[%s7] sm:$0xff] %vm122, %v249
  %252 = vst.msk [vmem:[%s7 + $0x8] sm:$0xff] %vm122, %v250
  // Predicated region
  $region34: #{encoder_forward.9} parent=0 // pred_check
    %p253 = pneg %p27
  $region35: #{encoder_forward.9} parent=0 // pred_check_branch
    %255 = sbr.rel (%p253) target = $region37
  $region36: #{encoder_forward.9} parent=0 // pred_region
    %v256 = vld [vmem:[%s7] sm:$0xff]
    %v257 = vld [vmem:[%s7 + $0x8] sm:$0xff]
    %v258 = vld [vmem:[%s6] sm:$0x1]
    %v259 = vld [vmem:[%s0] sm:$0xff]
    %v260 = vld [vmem:[%s0 + $0x8] sm:$0xff]
    %v262 = vlaneseq
    %v263 = vshrl.u32 %v262, 7
    %v264 = vsub.s32 0, %v263
    %v265 = vrot.slane %v258, %v264
    %v267 = vadd.f32 %v265, %v259
    %v268 = vadd.f32 %v265, %v260
    %v269 = vadd.f32 %v256, %v267
    %v270 = vadd.f32 %v257, %v268
    %271 = vst.msk [vmem:[%s7] sm:$0xff] %vm122, %v269
    %272 = vst.msk [vmem:[%s7 + $0x8] sm:$0xff] %vm122, %v270
  $region37: #{encoder_forward.9} parent=0 // pred_fallthru
    _
  // Predicated region
  $region38: #{encoder_forward.9} parent=0 // pred_check
    _
  $region39: #{encoder_forward.9} parent=0 // pred_check_branch
    %274 = sbr.rel (0) target = $region41
  $region40: #{encoder_forward.9} parent=0 // pred_region
    _
  $region41: #{encoder_forward.9} parent=0 // pred_fallthru
    _
  // Predicated region
  $region42: #{encoder_forward.9} parent=0 // pred_check
    _
  $region43: #{encoder_forward.9} parent=0 // pred_check_branch
    %276 = sbr.rel (0) target = $region45
  $region44: #{encoder_forward.9} parent=0 // pred_region
    _
  $region45: #{encoder_forward.9} parent=0 // pred_fallthru
    _

// kernel: encoder_forward.10
$region0: #{encoder_forward.10}
  #allocation0 [shape = 'u32[]', space=smem, size = 0x4, offset = 0x4, fixed_abs, tag = 'smem constant byte address 0x4 - core index']
  #allocation1 [shape = 'u32[144,128]{1,0:T(1,128)}', space=vmem, size = 0x12000, scoped, tag = 'internal scratch']
  #allocation2 [shape = 'bf16[16,32]{1,0:T(8,128)(2,1)}', space=vmem, size = 0x1000, scoped, tag = 'scratch operand']
  %s0 = inlined_call_operand.vmem [shape: f32[16,32], index: 0, kind: input, shape index: {}]
  %s1 = inlined_call_operand.vmem [shape: f32[1,32], index: 1, kind: input, shape index: {}]
  %s2 = inlined_call_operand.vmem [shape: f32[1,32], index: 2, kind: input, shape index: {}]
  %s3 = inlined_call_operand.vmem [shape: bf16[3,32,32], index: 3, kind: input, shape index: {}]
  %s4 = inlined_call_operand.vmem [shape: f32[3,1,32], index: 4, kind: input, shape index: {}]
  %s5 = inlined_call_operand.vmem [shape: bf16[3,16,32], index: 5, kind: output, shape index: {}]
  %s6 = sld [smem:[#allocation0]]
  $region57: #{encoder_forward.10} parent=0
    _
  %s8 = ssub.s32 1, %s6
  %s9 = scalar_select 0, %s8, %s6
  loop: start=0, step=1, limit=5
  $region2: #{encoder_forward.10} parent=0 // loop_pre_header
    _
  $region3: #{encoder_forward.10} parent=0 // loop_header
    %s11 = sphi 0, %s15
    %p12 = scmp.ge.s32.totalorder %s11, 5
    %s18 = sphi 0, %s37
    %s19 = sphi 0, %s33
    %s20 = sphi 0, %s29
    %s21 = sphi 0, %s18
    %s22 = sphi 0, %s19
    %s23 = sphi 0, %s20
    %s24 = sphi 0, %s21
    %s25 = sphi 0, %s22
    %s26 = sphi 0, %s23
    %s40 = sphi 0, %s42
    %s43 = sphi 0, %s40
    %s44 = sphi 0, %s43
    %s60 = sphi 0, %s44
    %s64 = sphi 0, %s64
    %s66 = sphi 0, %s64
    %s67 = sphi 0, %s66
    %s81 = sphi 0, %s67
    %s85 = sphi 0, %s85
    %s87 = sphi 0, %s85
    %s88 = sphi 0, %s87
    %s102 = sphi 0, %s88
    %s110 = sphi 0, %s112
    %s113 = sphi 0, %s110
    %s114 = sphi 0, %s113
    %s130 = sphi 0, %s114
    %s138 = sphi 0, %s140
    %s141 = sphi 0, %s138
    %s142 = sphi 0, %s141
    %s158 = sphi 0, %s142
    %s168 = sphi 0, %s170
    %s171 = sphi 0, %s168
    %s172 = sphi 0, %s171
    %s188 = sphi 0, %s172
  $region4: #{encoder_forward.10} parent=0 // loop_header_branch
    %14 = sbr.rel (%p12) target = $region8
  $region5: #{encoder_forward.10} parent=0 // loop_body
    %s16 = ssub.s32 %s11, 1
    %s17 = ssub.s32 %s11, 2
    %s27 = sadd.s32 1, %s20
    %p28 = scmp.ge.s32.totalorder %s27, 1
    %s29 = scalar_select %p28, 0, %s27
    %s30 = sadd.s32 1, %s19
    %s31 = scalar_select %p28, %s30, %s19
    %p32 = scmp.ge.s32.totalorder %s31, 3
    %s33 = scalar_select %p32, 0, %s31
    %s34 = sadd.s32 1, %s18
    %s35 = scalar_select %p32, %s34, %s18
    %p36 = scmp.ge.s32.totalorder %s35, 1
    %s37 = scalar_select %p36, 0, %s35
    %s38 = ssub.s32 %s18, %s37
    %p39 = scmp.eq.s32.totalorder %s38, 0
    %s41 = sadd.s32 %s40, 1
    %s42 = scalar_select %p39, %s40, %s41
    %p45 = pneg %p39
    %p46 = scmp.eq.s32.totalorder %s11, 2
    %p47 = por %p45, %p46
    %p48 = scmp.ne.s32.totalorder %s40, %s43
    %p49 = scmp.eq.s32.totalorder %s11, 0
    %p50 = por %p48, %p49
    %p51 = scmp.ne.s32.totalorder %s40, %s43
    %p52 = scmp.eq.s32.totalorder %s16, 2
    %p53 = por %p51, %p52
    %p54 = scmp.ne.s32.totalorder %s43, %s44
    %p55 = scmp.eq.s32.totalorder %s16, 0
    %p56 = por %p54, %p55
    %p57 = scmp.ne.s32.totalorder %s43, %s44
    %p58 = scmp.eq.s32.totalorder %s17, 2
    %p59 = por %p57, %p58
    %p61 = scmp.ne.s32.totalorder %s44, %s60
    %p62 = scmp.eq.s32.totalorder %s17, 0
    %p63 = por %p61, %p62
    %s65 = sadd.s32 %s64, 1
    %p68 = scmp.eq.s32.totalorder %s11, 2
    %p69 = scmp.ne.s32.totalorder %s64, %s66
    %p70 = scmp.eq.s32.totalorder %s11, 0
    %p71 = por %p69, %p70
    %p72 = scmp.ne.s32.totalorder %s64, %s66
    %p73 = scmp.eq.s32.totalorder %s16, 2
    %p74 = por %p72, %p73
    %p75 = scmp.ne.s32.totalorder %s66, %s67
    %p76 = scmp.eq.s32.totalorder %s16, 0
    %p77 = por %p75, %p76
    %p78 = scmp.ne.s32.totalorder %s66, %s67
    %p79 = scmp.eq.s32.totalorder %s17, 2
    %p80 = por %p78, %p79
    %p82 = scmp.ne.s32.totalorder %s67, %s81
    %p83 = scmp.eq.s32.totalorder %s17, 0
    %p84 = por %p82, %p83
    %s86 = sadd.s32 %s85, 1
    %p89 = scmp.eq.s32.totalorder %s11, 2
    %p90 = scmp.ne.s32.totalorder %s85, %s87
    %p91 = scmp.eq.s32.totalorder %s11, 0
    %p92 = por %p90, %p91
    %p93 = scmp.ne.s32.totalorder %s85, %s87
    %p94 = scmp.eq.s32.totalorder %s16, 2
    %p95 = por %p93, %p94
    %p96 = scmp.ne.s32.totalorder %s87, %s88
    %p97 = scmp.eq.s32.totalorder %s16, 0
    %p98 = por %p96, %p97
    %p99 = scmp.ne.s32.totalorder %s87, %s88
    %p100 = scmp.eq.s32.totalorder %s17, 2
    %p101 = por %p99, %p100
    %p103 = scmp.ne.s32.totalorder %s88, %s102
    %p104 = scmp.eq.s32.totalorder %s17, 0
    %p105 = por %p103, %p104
    %s106 = ssub.s32 %s19, %s33
    %s107 = ssub.s32 %s20, %s29
    %s108 = sor.u32 %s106, %s107
    %p109 = scmp.eq.s32.totalorder %s108, 0
    %s111 = sadd.s32 %s110, 1
    %s112 = scalar_select %p109, %s110, %s111
    %p115 = pneg %p109
    %p116 = scmp.eq.s32.totalorder %s11, 2
    %p117 = por %p115, %p116
    %p118 = scmp.ne.s32.totalorder %s110, %s113
    %p119 = scmp.eq.s32.totalorder %s11, 0
    %p120 = por %p118, %p119
    %p121 = scmp.ne.s32.totalorder %s110, %s113
    %p122 = scmp.eq.s32.totalorder %s16, 2
    %p123 = por %p121, %p122
    %p124 = scmp.ne.s32.totalorder %s113, %s114
    %p125 = scmp.eq.s32.totalorder %s16, 0
    %p126 = por %p124, %p125
    %p127 = scmp.ne.s32.totalorder %s113, %s114
    %p128 = scmp.eq.s32.totalorder %s17, 2
    %p129 = por %p127, %p128
    %p131 = scmp.ne.s32.totalorder %s114, %s130
    %p132 = scmp.eq.s32.totalorder %s17, 0
    %p133 = por %p131, %p132
    %s134 = ssub.s32 %s19, %s33
    %s135 = ssub.s32 %s20, %s29
    %s136 = sor.u32 %s134, %s135
    %p137 = scmp.eq.s32.totalorder %s136, 0
    %s139 = sadd.s32 %s138, 1
    %s140 = scalar_select %p137, %s138, %s139
    %p143 = pneg %p137
    %p144 = scmp.eq.s32.totalorder %s11, 2
    %p145 = por %p143, %p144
    %p146 = scmp.ne.s32.totalorder %s138, %s141
    %p147 = scmp.eq.s32.totalorder %s11, 0
    %p148 = por %p146, %p147
    %p149 = scmp.ne.s32.totalorder %s138, %s141
    %p150 = scmp.eq.s32.totalorder %s16, 2
    %p151 = por %p149, %p150
    %p152 = scmp.ne.s32.totalorder %s141, %s142
    %p153 = scmp.eq.s32.totalorder %s16, 0
    %p154 = por %p152, %p153
    %p155 = scmp.ne.s32.totalorder %s141, %s142
    %p156 = scmp.eq.s32.totalorder %s17, 2
    %p157 = por %p155, %p156
    %p159 = scmp.ne.s32.totalorder %s142, %s158
    %p160 = scmp.eq.s32.totalorder %s17, 0
    %p161 = por %p159, %p160
    %s162 = ssub.s32 %s19, %s33
    %s163 = ssub.s32 %s18, %s37
    %s164 = sor.u32 %s162, %s163
    %s165 = ssub.s32 %s20, %s29
    %s166 = sor.u32 %s164, %s165
    %p167 = scmp.eq.s32.totalorder %s166, 0
    %s169 = sadd.s32 %s168, 1
    %s170 = scalar_select %p167, %s168, %s169
    %p173 = pneg %p167
    %p174 = scmp.eq.s32.totalorder %s11, 2
    %p175 = por %p173, %p174
    %p176 = scmp.ne.s32.totalorder %s168, %s171
    %p177 = scmp.eq.s32.totalorder %s11, 0
    %p178 = por %p176, %p177
    %p179 = scmp.ne.s32.totalorder %s168, %s171
    %p180 = scmp.eq.s32.totalorder %s16, 2
    %p181 = por %p179, %p180
    %p182 = scmp.ne.s32.totalorder %s171, %s172
    %p183 = scmp.eq.s32.totalorder %s16, 0
    %p184 = por %p182, %p183
    %p185 = scmp.ne.s32.totalorder %s171, %s172
    %p186 = scmp.eq.s32.totalorder %s17, 2
    %p187 = por %p185, %p186
    %p189 = scmp.ne.s32.totalorder %s172, %s188
    %p190 = scmp.eq.s32.totalorder %s17, 0
    %p191 = por %p189, %p190
    %p192 = scmp.le.s32.totalorder 1, %s11
    %p193 = scmp.lt.s32.totalorder %s11, 4
    %p194 = pnand %p192, %p193
    %p195 = pneg %p194
    // Predicated region
    $region9: #{encoder_forward.10} parent=5 // pred_check
      _
    $region10: #{encoder_forward.10} parent=5 // pred_check_branch
      %197 = sbr.rel (%p194) target = $region12
    $region11: #{encoder_forward.10} parent=5 // pred_region
      %s198 = ssub.s32 %s11, 1
      // Predicated region
      $region13: #{encoder_forward.10} parent=11 // pred_check
        %p199 = pneg %p56
      $region14: #{encoder_forward.10} parent=11 // pred_check_branch
        %201 = sbr.rel (%p199) target = $region16
      $region15: #{encoder_forward.10} parent=11 // pred_region
        %s202 = smul.u32 2, %s21
        %p203 = scmp.lt.s32.totalorder %s202, 1
        %s204 = scalar_select %p203, %s202, 1
        %s205 = smul.addr %s204, 8
        %s206 = scalar_lea.vmem %s0, %s205
        %s207 = smul.u32 2, %s21
      $region16: #{encoder_forward.10} parent=11 // pred_fallthru
        _
      // Predicated region
      $region17: #{encoder_forward.10} parent=11 // pred_check
        %p208 = pneg %p77
      $region18: #{encoder_forward.10} parent=11 // pred_check_branch
        %210 = sbr.rel (%p208) target = $region20
      $region19: #{encoder_forward.10} parent=11 // pred_region
        _
      $region20: #{encoder_forward.10} parent=11 // pred_fallthru
        _
      // Predicated region
      $region21: #{encoder_forward.10} parent=11 // pred_check
        %p211 = pneg %p98
      $region22: #{encoder_forward.10} parent=11 // pred_check_branch
        %213 = sbr.rel (%p211) target = $region24
      $region23: #{encoder_forward.10} parent=11 // pred_region
        _
      $region24: #{encoder_forward.10} parent=11 // pred_fallthru
        _
    $region12: #{encoder_forward.10} parent=5 // pred_fallthru
      _
    %p214 = scmp.lt.s32.totalorder %s11, 3
    // Predicated region
    $region25: #{encoder_forward.10} parent=5 // pred_check
      %p215 = pneg %p214
    $region26: #{encoder_forward.10} parent=5 // pred_check_branch
      %217 = sbr.rel (%p215) target = $region28
    $region27: #{encoder_forward.10} parent=5 // pred_region
      // Predicated region
      $region29: #{encoder_forward.10} parent=27 // pred_check
        %p218 = pneg %p120
      $region30: #{encoder_forward.10} parent=27 // pred_check_branch
        %220 = sbr.rel (%p218) target = $region32
      $region31: #{encoder_forward.10} parent=27 // pred_region
        %p221 = scmp.lt.s32.totalorder %s19, 2
        %s222 = scalar_select %p221, %s19, 2
        %p223 = scmp.lt.s32.totalorder %s20, 0
        %s224 = scalar_select %p223, %s20, 0
        %s225 = smul.addr %s222, 4
        %s226 = sadd.s32 %s224, %s225
        %s227 = smul.addr %s226, 4
        %s228 = scalar_lea.vmem %s3, %s227
      $region32: #{encoder_forward.10} parent=27 // pred_fallthru
        _
      // Predicated region
      $region33: #{encoder_forward.10} parent=27 // pred_check
        %p229 = pneg %p148
      $region34: #{encoder_forward.10} parent=27 // pred_check_branch
        %231 = sbr.rel (%p229) target = $region36
      $region35: #{encoder_forward.10} parent=27 // pred_region
        %p232 = scmp.lt.s32.totalorder %s19, 2
        %s233 = scalar_select %p232, %s19, 2
        %p234 = scmp.lt.s32.totalorder %s20, 0
        %s235 = scalar_select %p234, %s20, 0
        %s236 = sadd.s32 %s235, %s233
        %s237 = scalar_lea.vmem %s4, %s236
      $region36: #{encoder_forward.10} parent=27 // pred_fallthru
        _
    $region28: #{encoder_forward.10} parent=5 // pred_fallthru
      _
    %p238 = scmp.le.s32.totalorder 1, %s11
    %p239 = scmp.lt.s32.totalorder %s11, 4
    %p240 = pnand %p238, %p239
    %p241 = pneg %p240
    // Predicated region
    $region37: #{encoder_forward.10} parent=5 // pred_check
      _
    $region38: #{encoder_forward.10} parent=5 // pred_check_branch
      %243 = sbr.rel (%p240) target = $region40
    $region39: #{encoder_forward.10} parent=5 // pred_region
      %s244 = ssub.s32 %s11, 1
      %s245 = smul.u32 2, %s21
      %p246 = scmp.lt.s32.totalorder %s245, 1
      %s247 = scalar_select %p246, %s245, 1
      %s248 = smul.addr %s247, 8
      %s249 = scalar_lea.vmem %s0, %s248
      %p250 = pneg %p56
      %p251 = pneg %p53
      %p252 = pneg %p77
      %p253 = pneg %p74
      %p254 = pneg %p98
      %p255 = pneg %p95
      %p256 = scmp.lt.s32.totalorder %s22, 2
      %s257 = scalar_select %p256, %s22, 2
      %p258 = scmp.lt.s32.totalorder %s23, 0
      %s259 = scalar_select %p258, %s23, 0
      %s260 = smul.addr %s257, 4
      %s261 = sadd.s32 %s259, %s260
      %s262 = smul.addr %s261, 4
      %s263 = scalar_lea.vmem %s3, %s262
      %p264 = pneg %p126
      %p265 = pneg %p123
      %p266 = scmp.lt.s32.totalorder %s22, 2
      %s267 = scalar_select %p266, %s22, 2
      %p268 = scmp.lt.s32.totalorder %s23, 0
      %s269 = scalar_select %p268, %s23, 0
      %s270 = sadd.s32 %s269, %s267
      %s271 = scalar_lea.vmem %s4, %s270
      %p272 = pneg %p154
      %p273 = pneg %p151
      %p274 = pneg %p184
      %p275 = pneg %p181
      %s276 = smul.u32 2, %s21
      %p277 = scmp.lt.s32.totalorder %s22, 2
      %s278 = scalar_select %p277, %s22, 2
      %p279 = scmp.lt.s32.totalorder %s276, 1
      %s280 = scalar_select %p279, %s276, 1
      %p281 = scmp.lt.s32.totalorder %s23, 0
      %s282 = scalar_select %p281, %s23, 0
      %s283 = sadd.s32 %s282, %s280
      %s284 = smul.addr %s278, 2
      %s285 = sadd.s32 %s283, %s284
      %s286 = smul.addr %s285, 4
      %s287 = scalar_lea.vmem %s5, %s286
      %s288 = smul.u32 2, %s21
      %p289 = scmp.lt.s32.totalorder %s288, 1
      %s290 = scalar_select %p289, %s288, 1
      %s291 = smul.addr %s290, 8
      %s292 = scalar_lea.vmem %s0, %s291
      %s293 = smul.u32 2, %s21
      %p294 = scmp.lt.s32.totalorder %s22, 2
      %s295 = scalar_select %p294, %s22, 2
      %p296 = scmp.lt.s32.totalorder %s23, 0
      %s297 = scalar_select %p296, %s23, 0
      %s298 = smul.addr %s295, 4
      %s299 = sadd.s32 %s297, %s298
      %s300 = smul.addr %s299, 4
      %s301 = scalar_lea.vmem %s3, %s300
      %p302 = scmp.lt.s32.totalorder %s22, 2
      %s303 = scalar_select %p302, %s22, 2
      %p304 = scmp.lt.s32.totalorder %s23, 0
      %s305 = scalar_select %p304, %s23, 0
      %s306 = sadd.s32 %s305, %s303
      %s307 = scalar_lea.vmem %s4, %s306
      %s308 = smul.u32 2, %s21
      %p309 = scmp.lt.s32.totalorder %s22, 2
      %s310 = scalar_select %p309, %s22, 2
      %p311 = scmp.lt.s32.totalorder %s308, 1
      %s312 = scalar_select %p311, %s308, 1
      %p313 = scmp.lt.s32.totalorder %s23, 0
      %s314 = scalar_select %p313, %s23, 0
      %s315 = sadd.s32 %s314, %s312
      %s316 = smul.addr %s310, 2
      %s317 = sadd.s32 %s315, %s316
      %s318 = smul.addr %s317, 4
      %s319 = scalar_lea.vmem %s5, %s318
      %s320 = smul.u32 2, %s21
      %p322 = scmp.eq.s32.totalorder %s22, 0
      %p323 = scmp.eq.s32.totalorder %s23, 0
      %p324 = pnand %p322, %p323
      %p325 = pneg %p324
      // Predicated region
      $region41: #{encoder_forward.10} parent=39 // pred_check
        _
      $region42: #{encoder_forward.10} parent=39 // pred_check_branch
        %327 = sbr.rel (%p324) target = $region44
      $region43: #{encoder_forward.10} parent=39 // pred_region
        %v328 = vld [vmem:[%s292] sm:$0xff]
        %v329 = vld [vmem:[%s292 + $0x8] sm:$0xff]
        %v330 = vld [vmem:[%s1] sm:$0x1]
        %v331 = vld [vmem:[%s2] sm:$0x1]
        %vm332 = vcmask 261120
        %v333 = vsel %vm332, %v328, 0.0
        %334 = vadd.xlane.f32.xlu0 %v333
        %v335 = vpop.xlane.xlu0 %334
        %v336 = vsel %vm332, %v329, 0.0
        %337 = vadd.xlane.f32.xlu0 %v336
        %v338 = vpop.xlane.xlu0 %337
        %v339 = vrcp.pop 32.0
        %v340 = vmul.f32 %v335, %v339
        %v341 = vmul.f32 %v338, %v339
        %v342 = vsub.f32 %v328, %v340
        %v343 = vsub.f32 %v329, %v341
        %v344 = vmul.f32 %v342, %v342
        %v345 = vmul.f32 %v343, %v343
        %v346 = vsel %vm332, %v344, 0.0
        %347 = vadd.xlane.f32.xlu0 %v346
        %v348 = vpop.xlane.xlu0 %347
        %v349 = vsel %vm332, %v345, 0.0
        %350 = vadd.xlane.f32.xlu0 %v349
        %v351 = vpop.xlane.xlu0 %350
        %v352 = vmul.f32 %v348, %v339
        %v353 = vmul.f32 %v351, %v339
        %v354 = vadd.f32 %v352, 1e-06
        %v355 = vadd.f32 %v353, 1e-06
        %v356 = vrsqrt.pop %v354
        %v357 = vrsqrt.pop %v355
        %v358 = vmul.f32 %v342, %v356
        %v359 = vmul.f32 %v343, %v357
        %v361 = vlaneseq
        %v362 = vshrl.u32 %v361, 7
        %v363 = vsub.s32 0, %v362
        %v364 = vrot.slane %v330, %v363
        %v366 = vmul.f32 %v358, %v364
        %v367 = vmul.f32 %v359, %v364
        %v369 = vlaneseq
        %v370 = vshrl.u32 %v369, 7
        %v371 = vsub.s32 0, %v370
        %v372 = vrot.slane %v331, %v371
        %v374 = vadd.f32 %v366, %v372
        %v375 = vadd.f32 %v367, %v372
        %v376 = vpack.c.bf16 %v375, %v374
        %v378 = vunpack.c.l.b16 %v376
        %v379 = vunpack.c.h.b16 %v376
        %v380 = vpack.c.b16 %v378, %v378
        %v381 = vpack.c.b16 %v379, %v379
        %vm384 = vcmask 257024
        %385 = vst.msk [vmem:[#allocation2] sm:$0xf] %vm384, %v380
        %386 = vst.msk [vmem:[#allocation2 + $0x4] sm:$0xf] %vm384, %v381
      $region44: #{encoder_forward.10} parent=39 // pred_fallthru
        _
      %v387 = vld [vmem:[#allocation2] sm:$0xf]
      %v388 = vld [vmem:[#allocation2 + $0x4] sm:$0xf]
      %v389 = vld [vmem:[%s301] sm:$0xf]
      %v390 = vld [vmem:[%s301 + $0x4] sm:$0xf]
      %v391 = vld [vmem:[%s301 + $0x8] sm:$0xf]
      %v392 = vld [vmem:[%s301 + $0xc] sm:$0xf]
      %v393 = vld [vmem:[%s307] sm:$0x1]
      %v395 = vlaneseq
      %v396 = vshrl.u32 %v395, 7
      %v397 = vsub.s32 0, %v396
      %v398 = vrot.slane %v393, %v397
      %v402 = vunpack.c.l.b16 %v387
      %v403 = vunpack.c.l.b16 %v388
      %v404 = vpack.c.b16 %v403, %v402
      %v409 = vunpack.c.l.b16 %v389
      %v410 = vunpack.c.l.b16 %v390
      %v411 = vunpack.c.l.b16 %v391
      %v412 = vunpack.c.l.b16 %v392
      %v413 = vpack.c.b16 %v410, %v409
      %v414 = vpack.c.b16 %v412, %v411
      %vm417 = vcmask 261120
      %v419 = vsel %vm417, %v404, 0
      %421 = vmatprep.subr.bf16.mxu0 0
      %422 = vmatpush1.bf16.msra.mxu0 0
      %423 = vmatprep.subr.bf16.mxu0 0
      %424 = vmatpush1.bf16.msra.mxu0 0
      %425 = vmatprep.subr.bf16.mxu0 0
      %426 = vmatpush1.bf16.msra.mxu0 0
      %427 = vmatprep.subr.bf16.mxu0 0
      %428 = vmatpush1.bf16.msra.mxu0 0
      %429 = vmatprep.subr.bf16.mxu0 0
      %430 = vmatpush1.bf16.msra.mxu0 0
      %431 = vmatprep.subr.bf16.mxu0 0
      %432 = vmatpush1.bf16.msra.mxu0 0
      %433 = vmatprep.subr.bf16.mxu0 0
      %434 = vmatpush1.bf16.msra.mxu0 %v414
      %435 = vmatprep.subr.bf16.mxu0 0
      %436 = vmatpush1.bf16.msra.mxu0 %v413
      %437 = vmatprep.subr.bf16.mxu0 0
      %438 = vmatpush2.bf16.msra.mxu0 0
      %439 = vmatprep.subr.bf16.mxu0 0
      %440 = vmatpush2.bf16.msra.mxu0 0
      %441 = vmatprep.subr.bf16.mxu0 0
      %442 = vmatpush2.bf16.msra.mxu0 0
      %443 = vmatprep.subr.bf16.mxu0 0
      %444 = vmatpush2.bf16.msra.mxu0 0
      %445 = vmatprep.subr.bf16.mxu0 0
      %446 = vmatpush2.bf16.msra.mxu0 0
      %447 = vmatprep.subr.bf16.mxu0 0
      %448 = vmatpush2.bf16.msra.mxu0 0
      %449 = vmatprep.subr.bf16.mxu0 0
      %450 = vmatpush2.bf16.msra.mxu0 0
      %451 = vmatprep.subr.bf16.mxu0 0
      %452 = vmatpush2.bf16.msra.mxu0 0
      %453 = vmatprep.mubr.bf16.mxu0 0
      %454 = vmatmul.mubr.bf16.gmra.mxu0 %v419
      %v455 = vpop.f32.mrf.mxu0
      %v456 = vadd.f32 %v398, %v455
      %v457 = vpop.f32.mrf.mxu0
      %v458 = vpop.f32.mrf.mxu0
      %v459 = vadd.f32 %v398, %v458
      %v460 = vpop.f32.mrf.mxu0
      %461 = vdwg.mxu0
      %v462 = vpack.c.bf16 %v459, %v456
      %v464 = vunpack.c.l.b16 %v462
      %v465 = vunpack.c.h.b16 %v462
      %v466 = vpack.c.b16 %v464, %v464
      %v467 = vpack.c.b16 %v465, %v465
      %vm470 = vcmask 257024
      %471 = vst.msk [vmem:[%s319] sm:$0xf] %vm470, %v466
      %472 = vst.msk [vmem:[%s319 + $0x4] sm:$0xf] %vm470, %v467
      %s473 = smul.u32 2, %s21
      %p474 = scmp.lt.s32.totalorder %s22, 2
      %s475 = scalar_select %p474, %s22, 2
      %p476 = scmp.lt.s32.totalorder %s473, 1
      %s477 = scalar_select %p476, %s473, 1
      %p478 = scmp.lt.s32.totalorder %s23, 0
      %s479 = scalar_select %p478, %s23, 0
      %s480 = sadd.s32 %s479, %s477
      %s481 = smul.addr %s475, 2
      %s482 = sadd.s32 %s480, %s481
      %s483 = smul.addr %s482, 4
      %s484 = scalar_lea.vmem %s5, %s483
      // Predicated region
      $region45: #{encoder_forward.10} parent=39 // pred_check
        %p485 = pneg %p181
      $region46: #{encoder_forward.10} parent=39 // pred_check_branch
        %487 = sbr.rel (%p485) target = $region48
      $region47: #{encoder_forward.10} parent=39 // pred_region
        %s488 = smul.u32 2, %s21
      $region48: #{encoder_forward.10} parent=39 // pred_fallthru
        _
    $region40: #{encoder_forward.10} parent=5 // pred_fallthru
      _
    %p489 = scmp.le.s32.totalorder 2, %s11
    // Predicated region
    $region49: #{encoder_forward.10} parent=5 // pred_check
      %p490 = pneg %p489
    $region50: #{encoder_forward.10} parent=5 // pred_check_branch
      %492 = sbr.rel (%p490) target = $region52
    $region51: #{encoder_forward.10} parent=5 // pred_region
      %s493 = ssub.s32 %s11, 2
      // Predicated region
      $region53: #{encoder_forward.10} parent=51 // pred_check
        %p494 = pneg %p187
      $region54: #{encoder_forward.10} parent=51 // pred_check_branch
        %496 = sbr.rel (%p494) target = $region56
      $region55: #{encoder_forward.10} parent=51 // pred_region
        %s497 = smul.u32 2, %s24
        %p498 = scmp.lt.s32.totalorder %s25, 2
        %s499 = scalar_select %p498, %s25, 2
        %p500 = scmp.lt.s32.totalorder %s497, 1
        %s501 = scalar_select %p500, %s497, 1
        %p502 = scmp.lt.s32.totalorder %s26, 0
        %s503 = scalar_select %p502, %s26, 0
        %s504 = sadd.s32 %s503, %s501
        %s505 = smul.addr %s499, 2
        %s506 = sadd.s32 %s504, %s505
        %s507 = smul.addr %s506, 4
        %s508 = scalar_lea.vmem %s5, %s507
      $region56: #{encoder_forward.10} parent=51 // pred_fallthru
        _
    $region52: #{encoder_forward.10} parent=5 // pred_fallthru
      _
  $region6: #{encoder_forward.10} parent=0 // loop_footer
    %s15 = sadd.s32 1, %s11
  $region7: #{encoder_forward.10} parent=0 // loop_footer_branch
    %10 = sbr.rel target = $region3
  $region8: #{encoder_forward.10} parent=0 // loop_exit
    _

// kernel: encoder_forward.8
$region0: #{encoder_forward.8}
  #allocation0 [shape = 'u32[]', space=smem, size = 0x4, offset = 0x4, fixed_abs, tag = 'smem constant byte address 0x4 - core index']
  #allocation1 [shape = 'u32[144,128]{1,0:T(1,128)}', space=vmem, size = 0x12000, scoped, tag = 'internal scratch']
  #allocation2 [shape = 'bf16[4,8,8]{2,1,0:T(8,128)(2,1)}', space=vmem, size = 0x2000, scoped, tag = 'scratch operand']
  #allocation3 [shape = 'f32[4,8,8]{2,1,0:T(8,128)}', space=vmem, size = 0x4000, scoped, tag = 'scratch operand']
  #allocation4 [shape = 'f32[4,8,1]{2,1,0:T(8,128)}', space=vmem, size = 0x4000, scoped, tag = 'scratch operand']
  #allocation5 [shape = 'f32[4,8,1]{2,1,0:T(8,128)}', space=vmem, size = 0x4000, scoped, tag = 'scratch operand']
  %s0 = inlined_call_operand.vmem [shape: bf16[3,2,8,32], index: 0, kind: input, shape index: {}, may-alias: {0,1,2}]
  %s1 = inlined_call_operand.vmem [shape: bf16[3,2,8,32], index: 1, kind: input, shape index: {}, may-alias: {0,1,2}]
  %s2 = inlined_call_operand.vmem [shape: bf16[3,2,8,32], index: 2, kind: input, shape index: {}, may-alias: {0,1,2}]
  %s3 = inlined_call_operand.vmem [shape: f32[2,1,8], index: 3, kind: input, shape index: {}]
  %s4 = inlined_call_operand.vmem [shape: bf16[32,32], index: 4, kind: input, shape index: {}]
  %s5 = inlined_call_operand.vmem [shape: f32[1,32], index: 5, kind: input, shape index: {}]
  %s6 = inlined_call_operand.vmem [shape: f32[2,8,32], index: 6, kind: input, shape index: {}]
  %s7 = inlined_call_operand.vmem [shape: f32[2,8,32], index: 7, kind: output, shape index: {}]
  %s8 = sld [smem:[#allocation0]]
  $region69: #{encoder_forward.8} parent=0
    _
  %s10 = ssub.s32 1, %s8
  %s11 = scalar_select 0, %s10, %s8
  loop: start=0, step=1, limit=4
  $region2: #{encoder_forward.8} parent=0 // loop_pre_header
    _
  $region3: #{encoder_forward.8} parent=0 // loop_header
    %s13 = sphi 0, %s17
    %p14 = scmp.ge.s32.totalorder %s13, 4
    %s20 = sphi 0, %s39
    %s21 = sphi 0, %s35
    %s22 = sphi 0, %s31
    %s23 = sphi 0, %s20
    %s24 = sphi 0, %s21
    %s25 = sphi 0, %s22
    %s26 = sphi 0, %s23
    %s27 = sphi 0, %s24
    %s28 = sphi 0, %s25
    %s44 = sphi 0, %s46
    %s47 = sphi 0, %s44
    %s48 = sphi 0, %s47
    %s64 = sphi 0, %s48
    %s72 = sphi 0, %s74
    %s75 = sphi 0, %s72
    %s76 = sphi 0, %s75
    %s92 = sphi 0, %s76
    %s100 = sphi 0, %s102
    %s103 = sphi 0, %s100
    %s104 = sphi 0, %s103
    %s120 = sphi 0, %s104
    %s128 = sphi 0, %s130
    %s131 = sphi 0, %s128
    %s132 = sphi 0, %s131
    %s148 = sphi 0, %s132
    %s152 = sphi 0, %s152
    %s154 = sphi 0, %s152
    %s155 = sphi 0, %s154
    %s169 = sphi 0, %s155
    %s173 = sphi 0, %s173
    %s175 = sphi 0, %s173
    %s176 = sphi 0, %s175
    %s190 = sphi 0, %s176
    %s198 = sphi 0, %s200
    %s201 = sphi 0, %s198
    %s202 = sphi 0, %s201
    %s218 = sphi 0, %s202
    %s226 = sphi 0, %s228
    %s229 = sphi 0, %s226
    %s230 = sphi 0, %s229
    %s246 = sphi 0, %s230
  $region4: #{encoder_forward.8} parent=0 // loop_header_branch
    %16 = sbr.rel (%p14) target = $region8
  $region5: #{encoder_forward.8} parent=0 // loop_body
    %s18 = ssub.s32 %s13, 1
    %s19 = ssub.s32 %s13, 2
    %s29 = sadd.s32 1, %s22
    %p30 = scmp.ge.s32.totalorder %s29, 1
    %s31 = scalar_select %p30, 0, %s29
    %s32 = sadd.s32 1, %s21
    %s33 = scalar_select %p30, %s32, %s21
    %p34 = scmp.ge.s32.totalorder %s33, 1
    %s35 = scalar_select %p34, 0, %s33
    %s36 = sadd.s32 1, %s20
    %s37 = scalar_select %p34, %s36, %s20
    %p38 = scmp.ge.s32.totalorder %s37, 2
    %s39 = scalar_select %p38, 0, %s37
    %s40 = ssub.s32 %s20, %s39
    %s41 = ssub.s32 %s21, %s35
    %s42 = sor.u32 %s40, %s41
    %p43 = scmp.eq.s32.totalorder %s42, 0
    %s45 = sadd.s32 %s44, 1
    %s46 = scalar_select %p43, %s44, %s45
    %p49 = pneg %p43
    %p50 = scmp.eq.s32.totalorder %s13, 1
    %p51 = por %p49, %p50
    %p52 = scmp.ne.s32.totalorder %s44, %s47
    %p53 = scmp.eq.s32.totalorder %s13, 0
    %p54 = por %p52, %p53
    %p55 = scmp.ne.s32.totalorder %s44, %s47
    %p56 = scmp.eq.s32.totalorder %s18, 1
    %p57 = por %p55, %p56
    %p58 = scmp.ne.s32.totalorder %s47, %s48
    %p59 = scmp.eq.s32.totalorder %s18, 0
    %p60 = por %p58, %p59
    %p61 = scmp.ne.s32.totalorder %s47, %s48
    %p62 = scmp.eq.s32.totalorder %s19, 1
    %p63 = por %p61, %p62
    %p65 = scmp.ne.s32.totalorder %s48, %s64
    %p66 = scmp.eq.s32.totalorder %s19, 0
    %p67 = por %p65, %p66
    %s68 = ssub.s32 %s20, %s39
    %s69 = ssub.s32 %s22, %s31
    %s70 = sor.u32 %s68, %s69
    %p71 = scmp.eq.s32.totalorder %s70, 0
    %s73 = sadd.s32 %s72, 1
    %s74 = scalar_select %p71, %s72, %s73
    %p77 = pneg %p71
    %p78 = scmp.eq.s32.totalorder %s13, 1
    %p79 = por %p77, %p78
    %p80 = scmp.ne.s32.totalorder %s72, %s75
    %p81 = scmp.eq.s32.totalorder %s13, 0
    %p82 = por %p80, %p81
    %p83 = scmp.ne.s32.totalorder %s72, %s75
    %p84 = scmp.eq.s32.totalorder %s18, 1
    %p85 = por %p83, %p84
    %p86 = scmp.ne.s32.totalorder %s75, %s76
    %p87 = scmp.eq.s32.totalorder %s18, 0
    %p88 = por %p86, %p87
    %p89 = scmp.ne.s32.totalorder %s75, %s76
    %p90 = scmp.eq.s32.totalorder %s19, 1
    %p91 = por %p89, %p90
    %p93 = scmp.ne.s32.totalorder %s76, %s92
    %p94 = scmp.eq.s32.totalorder %s19, 0
    %p95 = por %p93, %p94
    %s96 = ssub.s32 %s20, %s39
    %s97 = ssub.s32 %s22, %s31
    %s98 = sor.u32 %s96, %s97
    %p99 = scmp.eq.s32.totalorder %s98, 0
    %s101 = sadd.s32 %s100, 1
    %s102 = scalar_select %p99, %s100, %s101
    %p105 = pneg %p99
    %p106 = scmp.eq.s32.totalorder %s13, 1
    %p107 = por %p105, %p106
    %p108 = scmp.ne.s32.totalorder %s100, %s103
    %p109 = scmp.eq.s32.totalorder %s13, 0
    %p110 = por %p108, %p109
    %p111 = scmp.ne.s32.totalorder %s100, %s103
    %p112 = scmp.eq.s32.totalorder %s18, 1
    %p113 = por %p111, %p112
    %p114 = scmp.ne.s32.totalorder %s103, %s104
    %p115 = scmp.eq.s32.totalorder %s18, 0
    %p116 = por %p114, %p115
    %p117 = scmp.ne.s32.totalorder %s103, %s104
    %p118 = scmp.eq.s32.totalorder %s19, 1
    %p119 = por %p117, %p118
    %p121 = scmp.ne.s32.totalorder %s104, %s120
    %p122 = scmp.eq.s32.totalorder %s19, 0
    %p123 = por %p121, %p122
    %s124 = ssub.s32 %s20, %s39
    %s125 = ssub.s32 %s22, %s31
    %s126 = sor.u32 %s124, %s125
    %p127 = scmp.eq.s32.totalorder %s126, 0
    %s129 = sadd.s32 %s128, 1
    %s130 = scalar_select %p127, %s128, %s129
    %p133 = pneg %p127
    %p134 = scmp.eq.s32.totalorder %s13, 1
    %p135 = por %p133, %p134
    %p136 = scmp.ne.s32.totalorder %s128, %s131
    %p137 = scmp.eq.s32.totalorder %s13, 0
    %p138 = por %p136, %p137
    %p139 = scmp.ne.s32.totalorder %s128, %s131
    %p140 = scmp.eq.s32.totalorder %s18, 1
    %p141 = por %p139, %p140
    %p142 = scmp.ne.s32.totalorder %s131, %s132
    %p143 = scmp.eq.s32.totalorder %s18, 0
    %p144 = por %p142, %p143
    %p145 = scmp.ne.s32.totalorder %s131, %s132
    %p146 = scmp.eq.s32.totalorder %s19, 1
    %p147 = por %p145, %p146
    %p149 = scmp.ne.s32.totalorder %s132, %s148
    %p150 = scmp.eq.s32.totalorder %s19, 0
    %p151 = por %p149, %p150
    %s153 = sadd.s32 %s152, 1
    %p156 = scmp.eq.s32.totalorder %s13, 1
    %p157 = scmp.ne.s32.totalorder %s152, %s154
    %p158 = scmp.eq.s32.totalorder %s13, 0
    %p159 = por %p157, %p158
    %p160 = scmp.ne.s32.totalorder %s152, %s154
    %p161 = scmp.eq.s32.totalorder %s18, 1
    %p162 = por %p160, %p161
    %p163 = scmp.ne.s32.totalorder %s154, %s155
    %p164 = scmp.eq.s32.totalorder %s18, 0
    %p165 = por %p163, %p164
    %p166 = scmp.ne.s32.totalorder %s154, %s155
    %p167 = scmp.eq.s32.totalorder %s19, 1
    %p168 = por %p166, %p167
    %p170 = scmp.ne.s32.totalorder %s155, %s169
    %p171 = scmp.eq.s32.totalorder %s19, 0
    %p172 = por %p170, %p171
    %s174 = sadd.s32 %s173, 1
    %p177 = scmp.eq.s32.totalorder %s13, 1
    %p178 = scmp.ne.s32.totalorder %s173, %s175
    %p179 = scmp.eq.s32.totalorder %s13, 0
    %p180 = por %p178, %p179
    %p181 = scmp.ne.s32.totalorder %s173, %s175
    %p182 = scmp.eq.s32.totalorder %s18, 1
    %p183 = por %p181, %p182
    %p184 = scmp.ne.s32.totalorder %s175, %s176
    %p185 = scmp.eq.s32.totalorder %s18, 0
    %p186 = por %p184, %p185
    %p187 = scmp.ne.s32.totalorder %s175, %s176
    %p188 = scmp.eq.s32.totalorder %s19, 1
    %p189 = por %p187, %p188
    %p191 = scmp.ne.s32.totalorder %s176, %s190
    %p192 = scmp.eq.s32.totalorder %s19, 0
    %p193 = por %p191, %p192
    %s194 = ssub.s32 %s20, %s39
    %s195 = ssub.s32 %s21, %s35
    %s196 = sor.u32 %s194, %s195
    %p197 = scmp.eq.s32.totalorder %s196, 0
    %s199 = sadd.s32 %s198, 1
    %s200 = scalar_select %p197, %s198, %s199
    %p203 = pneg %p197
    %p204 = scmp.eq.s32.totalorder %s13, 1
    %p205 = por %p203, %p204
    %p206 = scmp.ne.s32.totalorder %s198, %s201
    %p207 = scmp.eq.s32.totalorder %s13, 0
    %p208 = por %p206, %p207
    %p209 = scmp.ne.s32.totalorder %s198, %s201
    %p210 = scmp.eq.s32.totalorder %s18, 1
    %p211 = por %p209, %p210
    %p212 = scmp.ne.s32.totalorder %s201, %s202
    %p213 = scmp.eq.s32.totalorder %s18, 0
    %p214 = por %p212, %p213
    %p215 = scmp.ne.s32.totalorder %s201, %s202
    %p216 = scmp.eq.s32.totalorder %s19, 1
    %p217 = por %p215, %p216
    %p219 = scmp.ne.s32.totalorder %s202, %s218
    %p220 = scmp.eq.s32.totalorder %s19, 0
    %p221 = por %p219, %p220
    %s222 = ssub.s32 %s20, %s39
    %s223 = ssub.s32 %s21, %s35
    %s224 = sor.u32 %s222, %s223
    %p225 = scmp.eq.s32.totalorder %s224, 0
    %s227 = sadd.s32 %s226, 1
    %s228 = scalar_select %p225, %s226, %s227
    %p231 = pneg %p225
    %p232 = scmp.eq.s32.totalorder %s13, 1
    %p233 = por %p231, %p232
    %p234 = scmp.ne.s32.totalorder %s226, %s229
    %p235 = scmp.eq.s32.totalorder %s13, 0
    %p236 = por %p234, %p235
    %p237 = scmp.ne.s32.totalorder %s226, %s229
    %p238 = scmp.eq.s32.totalorder %s18, 1
    %p239 = por %p237, %p238
    %p240 = scmp.ne.s32.totalorder %s229, %s230
    %p241 = scmp.eq.s32.totalorder %s18, 0
    %p242 = por %p240, %p241
    %p243 = scmp.ne.s32.totalorder %s229, %s230
    %p244 = scmp.eq.s32.totalorder %s19, 1
    %p245 = por %p243, %p244
    %p247 = scmp.ne.s32.totalorder %s230, %s246
    %p248 = scmp.eq.s32.totalorder %s19, 0
    %p249 = por %p247, %p248
    %p250 = scmp.le.s32.totalorder 1, %s13
    %p251 = scmp.lt.s32.totalorder %s13, 3
    %p252 = pnand %p250, %p251
    %p253 = pneg %p252
    // Predicated region
    $region9: #{encoder_forward.8} parent=5 // pred_check
      _
    $region10: #{encoder_forward.8} parent=5 // pred_check_branch
      %255 = sbr.rel (%p252) target = $region12
    $region11: #{encoder_forward.8} parent=5 // pred_region
      %s256 = ssub.s32 %s13, 1
      // Predicated region
      $region13: #{encoder_forward.8} parent=11 // pred_check
        %p257 = pneg %p165
      $region14: #{encoder_forward.8} parent=11 // pred_check_branch
        %259 = sbr.rel (%p257) target = $region16
      $region15: #{encoder_forward.8} parent=11 // pred_region
        _
      $region16: #{encoder_forward.8} parent=11 // pred_fallthru
        _
      // Predicated region
      $region17: #{encoder_forward.8} parent=11 // pred_check
        %p260 = pneg %p186
      $region18: #{encoder_forward.8} parent=11 // pred_check_branch
        %262 = sbr.rel (%p260) target = $region20
      $region19: #{encoder_forward.8} parent=11 // pred_region
        _
      $region20: #{encoder_forward.8} parent=11 // pred_fallthru
        _
    $region12: #{encoder_forward.8} parent=5 // pred_fallthru
      _
    %p263 = scmp.lt.s32.totalorder %s13, 2
    // Predicated region
    $region21: #{encoder_forward.8} parent=5 // pred_check
      %p264 = pneg %p263
    $region22: #{encoder_forward.8} parent=5 // pred_check_branch
      %266 = sbr.rel (%p264) target = $region24
    $region23: #{encoder_forward.8} parent=5 // pred_region
      // Predicated region
      $region25: #{encoder_forward.8} parent=23 // pred_check
        %p267 = pneg %p54
      $region26: #{encoder_forward.8} parent=23 // pred_check_branch
        %269 = sbr.rel (%p267) target = $region28
      $region27: #{encoder_forward.8} parent=23 // pred_region
        %p270 = scmp.lt.s32.totalorder %s20, 1
        %s271 = scalar_select %p270, %s20, 1
        %p272 = scmp.lt.s32.totalorder %s21, 0
        %s273 = scalar_select %p272, %s21, 0
        %s274 = sadd.s32 %s273, %s271
        %s275 = smul.addr %s274, 4
        %s276 = scalar_lea.vmem %s0, %s275
      $region28: #{encoder_forward.8} parent=23 // pred_fallthru
        _
      // Predicated region
      $region29: #{encoder_forward.8} parent=23 // pred_check
        %p277 = pneg %p82
      $region30: #{encoder_forward.8} parent=23 // pred_check_branch
        %279 = sbr.rel (%p277) target = $region32
      $region31: #{encoder_forward.8} parent=23 // pred_region
        %p280 = scmp.lt.s32.totalorder %s20, 1
        %s281 = scalar_select %p280, %s20, 1
        %p282 = scmp.lt.s32.totalorder %s22, 0
        %s283 = scalar_select %p282, %s22, 0
        %s284 = sadd.s32 %s283, %s281
        %s285 = sadd.s32 %s284, 2
        %s286 = smul.addr %s285, 4
        %s287 = scalar_lea.vmem %s1, %s286
      $region32: #{encoder_forward.8} parent=23 // pred_fallthru
        _
      // Predicated region
      $region33: #{encoder_forward.8} parent=23 // pred_check
        %p288 = pneg %p110
      $region34: #{encoder_forward.8} parent=23 // pred_check_branch
        %290 = sbr.rel (%p288) target = $region36
      $region35: #{encoder_forward.8} parent=23 // pred_region
        %p291 = scmp.lt.s32.totalorder %s20, 1
        %s292 = scalar_select %p291, %s20, 1
        %p293 = scmp.lt.s32.totalorder %s22, 0
        %s294 = scalar_select %p293, %s22, 0
        %s295 = sadd.s32 %s294, %s292
        %s296 = sadd.s32 %s295, 4
        %s297 = smul.addr %s296, 4
        %s298 = scalar_lea.vmem %s2, %s297
      $region36: #{encoder_forward.8} parent=23 // pred_fallthru
        _
      // Predicated region
      $region37: #{encoder_forward.8} parent=23 // pred_check
        %p299 = pneg %p138
      $region38: #{encoder_forward.8} parent=23 // pred_check_branch
        %301 = sbr.rel (%p299) target = $region40
      $region39: #{encoder_forward.8} parent=23 // pred_region
        %p302 = scmp.lt.s32.totalorder %s20, 1
        %s303 = scalar_select %p302, %s20, 1
        %p304 = scmp.lt.s32.totalorder %s22, 0
        %s305 = scalar_select %p304, %s22, 0
        %s306 = sadd.s32 %s305, %s303
        %s307 = scalar_lea.vmem %s3, %s306
      $region40: #{encoder_forward.8} parent=23 // pred_fallthru
        _
      // Predicated region
      $region41: #{encoder_forward.8} parent=23 // pred_check
        %p308 = pneg %p208
      $region42: #{encoder_forward.8} parent=23 // pred_check_branch
        %310 = sbr.rel (%p308) target = $region44
      $region43: #{encoder_forward.8} parent=23 // pred_region
        %p311 = scmp.lt.s32.totalorder %s20, 1
        %s312 = scalar_select %p311, %s20, 1
        %p313 = scmp.lt.s32.totalorder %s21, 0
        %s314 = scalar_select %p313, %s21, 0
        %s315 = sadd.s32 %s314, %s312
        %s316 = smul.addr %s315, 8
        %s317 = scalar_lea.vmem %s6, %s316
      $region44: #{encoder_forward.8} parent=23 // pred_fallthru
        _
    $region24: #{encoder_forward.8} parent=5 // pred_fallthru
      _
    %p318 = scmp.le.s32.totalorder 1, %s13
    %p319 = scmp.lt.s32.totalorder %s13, 3
    %p320 = pnand %p318, %p319
    %p321 = pneg %p320
    // Predicated region
    $region45: #{encoder_forward.8} parent=5 // pred_check
      _
    $region46: #{encoder_forward.8} parent=5 // pred_check_branch
      %323 = sbr.rel (%p320) target = $region48
    $region47: #{encoder_forward.8} parent=5 // pred_region
      %s324 = ssub.s32 %s13, 1
      %p325 = scmp.lt.s32.totalorder %s23, 1
      %s326 = scalar_select %p325, %s23, 1
      %p327 = scmp.lt.s32.totalorder %s24, 0
      %s328 = scalar_select %p327, %s24, 0
      %s329 = sadd.s32 %s328, %s326
      %s330 = smul.addr %s329, 4
      %s331 = scalar_lea.vmem %s0, %s330
      %p332 = pneg %p60
      %p333 = pneg %p57
      %p334 = scmp.lt.s32.totalorder %s23, 1
      %s335 = scalar_select %p334, %s23, 1
      %p336 = scmp.lt.s32.totalorder %s25, 0
      %s337 = scalar_select %p336, %s25, 0
      %s338 = sadd.s32 %s337, %s335
      %s339 = sadd.s32 %s338, 2
      %s340 = smul.addr %s339, 4
      %s341 = scalar_lea.vmem %s1, %s340
      %p342 = pneg %p88
      %p343 = pneg %p85
      %p344 = scmp.lt.s32.totalorder %s23, 1
      %s345 = scalar_select %p344, %s23, 1
      %p346 = scmp.lt.s32.totalorder %s25, 0
      %s347 = scalar_select %p346, %s25, 0
      %s348 = sadd.s32 %s347, %s345
      %s349 = sadd.s32 %s348, 4
      %s350 = smul.addr %s349, 4
      %s351 = scalar_lea.vmem %s2, %s350
      %p352 = pneg %p116
      %p353 = pneg %p113
      %p354 = scmp.lt.s32.totalorder %s23, 1
      %s355 = scalar_select %p354, %s23, 1
      %p356 = scmp.lt.s32.totalorder %s25, 0
      %s357 = scalar_select %p356, %s25, 0
      %s358 = sadd.s32 %s357, %s355
      %s359 = scalar_lea.vmem %s3, %s358
      %p360 = pneg %p144
      %p361 = pneg %p141
      %p362 = pneg %p165
      %p363 = pneg %p162
      %p364 = pneg %p186
      %p365 = pneg %p183
      %p366 = scmp.lt.s32.totalorder %s23, 1
      %s367 = scalar_select %p366, %s23, 1
      %p368 = scmp.lt.s32.totalorder %s24, 0
      %s369 = scalar_select %p368, %s24, 0
      %s370 = sadd.s32 %s369, %s367
      %s371 = smul.addr %s370, 8
      %s372 = scalar_lea.vmem %s6, %s371
      %p373 = pneg %p214
      %p374 = pneg %p211
      %p375 = pneg %p242
      %p376 = pneg %p239
      %p377 = scmp.lt.s32.totalorder %s23, 1
      %s378 = scalar_select %p377, %s23, 1
      %p379 = scmp.lt.s32.totalorder %s24, 0
      %s380 = scalar_select %p379, %s24, 0
      %s381 = sadd.s32 %s380, %s378
      %s382 = smul.addr %s381, 8
      %s383 = scalar_lea.vmem %s7, %s382
      %p384 = scmp.lt.s32.totalorder %s23, 1
      %s385 = scalar_select %p384, %s23, 1
      %p386 = scmp.lt.s32.totalorder %s24, 0
      %s387 = scalar_select %p386, %s24, 0
      %s388 = sadd.s32 %s387, %s385
      %s389 = smul.addr %s388, 4
      %s390 = scalar_lea.vmem %s0, %s389
      %p391 = scmp.lt.s32.totalorder %s23, 1
      %s392 = scalar_select %p391, %s23, 1
      %p393 = scmp.lt.s32.totalorder %s25, 0
      %s394 = scalar_select %p393, %s25, 0
      %s395 = sadd.s32 %s394, %s392
      %s396 = sadd.s32 %s395, 2
      %s397 = smul.addr %s396, 4
      %s398 = scalar_lea.vmem %s1, %s397
      %p399 = scmp.lt.s32.totalorder %s23, 1
      %s400 = scalar_select %p399, %s23, 1
      %p401 = scmp.lt.s32.totalorder %s25, 0
      %s402 = scalar_select %p401, %s25, 0
      %s403 = sadd.s32 %s402, %s400
      %s404 = sadd.s32 %s403, 4
      %s405 = smul.addr %s404, 4
      %s406 = scalar_lea.vmem %s2, %s405
      %p407 = scmp.lt.s32.totalorder %s23, 1
      %s408 = scalar_select %p407, %s23, 1
      %p409 = scmp.lt.s32.totalorder %s25, 0
      %s410 = scalar_select %p409, %s25, 0
      %s411 = sadd.s32 %s410, %s408
      %s412 = scalar_lea.vmem %s3, %s411
      %p413 = scmp.lt.s32.totalorder %s23, 1
      %s414 = scalar_select %p413, %s23, 1
      %p415 = scmp.lt.s32.totalorder %s24, 0
      %s416 = scalar_select %p415, %s24, 0
      %s417 = sadd.s32 %s416, %s414
      %s418 = smul.addr %s417, 8
      %s419 = scalar_lea.vmem %s6, %s418
      %p420 = scmp.lt.s32.totalorder %s23, 1
      %s421 = scalar_select %p420, %s23, 1
      %p422 = scmp.lt.s32.totalorder %s24, 0
      %s423 = scalar_select %p422, %s24, 0
      %s424 = sadd.s32 %s423, %s421
      %s425 = smul.addr %s424, 8
      %s426 = scalar_lea.vmem %s7, %s425
      %p428 = scmp.eq.s32.totalorder %s25, 0
      // Predicated region
      $region49: #{encoder_forward.8} parent=47 // pred_check
        %p429 = pneg %p428
      $region50: #{encoder_forward.8} parent=47 // pred_check_branch
        %431 = sbr.rel (%p429) target = $region52
      $region51: #{encoder_forward.8} parent=47 // pred_region
        %v432 = vld [vmem:[%s390] sm:$0xf]
        %434 = vrot.lane.b32.xlu0 %v432, 120
        %v435 = vpop.permute.xlu0 %434
        %436 = vrot.lane.b32.xlu0 %v432, 112
        %v437 = vpop.permute.xlu0 %436
        %438 = vrot.lane.b32.xlu0 %v432, 104
        %v439 = vpop.permute.xlu0 %438
        %v442 = vpack.i.b16 %v435, %v432
        %v443 = vshrl.u32 %v432, 16
        %v444 = vshrl.u32 %v435, 16
        %v445 = vpack.i.b16 %v444, %v443
        %v448 = vpack.i.b16 %v439, %v437
        %v449 = vshrl.u32 %v437, 16
        %v450 = vshrl.u32 %v439, 16
        %v451 = vpack.i.b16 %v450, %v449
        %v454 = vunpack.c.l.s4 1983009808
        %v455 = vunpack.c.0.s8 %v454
        %v456 = vlaneseq
        %v457 = vshrl.u32 %v456, 7
        %v458 = vsub.s32 %v455, %v457
        %v459 = vrot.slane %v442, %v458
        %v462 = vunpack.c.l.s4 1983009808
        %v463 = vunpack.c.0.s8 %v462
        %v464 = vlaneseq
        %v465 = vshrl.u32 %v464, 7
        %v466 = vsub.s32 %v463, %v465
        %v467 = vrot.slane %v448, %v466
        %v468 = vcombine.low %v459, %v467
        %v469 = vcombine.high %v459, %v467
        %v471 = vunpack.c.l.s4 1934713408
        %v472 = vunpack.c.0.s8 %v471
        %v473 = vlaneseq
        %v474 = vshrl.u32 %v473, 7
        %v475 = vsub.s32 %v472, %v474
        %v476 = vrot.slane %v468, %v475
        %v478 = vunpack.c.l.s4 1934713408
        %v479 = vunpack.c.0.s8 %v478
        %v480 = vlaneseq
        %v481 = vshrl.u32 %v480, 7
        %v482 = vsub.s32 %v479, %v481
        %v483 = vrot.slane %v469, %v482
        %v484 = vcombine.high %v476, 0
        %v485 = vcombine.high %v483, 0
        %v488 = vunpack.c.l.s4 1983009808
        %v489 = vunpack.c.0.s8 %v488
        %v490 = vlaneseq
        %v491 = vshrl.u32 %v490, 7
        %v492 = vsub.s32 %v489, %v491
        %v493 = vrot.slane %v445, %v492
        %v496 = vunpack.c.l.s4 1983009808
        %v497 = vunpack.c.0.s8 %v496
        %v498 = vlaneseq
        %v499 = vshrl.u32 %v498, 7
        %v500 = vsub.s32 %v497, %v499
        %v501 = vrot.slane %v451, %v500
        %v502 = vcombine.low %v493, %v501
        %v503 = vcombine.high %v493, %v501
        %v505 = vunpack.c.l.s4 1934713408
        %v506 = vunpack.c.0.s8 %v505
        %v507 = vlaneseq
        %v508 = vshrl.u32 %v507, 7
        %v509 = vsub.s32 %v506, %v508
        %v510 = vrot.slane %v502, %v509
        %v512 = vunpack.c.l.s4 1934713408
        %v513 = vunpack.c.0.s8 %v512
        %v514 = vlaneseq
        %v515 = vshrl.u32 %v514, 7
        %v516 = vsub.s32 %v513, %v515
        %v517 = vrot.slane %v503, %v516
        %v518 = vcombine.high %v510, 0
        %v519 = vcombine.high %v517, 0
        %v520 = vcombine.low %v476, %v483
        %v522 = vunpack.c.l.s4 1983009808
        %v523 = vunpack.c.0.s8 %v522
        %v524 = vlaneseq
        %v525 = vshrl.u32 %v524, 7
        %v526 = vsub.s32 %v523, %v525
        %v527 = vrot.slane %v520, %v526
        %v528 = vcombine.low %v484, %v485
        %v530 = vunpack.c.l.s4 1983009808
        %v531 = vunpack.c.0.s8 %v530
        %v532 = vlaneseq
        %v533 = vshrl.u32 %v532, 7
        %v534 = vsub.s32 %v531, %v533
        %v535 = vrot.slane %v528, %v534
        %v536 = vcombine.low %v527, %v535
        %v538 = vunpack.c.l.s4 1934713408
        %v539 = vunpack.c.0.s8 %v538
        %v540 = vlaneseq
        %v541 = vshrl.u32 %v540, 7
        %v542 = vsub.s32 %v539, %v541
        %v543 = vrot.slane %v536, %v542
        %v544 = vcombine.high %v543, 0
        %v545 = vcombine.low %v510, %v517
        %v547 = vunpack.c.l.s4 1983009808
        %v548 = vunpack.c.0.s8 %v547
        %v549 = vlaneseq
        %v550 = vshrl.u32 %v549, 7
        %v551 = vsub.s32 %v548, %v550
        %v552 = vrot.slane %v545, %v551
        %v553 = vcombine.low %v518, %v519
        %v555 = vunpack.c.l.s4 1983009808
        %v556 = vunpack.c.0.s8 %v555
        %v557 = vlaneseq
        %v558 = vshrl.u32 %v557, 7
        %v559 = vsub.s32 %v556, %v558
        %v560 = vrot.slane %v553, %v559
        %v561 = vcombine.low %v552, %v560
        %v563 = vunpack.c.l.s4 1934713408
        %v564 = vunpack.c.0.s8 %v563
        %v565 = vlaneseq
        %v566 = vshrl.u32 %v565, 7
        %v567 = vsub.s32 %v564, %v566
        %v568 = vrot.slane %v561, %v567
        %v569 = vcombine.high %v568, 0
        %v572 = vpack.i.b16 %v568, %v543
        %v574 = vshrl.u32 %v543, 16
        %v575 = vshrl.u32 %v568, 16
        %v576 = vpack.i.b16 %v575, %v574
        %v580 = vpack.i.b16 %v569, %v544
        %v582 = vshrl.u32 %v544, 16
        %v583 = vshrl.u32 %v569, 16
        %v584 = vpack.i.b16 %v583, %v582
        %vm586 = vcmask 60416
        %587 = vst.msk [vmem:[#allocation2] sm:$0xf] %vm586, %v572
        %588 = vst.msk [vmem:[#allocation2 + $0x4] sm:$0xf] %vm586, %v576
        %589 = vst.msk [vmem:[#allocation2 + $0x8] sm:$0xf] %vm586, %v580
        %590 = vst.msk [vmem:[#allocation2 + $0xc] sm:$0xf] %vm586, %v584
        %vm591 = vcmask 7168
        %592 = vst.msk [vmem:[#allocation4] sm:$0xff] %vm591, -inf
        %593 = vst.msk [vmem:[#allocation4 + $0x8] sm:$0xff] %vm591, -inf
        %594 = vst.msk [vmem:[#allocation4 + $0x10] sm:$0xff] %vm591, -inf
        %595 = vst.msk [vmem:[#allocation4 + $0x18] sm:$0xff] %vm591, -inf
        %596 = vst.msk [vmem:[#allocation5] sm:$0xff] %vm591, 0.0
        %597 = vst.msk [vmem:[#allocation5 + $0x8] sm:$0xff] %vm591, 0.0
        %598 = vst.msk [vmem:[#allocation5 + $0x10] sm:$0xff] %vm591, 0.0
        %599 = vst.msk [vmem:[#allocation5 + $0x18] sm:$0xff] %vm591, 0.0
        %vm600 = vcmask 64512
        %601 = vst.msk [vmem:[#allocation3] sm:$0xff] %vm600, 0.0
        %602 = vst.msk [vmem:[#allocation3 + $0x8] sm:$0xff] %vm600, 0.0
        %603 = vst.msk [vmem:[#allocation3 + $0x10] sm:$0xff] %vm600, 0.0
        %604 = vst.msk [vmem:[#allocation3 + $0x18] sm:$0xff] %vm600, 0.0
      $region52: #{encoder_forward.8} parent=47 // pred_fallthru
        _
      %v605 = vld [vmem:[%s398] sm:$0xf]
      %607 = vrot.lane.b32.xlu0 %v605, 120
      %v608 = vpop.permute.xlu0 %607
      %609 = vrot.lane.b32.xlu0 %v605, 112
      %v610 = vpop.permute.xlu0 %609
      %611 = vrot.lane.b32.xlu0 %v605, 104
      %v612 = vpop.permute.xlu0 %611
      %v615 = vpack.i.b16 %v608, %v605
      %v616 = vshrl.u32 %v605, 16
      %v617 = vshrl.u32 %v608, 16
      %v618 = vpack.i.b16 %v617, %v616
      %v621 = vpack.i.b16 %v612, %v610
      %v622 = vshrl.u32 %v610, 16
      %v623 = vshrl.u32 %v612, 16
      %v624 = vpack.i.b16 %v623, %v622
      %v627 = vunpack.c.l.s4 1983009808
      %v628 = vunpack.c.0.s8 %v627
      %v629 = vlaneseq
      %v630 = vshrl.u32 %v629, 7
      %v631 = vsub.s32 %v628, %v630
      %v632 = vrot.slane %v615, %v631
      %v635 = vunpack.c.l.s4 1983009808
      %v636 = vunpack.c.0.s8 %v635
      %v637 = vlaneseq
      %v638 = vshrl.u32 %v637, 7
      %v639 = vsub.s32 %v636, %v638
      %v640 = vrot.slane %v621, %v639
      %v641 = vcombine.low %v632, %v640
      %v642 = vcombine.high %v632, %v640
      %v644 = vunpack.c.l.s4 1934713408
      %v645 = vunpack.c.0.s8 %v644
      %v646 = vlaneseq
      %v647 = vshrl.u32 %v646, 7
      %v648 = vsub.s32 %v645, %v647
      %v649 = vrot.slane %v641, %v648
      %v651 = vunpack.c.l.s4 1934713408
      %v652 = vunpack.c.0.s8 %v651
      %v653 = vlaneseq
      %v654 = vshrl.u32 %v653, 7
      %v655 = vsub.s32 %v652, %v654
      %v656 = vrot.slane %v642, %v655
      %v657 = vcombine.high %v649, 0
      %v658 = vcombine.high %v656, 0
      %v661 = vunpack.c.l.s4 1983009808
      %v662 = vunpack.c.0.s8 %v661
      %v663 = vlaneseq
      %v664 = vshrl.u32 %v663, 7
      %v665 = vsub.s32 %v662, %v664
      %v666 = vrot.slane %v618, %v665
      %v669 = vunpack.c.l.s4 1983009808
      %v670 = vunpack.c.0.s8 %v669
      %v671 = vlaneseq
      %v672 = vshrl.u32 %v671, 7
      %v673 = vsub.s32 %v670, %v672
      %v674 = vrot.slane %v624, %v673
      %v675 = vcombine.low %v666, %v674
      %v676 = vcombine.high %v666, %v674
      %v678 = vunpack.c.l.s4 1934713408
      %v679 = vunpack.c.0.s8 %v678
      %v680 = vlaneseq
      %v681 = vshrl.u32 %v680, 7
      %v682 = vsub.s32 %v679, %v681
      %v683 = vrot.slane %v675, %v682
      %v685 = vunpack.c.l.s4 1934713408
      %v686 = vunpack.c.0.s8 %v685
      %v687 = vlaneseq
      %v688 = vshrl.u32 %v687, 7
      %v689 = vsub.s32 %v686, %v688
      %v690 = vrot.slane %v676, %v689
      %v691 = vcombine.high %v683, 0
      %v692 = vcombine.high %v690, 0
      %v693 = vcombine.low %v649, %v656
      %v695 = vunpack.c.l.s4 1983009808
      %v696 = vunpack.c.0.s8 %v695
      %v697 = vlaneseq
      %v698 = vshrl.u32 %v697, 7
      %v699 = vsub.s32 %v696, %v698
      %v700 = vrot.slane %v693, %v699
      %v701 = vcombine.low %v657, %v658
      %v703 = vunpack.c.l.s4 1983009808
      %v704 = vunpack.c.0.s8 %v703
      %v705 = vlaneseq
      %v706 = vshrl.u32 %v705, 7
      %v707 = vsub.s32 %v704, %v706
      %v708 = vrot.slane %v701, %v707
      %v709 = vcombine.low %v700, %v708
      %v711 = vunpack.c.l.s4 1934713408
      %v712 = vunpack.c.0.s8 %v711
      %v713 = vlaneseq
      %v714 = vshrl.u32 %v713, 7
      %v715 = vsub.s32 %v712, %v714
      %v716 = vrot.slane %v709, %v715
      %v717 = vcombine.high %v716, 0
      %v718 = vcombine.low %v683, %v690
      %v720 = vunpack.c.l.s4 1983009808
      %v721 = vunpack.c.0.s8 %v720
      %v722 = vlaneseq
      %v723 = vshrl.u32 %v722, 7
      %v724 = vsub.s32 %v721, %v723
      %v725 = vrot.slane %v718, %v724
      %v726 = vcombine.low %v691, %v692
      %v728 = vunpack.c.l.s4 1983009808
      %v729 = vunpack.c.0.s8 %v728
      %v730 = vlaneseq
      %v731 = vshrl.u32 %v730, 7
      %v732 = vsub.s32 %v729, %v731
      %v733 = vrot.slane %v726, %v732
      %v734 = vcombine.low %v725, %v733
      %v736 = vunpack.c.l.s4 1934713408
      %v737 = vunpack.c.0.s8 %v736
      %v738 = vlaneseq
      %v739 = vshrl.u32 %v738, 7
      %v740 = vsub.s32 %v737, %v739
      %v741 = vrot.slane %v734, %v740
      %v742 = vcombine.high %v741, 0
      %v745 = vpack.i.b16 %v741, %v716
      %v746 = vshrl.u32 %v716, 16
      %v747 = vshrl.u32 %v741, 16
      %v748 = vpack.i.b16 %v747, %v746
      %v751 = vpack.i.b16 %v742, %v717
      %v752 = vshrl.u32 %v717, 16
      %v753 = vshrl.u32 %v742, 16
      %v754 = vpack.i.b16 %v753, %v752
      %v755 = vld [vmem:[%s406] sm:$0xf]
      %757 = vrot.lane.b32.xlu0 %v755, 120
      %v758 = vpop.permute.xlu0 %757
      %759 = vrot.lane.b32.xlu0 %v755, 112
      %v760 = vpop.permute.xlu0 %759
      %761 = vrot.lane.b32.xlu0 %v755, 104
      %v762 = vpop.permute.xlu0 %761
      %v765 = vpack.i.b16 %v758, %v755
      %v766 = vshrl.u32 %v755, 16
      %v767 = vshrl.u32 %v758, 16
      %v768 = vpack.i.b16 %v767, %v766
      %v771 = vpack.i.b16 %v762, %v760
      %v772 = vshrl.u32 %v760, 16
      %v773 = vshrl.u32 %v762, 16
      %v774 = vpack.i.b16 %v773, %v772
      %v777 = vunpack.c.l.s4 1983009808
      %v778 = vunpack.c.0.s8 %v777
      %v779 = vlaneseq
      %v780 = vshrl.u32 %v779, 7
      %v781 = vsub.s32 %v778, %v780
      %v782 = vrot.slane %v765, %v781
      %v785 = vunpack.c.l.s4 1983009808
      %v786 = vunpack.c.0.s8 %v785
      %v787 = vlaneseq
      %v788 = vshrl.u32 %v787, 7
      %v789 = vsub.s32 %v786, %v788
      %v790 = vrot.slane %v771, %v789
      %v791 = vcombine.low %v782, %v790
      %v792 = vcombine.high %v782, %v790
      %v794 = vunpack.c.l.s4 1934713408
      %v795 = vunpack.c.0.s8 %v794
      %v796 = vlaneseq
      %v797 = vshrl.u32 %v796, 7
      %v798 = vsub.s32 %v795, %v797
      %v799 = vrot.slane %v791, %v798
      %v801 = vunpack.c.l.s4 1934713408
      %v802 = vunpack.c.0.s8 %v801
      %v803 = vlaneseq
      %v804 = vshrl.u32 %v803, 7
      %v805 = vsub.s32 %v802, %v804
      %v806 = vrot.slane %v792, %v805
      %v807 = vcombine.high %v799, 0
      %v808 = vcombine.high %v806, 0
      %v811 = vunpack.c.l.s4 1983009808
      %v812 = vunpack.c.0.s8 %v811
      %v813 = vlaneseq
      %v814 = vshrl.u32 %v813, 7
      %v815 = vsub.s32 %v812, %v814
      %v816 = vrot.slane %v768, %v815
      %v819 = vunpack.c.l.s4 1983009808
      %v820 = vunpack.c.0.s8 %v819
      %v821 = vlaneseq
      %v822 = vshrl.u32 %v821, 7
      %v823 = vsub.s32 %v820, %v822
      %v824 = vrot.slane %v774, %v823
      %v825 = vcombine.low %v816, %v824
      %v826 = vcombine.high %v816, %v824
      %v828 = vunpack.c.l.s4 1934713408
      %v829 = vunpack.c.0.s8 %v828
      %v830 = vlaneseq
      %v831 = vshrl.u32 %v830, 7
      %v832 = vsub.s32 %v829, %v831
      %v833 = vrot.slane %v825, %v832
      %v835 = vunpack.c.l.s4 1934713408
      %v836 = vunpack.c.0.s8 %v835
      %v837 = vlaneseq
      %v838 = vshrl.u32 %v837, 7
      %v839 = vsub.s32 %v836, %v838
      %v840 = vrot.slane %v826, %v839
      %v841 = vcombine.high %v833, 0
      %v842 = vcombine.high %v840, 0
      %v843 = vcombine.low %v799, %v806
      %v845 = vunpack.c.l.s4 1983009808
      %v846 = vunpack.c.0.s8 %v845
      %v847 = vlaneseq
      %v848 = vshrl.u32 %v847, 7
      %v849 = vsub.s32 %v846, %v848
      %v850 = vrot.slane %v843, %v849
      %v851 = vcombine.low %v807, %v808
      %v853 = vunpack.c.l.s4 1983009808
      %v854 = vunpack.c.0.s8 %v853
      %v855 = vlaneseq
      %v856 = vshrl.u32 %v855, 7
      %v857 = vsub.s32 %v854, %v856
      %v858 = vrot.slane %v851, %v857
      %v859 = vcombine.low %v850, %v858
      %v861 = vunpack.c.l.s4 1934713408
      %v862 = vunpack.c.0.s8 %v861
      %v863 = vlaneseq
      %v864 = vshrl.u32 %v863, 7
      %v865 = vsub.s32 %v862, %v864
      %v866 = vrot.slane %v859, %v865
      %v867 = vcombine.high %v866, 0
      %v868 = vcombine.low %v833, %v840
      %v870 = vunpack.c.l.s4 1983009808
      %v871 = vunpack.c.0.s8 %v870
      %v872 = vlaneseq
      %v873 = vshrl.u32 %v872, 7
      %v874 = vsub.s32 %v871, %v873
      %v875 = vrot.slane %v868, %v874
      %v876 = vcombine.low %v841, %v842
      %v878 = vunpack.c.l.s4 1983009808
      %v879 = vunpack.c.0.s8 %v878
      %v880 = vlaneseq
      %v881 = vshrl.u32 %v880, 7
      %v882 = vsub.s32 %v879, %v881
      %v883 = vrot.slane %v876, %v882
      %v884 = vcombine.low %v875, %v883
      %v886 = vunpack.c.l.s4 1934713408
      %v887 = vunpack.c.0.s8 %v886
      %v888 = vlaneseq
      %v889 = vshrl.u32 %v888, 7
      %v890 = vsub.s32 %v887, %v889
      %v891 = vrot.slane %v884, %v890
      %v892 = vcombine.high %v891, 0
      %v895 = vpack.i.b16 %v891, %v866
      %v896 = vshrl.u32 %v866, 16
      %v897 = vshrl.u32 %v891, 16
      %v898 = vpack.i.b16 %v897, %v896
      %v901 = vpack.i.b16 %v892, %v867
      %v902 = vshrl.u32 %v867, 16
      %v903 = vshrl.u32 %v892, 16
      %v904 = vpack.i.b16 %v903, %v902
      %v905 = vld [vmem:[#allocation2] sm:$0xf]
      %v906 = vld [vmem:[#allocation2 + $0x4] sm:$0xf]
      %v907 = vld [vmem:[#allocation2 + $0x8] sm:$0xf]
      %v908 = vld [vmem:[#allocation2 + $0xc] sm:$0xf]
      %v909 = vld [vmem:[%s412] sm:$0x1]
      %v911 = vlaneseq
      %v912 = vshrl.u32 %v911, 7
      %v913 = vsub.s32 0, %v912
      %v914 = vrot.slane %v909, %v913
      %vm916 = vcmask 64512
      %v918 = vsel %vm916, %v905, 0
      %v921 = vsel %vm916, %v745, 0
      %923 = vmatprep.subr.bf16.mxu0 0
      %924 = vmatpush1.bf16.xpose.msra.mxu0 0
      %925 = vmatprep.subr.bf16.mxu0 0
      %926 = vmatpush1.bf16.xpose.msra.mxu0 0
      %927 = vmatprep.subr.bf16.mxu0 0
      %928 = vmatpush1.bf16.xpose.msra.mxu0 0
      %929 = vmatprep.subr.bf16.mxu0 0
      %930 = vmatpush1.bf16.xpose.msra.mxu0 0
      %931 = vmatprep.subr.bf16.mxu0 0
      %932 = vmatpush1.bf16.xpose.msra.mxu0 0
      %933 = vmatprep.subr.bf16.mxu0 0
      %934 = vmatpush1.bf16.xpose.msra.mxu0 0
      %935 = vmatprep.subr.bf16.mxu0 0
      %936 = vmatpush1.bf16.xpose.msra.mxu0 0
      %937 = vmatprep.subr.bf16.mxu0 0
      %938 = vmatpush1.bf16.xpose.msra.mxu0 %v921
      %939 = vmatprep.subr.bf16.mxu0 0
      %940 = vmatpush2.bf16.xpose.msra.mxu0 0
      %941 = vmatprep.subr.bf16.mxu0 0
      %942 = vmatpush2.bf16.xpose.msra.mxu0 0
      %943 = vmatprep.subr.bf16.mxu0 0
      %944 = vmatpush2.bf16.xpose.msra.mxu0 0
      %945 = vmatprep.subr.bf16.mxu0 0
      %946 = vmatpush2.bf16.xpose.msra.mxu0 0
      %947 = vmatprep.subr.bf16.mxu0 0
      %948 = vmatpush2.bf16.xpose.msra.mxu0 0
      %949 = vmatprep.subr.bf16.mxu0 0
      %950 = vmatpush2.bf16.xpose.msra.mxu0 0
      %951 = vmatprep.subr.bf16.mxu0 0
      %952 = vmatpush2.bf16.xpose.msra.mxu0 0
      %953 = vmatprep.subr.bf16.mxu0 0
      %954 = vmatpush2.bf16.xpose.msra.mxu0 0
      %955 = vmatprep.mubr.bf16.mxu0 0
      %956 = vmatmul.mubr.bf16.gmra.mxu0 %v918
      %v957 = vpop.f32.mrf.mxu0
      %v958 = vadd.f32 %v914, %v957
      %v959 = vpop.f32.mrf.mxu0
      %v960 = vpop.f32.mrf.mxu0
      %v961 = vpop.f32.mrf.mxu0
      %962 = vdwg.mxu0
      %v964 = vsel %vm916, %v906, 0
      %v967 = vsel %vm916, %v748, 0
      %969 = vmatprep.subr.bf16.mxu0 0
      %970 = vmatpush1.bf16.xpose.msra.mxu0 0
      %971 = vmatprep.subr.bf16.mxu0 0
      %972 = vmatpush1.bf16.xpose.msra.mxu0 0
      %973 = vmatprep.subr.bf16.mxu0 0
      %974 = vmatpush1.bf16.xpose.msra.mxu0 0
      %975 = vmatprep.subr.bf16.mxu0 0
      %976 = vmatpush1.bf16.xpose.msra.mxu0 0
      %977 = vmatprep.subr.bf16.mxu0 0
      %978 = vmatpush1.bf16.xpose.msra.mxu0 0
      %979 = vmatprep.subr.bf16.mxu0 0
      %980 = vmatpush1.bf16.xpose.msra.mxu0 0
      %981 = vmatprep.subr.bf16.mxu0 0
      %982 = vmatpush1.bf16.xpose.msra.mxu0 0
      %983 = vmatprep.subr.bf16.mxu0 0
      %984 = vmatpush1.bf16.xpose.msra.mxu0 %v967
      %985 = vmatprep.subr.bf16.mxu0 0
      %986 = vmatpush2.bf16.xpose.msra.mxu0 0
      %987 = vmatprep.subr.bf16.mxu0 0
      %988 = vmatpush2.bf16.xpose.msra.mxu0 0
      %989 = vmatprep.subr.bf16.mxu0 0
      %990 = vmatpush2.bf16.xpose.msra.mxu0 0
      %991 = vmatprep.subr.bf16.mxu0 0
      %992 = vmatpush2.bf16.xpose.msra.mxu0 0
      %993 = vmatprep.subr.bf16.mxu0 0
      %994 = vmatpush2.bf16.xpose.msra.mxu0 0
      %995 = vmatprep.subr.bf16.mxu0 0
      %996 = vmatpush2.bf16.xpose.msra.mxu0 0
      %997 = vmatprep.subr.bf16.mxu0 0
      %998 = vmatpush2.bf16.xpose.msra.mxu0 0
      %999 = vmatprep.subr.bf16.mxu0 0
      %1000 = vmatpush2.bf16.xpose.msra.mxu0 0
      %1001 = vmatprep.mubr.bf16.mxu0 0
      %1002 = vmatmul.mubr.bf16.gmra.mxu0 %v964
      %v1003 = vpop.f32.mrf.mxu0
      %v1004 = vadd.f32 %v914, %v1003
      %v1005 = vpop.f32.mrf.mxu0
      %v1006 = vpop.f32.mrf.mxu0
      %v1007 = vpop.f32.mrf.mxu0
      %1008 = vdwg.mxu0
      %v1010 = vsel %vm916, %v907, 0
      %v1013 = vsel %vm916, %v751, 0
      %1015 = vmatprep.subr.bf16.mxu0 0
      %1016 = vmatpush1.bf16.xpose.msra.mxu0 0
      %1017 = vmatprep.subr.bf16.mxu0 0
      %1018 = vmatpush1.bf16.xpose.msra.mxu0 0
      %1019 = vmatprep.subr.bf16.mxu0 0
      %1020 = vmatpush1.bf16.xpose.msra.mxu0 0
      %1021 = vmatprep.subr.bf16.mxu0 0
      %1022 = vmatpush1.bf16.xpose.msra.mxu0 0
      %1023 = vmatprep.subr.bf16.mxu0 0
      %1024 = vmatpush1.bf16.xpose.msra.mxu0 0
      %1025 = vmatprep.subr.bf16.mxu0 0
      %1026 = vmatpush1.bf16.xpose.msra.mxu0 0
      %1027 = vmatprep.subr.bf16.mxu0 0
      %1028 = vmatpush1.bf16.xpose.msra.mxu0 0
      %1029 = vmatprep.subr.bf16.mxu0 0
      %1030 = vmatpush1.bf16.xpose.msra.mxu0 %v1013
      %1031 = vmatprep.subr.bf16.mxu0 0
      %1032 = vmatpush2.bf16.xpose.msra.mxu0 0
      %1033 = vmatprep.subr.bf16.mxu0 0
      %1034 = vmatpush2.bf16.xpose.msra.mxu0 0
      %1035 = vmatprep.subr.bf16.mxu0 0
      %1036 = vmatpush2.bf16.xpose.msra.mxu0 0
      %1037 = vmatprep.subr.bf16.mxu0 0
      %1038 = vmatpush2.bf16.xpose.msra.mxu0 0
      %1039 = vmatprep.subr.bf16.mxu0 0
      %1040 = vmatpush2.bf16.xpose.msra.mxu0 0
      %1041 = vmatprep.subr.bf16.mxu0 0
      %1042 = vmatpush2.bf16.xpose.msra.mxu0 0
      %1043 = vmatprep.subr.bf16.mxu0 0
      %1044 = vmatpush2.bf16.xpose.msra.mxu0 0
      %1045 = vmatprep.subr.bf16.mxu0 0
      %1046 = vmatpush2.bf16.xpose.msra.mxu0 0
      %1047 = vmatprep.mubr.bf16.mxu0 0
      %1048 = vmatmul.mubr.bf16.gmra.mxu0 %v1010
      %v1049 = vpop.f32.mrf.mxu0
      %v1050 = vadd.f32 %v914, %v1049
      %v1051 = vpop.f32.mrf.mxu0
      %v1052 = vpop.f32.mrf.mxu0
      %v1053 = vpop.f32.mrf.mxu0
      %1054 = vdwg.mxu0
      %v1056 = vsel %vm916, %v908, 0
      %v1059 = vsel %vm916, %v754, 0
      %1061 = vmatprep.subr.bf16.mxu0 0
      %1062 = vmatpush1.bf16.xpose.msra.mxu0 0
      %1063 = vmatprep.subr.bf16.mxu0 0
      %1064 = vmatpush1.bf16.xpose.msra.mxu0 0
      %1065 = vmatprep.subr.bf16.mxu0 0
      %1066 = vmatpush1.bf16.xpose.msra.mxu0 0
      %1067 = vmatprep.subr.bf16.mxu0 0
      %1068 = vmatpush1.bf16.xpose.msra.mxu0 0
      %1069 = vmatprep.subr.bf16.mxu0 0
      %1070 = vmatpush1.bf16.xpose.msra.mxu0 0
      %1071 = vmatprep.subr.bf16.mxu0 0
      %1072 = vmatpush1.bf16.xpose.msra.mxu0 0
      %1073 = vmatprep.subr.bf16.mxu0 0
      %1074 = vmatpush1.bf16.xpose.msra.mxu0 0
      %1075 = vmatprep.subr.bf16.mxu0 0
      %1076 = vmatpush1.bf16.xpose.msra.mxu0 %v1059
      %1077 = vmatprep.subr.bf16.mxu0 0
      %1078 = vmatpush2.bf16.xpose.msra.mxu0 0
      %1079 = vmatprep.subr.bf16.mxu0 0
      %1080 = vmatpush2.bf16.xpose.msra.mxu0 0
      %1081 = vmatprep.subr.bf16.mxu0 0
      %1082 = vmatpush2.bf16.xpose.msra.mxu0 0
      %1083 = vmatprep.subr.bf16.mxu0 0
      %1084 = vmatpush2.bf16.xpose.msra.mxu0 0
      %1085 = vmatprep.subr.bf16.mxu0 0
      %1086 = vmatpush2.bf16.xpose.msra.mxu0 0
      %1087 = vmatprep.subr.bf16.mxu0 0
      %1088 = vmatpush2.bf16.xpose.msra.mxu0 0
      %1089 = vmatprep.subr.bf16.mxu0 0
      %1090 = vmatpush2.bf16.xpose.msra.mxu0 0
      %1091 = vmatprep.subr.bf16.mxu0 0
      %1092 = vmatpush2.bf16.xpose.msra.mxu0 0
      %1093 = vmatprep.mubr.bf16.mxu0 0
      %1094 = vmatmul.mubr.bf16.gmra.mxu0 %v1056
      %v1095 = vpop.f32.mrf.mxu0
      %v1096 = vadd.f32 %v914, %v1095
      %v1097 = vpop.f32.mrf.mxu0
      %v1098 = vpop.f32.mrf.mxu0
      %v1099 = vpop.f32.mrf.mxu0
      %1100 = vdwg.mxu0
      %v1101 = vld [vmem:[#allocation4] sm:$0xff]
      %v1102 = vld [vmem:[#allocation4 + $0x8] sm:$0xff]
      %v1103 = vld [vmem:[#allocation4 + $0x10] sm:$0xff]
      %v1104 = vld [vmem:[#allocation4 + $0x18] sm:$0xff]
      %v1105 = vsel %vm916, %v958, -inf
      %1106 = vmax.xlane.f32.xlu0 %v1105
      %v1107 = vpop.xlane.xlu0 %1106
      %v1108 = vsel %vm916, %v1004, -inf
      %1109 = vmax.xlane.f32.xlu0 %v1108
      %v1110 = vpop.xlane.xlu0 %1109
      %v1111 = vsel %vm916, %v1050, -inf
      %1112 = vmax.xlane.f32.xlu0 %v1111
      %v1113 = vpop.xlane.xlu0 %1112
      %v1114 = vsel %vm916, %v1096, -inf
      %1115 = vmax.xlane.f32.xlu0 %v1114
      %v1116 = vpop.xlane.xlu0 %1115
      %v1117 = vmax.f32 %v1101, %v1107
      %v1118 = vmax.f32 %v1102, %v1110
      %v1119 = vmax.f32 %v1103, %v1113
      %v1120 = vmax.f32 %v1104, %v1116
      %v1121 = vsub.f32 %v1101, %v1117
      %v1122 = vsub.f32 %v1102, %v1118
      %v1123 = vsub.f32 %v1103, %v1119
      %v1124 = vsub.f32 %v1104, %v1120
      %v1125 = vmul.f32 %v1121, 1.442695
      %v1126 = vpow.pop %v1125
      %v1127 = vmul.f32 %v1122, 1.442695
      %v1128 = vpow.pop %v1127
      %v1129 = vmul.f32 %v1123, 1.442695
      %v1130 = vpow.pop %v1129
      %v1131 = vmul.f32 %v1124, 1.442695
      %v1132 = vpow.pop %v1131
      %1134 = vset.pattern.permute.xlu0 0
      %1135 = vperm.xlu0 %1134, %v1117
      %v1136 = vpop.permute.xlu0 %1135
      %1139 = vset.pattern.permute.xlu0 0
      %1140 = vperm.xlu0 %1139, %v1118
      %v1141 = vpop.permute.xlu0 %1140
      %1144 = vset.pattern.permute.xlu0 0
      %1145 = vperm.xlu0 %1144, %v1119
      %v1146 = vpop.permute.xlu0 %1145
      %1149 = vset.pattern.permute.xlu0 0
      %1150 = vperm.xlu0 %1149, %v1120
      %v1151 = vpop.permute.xlu0 %1150
      %v1153 = vsub.f32 %v958, %v1136
      %v1154 = vsub.f32 %v1004, %v1141
      %v1155 = vsub.f32 %v1050, %v1146
      %v1156 = vsub.f32 %v1096, %v1151
      %v1157 = vmul.f32 %v1153, 1.442695
      %v1158 = vpow.pop %v1157
      %v1159 = vmul.f32 %v1154, 1.442695
      %v1160 = vpow.pop %v1159
      %v1161 = vmul.f32 %v1155, 1.442695
      %v1162 = vpow.pop %v1161
      %v1163 = vmul.f32 %v1156, 1.442695
      %v1164 = vpow.pop %v1163
      %v1165 = vld [vmem:[#allocation5] sm:$0xff]
      %v1166 = vld [vmem:[#allocation5 + $0x8] sm:$0xff]
      %v1167 = vld [vmem:[#allocation5 + $0x10] sm:$0xff]
      %v1168 = vld [vmem:[#allocation5 + $0x18] sm:$0xff]
      %v1169 = vmul.f32 %v1126, %v1165
      %v1170 = vmul.f32 %v1128, %v1166
      %v1171 = vmul.f32 %v1130, %v1167
      %v1172 = vmul.f32 %v1132, %v1168
      %v1173 = vsel %vm916, %v1158, 0.0
      %1174 = vadd.xlane.f32.xlu0 %v1173
      %v1175 = vpop.xlane.xlu0 %1174
      %v1176 = vsel %vm916, %v1160, 0.0
      %1177 = vadd.xlane.f32.xlu0 %v1176
      %v1178 = vpop.xlane.xlu0 %1177
      %v1179 = vsel %vm916, %v1162, 0.0
      %1180 = vadd.xlane.f32.xlu0 %v1179
      %v1181 = vpop.xlane.xlu0 %1180
      %v1182 = vsel %vm916, %v1164, 0.0
      %1183 = vadd.xlane.f32.xlu0 %v1182
      %v1184 = vpop.xlane.xlu0 %1183
      %v1185 = vadd.f32 %v1169, %v1175
      %v1186 = vadd.f32 %v1170, %v1178
      %v1187 = vadd.f32 %v1171, %v1181
      %v1188 = vadd.f32 %v1172, %v1184
      %vm1189 = vcmask 7168
      %1190 = vst.msk [vmem:[#allocation5] sm:$0xff] %vm1189, %v1185
      %1191 = vst.msk [vmem:[#allocation5 + $0x8] sm:$0xff] %vm1189, %v1186
      %1192 = vst.msk [vmem:[#allocation5 + $0x10] sm:$0xff] %vm1189, %v1187
      %1193 = vst.msk [vmem:[#allocation5 + $0x18] sm:$0xff] %vm1189, %v1188
      %v1194 = vpack.c.bf16 %v1158, %v1158
      %v1195 = vpack.c.bf16 %v1160, %v1160
      %v1196 = vpack.c.bf16 %v1162, %v1162
      %v1197 = vpack.c.bf16 %v1164, %v1164
      %v1199 = vsel %vm916, %v1194, 0
      %vm1201 = vcmask 1043456
      %v1203 = vsel %vm1201, %v895, 0
      %1205 = vmatprep.subr.bf16.mxu0 0
      %1206 = vmatpush1.bf16.msra.mxu0 0
      %1207 = vmatprep.subr.bf16.mxu0 0
      %1208 = vmatpush1.bf16.msra.mxu0 0
      %1209 = vmatprep.subr.bf16.mxu0 0
      %1210 = vmatpush1.bf16.msra.mxu0 0
      %1211 = vmatprep.subr.bf16.mxu0 0
      %1212 = vmatpush1.bf16.msra.mxu0 0
      %1213 = vmatprep.subr.bf16.mxu0 0
      %1214 = vmatpush1.bf16.msra.mxu0 0
      %1215 = vmatprep.subr.bf16.mxu0 0
      %1216 = vmatpush1.bf16.msra.mxu0 0
      %1217 = vmatprep.subr.bf16.mxu0 0
      %1218 = vmatpush1.bf16.msra.mxu0 0
      %1219 = vmatprep.subr.bf16.mxu0 0
      %1220 = vmatpush1.bf16.msra.mxu0 %v1203
      %1221 = vmatprep.subr.bf16.mxu0 0
      %1222 = vmatpush2.bf16.msra.mxu0 0
      %1223 = vmatprep.subr.bf16.mxu0 0
      %1224 = vmatpush2.bf16.msra.mxu0 0
      %1225 = vmatprep.subr.bf16.mxu0 0
      %1226 = vmatpush2.bf16.msra.mxu0 0
      %1227 = vmatprep.subr.bf16.mxu0 0
      %1228 = vmatpush2.bf16.msra.mxu0 0
      %1229 = vmatprep.subr.bf16.mxu0 0
      %1230 = vmatpush2.bf16.msra.mxu0 0
      %1231 = vmatprep.subr.bf16.mxu0 0
      %1232 = vmatpush2.bf16.msra.mxu0 0
      %1233 = vmatprep.subr.bf16.mxu0 0
      %1234 = vmatpush2.bf16.msra.mxu0 0
      %1235 = vmatprep.subr.bf16.mxu0 0
      %1236 = vmatpush2.bf16.msra.mxu0 0
      %1237 = vmatprep.mubr.bf16.mxu0 0
      %1238 = vmatmul.mubr.bf16.gmra.mxu0 %v1199
      %v1239 = vpop.f32.mrf.mxu0
      %v1240 = vadd.f32 0.0, %v1239
      %v1241 = vpop.f32.mrf.mxu0
      %v1242 = vpop.f32.mrf.mxu0
      %v1243 = vpop.f32.mrf.mxu0
      %1244 = vdwg.mxu0
      %v1246 = vsel %vm916, %v1195, 0
      %v1249 = vsel %vm1201, %v898, 0
      %1251 = vmatprep.subr.bf16.mxu0 0
      %1252 = vmatpush1.bf16.msra.mxu0 0
      %1253 = vmatprep.subr.bf16.mxu0 0
      %1254 = vmatpush1.bf16.msra.mxu0 0
      %1255 = vmatprep.subr.bf16.mxu0 0
      %1256 = vmatpush1.bf16.msra.mxu0 0
      %1257 = vmatprep.subr.bf16.mxu0 0
      %1258 = vmatpush1.bf16.msra.mxu0 0
      %1259 = vmatprep.subr.bf16.mxu0 0
      %1260 = vmatpush1.bf16.msra.mxu0 0
      %1261 = vmatprep.subr.bf16.mxu0 0
      %1262 = vmatpush1.bf16.msra.mxu0 0
      %1263 = vmatprep.subr.bf16.mxu0 0
      %1264 = vmatpush1.bf16.msra.mxu0 0
      %1265 = vmatprep.subr.bf16.mxu0 0
      %1266 = vmatpush1.bf16.msra.mxu0 %v1249
      %1267 = vmatprep.subr.bf16.mxu0 0
      %1268 = vmatpush2.bf16.msra.mxu0 0
      %1269 = vmatprep.subr.bf16.mxu0 0
      %1270 = vmatpush2.bf16.msra.mxu0 0
      %1271 = vmatprep.subr.bf16.mxu0 0
      %1272 = vmatpush2.bf16.msra.mxu0 0
      %1273 = vmatprep.subr.bf16.mxu0 0
      %1274 = vmatpush2.bf16.msra.mxu0 0
      %1275 = vmatprep.subr.bf16.mxu0 0
      %1276 = vmatpush2.bf16.msra.mxu0 0
      %1277 = vmatprep.subr.bf16.mxu0 0
      %1278 = vmatpush2.bf16.msra.mxu0 0
      %1279 = vmatprep.subr.bf16.mxu0 0
      %1280 = vmatpush2.bf16.msra.mxu0 0
      %1281 = vmatprep.subr.bf16.mxu0 0
      %1282 = vmatpush2.bf16.msra.mxu0 0
      %1283 = vmatprep.mubr.bf16.mxu0 0
      %1284 = vmatmul.mubr.bf16.gmra.mxu0 %v1246
      %v1285 = vpop.f32.mrf.mxu0
      %v1286 = vadd.f32 0.0, %v1285
      %v1287 = vpop.f32.mrf.mxu0
      %v1288 = vpop.f32.mrf.mxu0
      %v1289 = vpop.f32.mrf.mxu0
      %1290 = vdwg.mxu0
      %v1292 = vsel %vm916, %v1196, 0
      %v1295 = vsel %vm1201, %v901, 0
      %1297 = vmatprep.subr.bf16.mxu0 0
      %1298 = vmatpush1.bf16.msra.mxu0 0
      %1299 = vmatprep.subr.bf16.mxu0 0
      %1300 = vmatpush1.bf16.msra.mxu0 0
      %1301 = vmatprep.subr.bf16.mxu0 0
      %1302 = vmatpush1.bf16.msra.mxu0 0
      %1303 = vmatprep.subr.bf16.mxu0 0
      %1304 = vmatpush1.bf16.msra.mxu0 0
      %1305 = vmatprep.subr.bf16.mxu0 0
      %1306 = vmatpush1.bf16.msra.mxu0 0
      %1307 = vmatprep.subr.bf16.mxu0 0
      %1308 = vmatpush1.bf16.msra.mxu0 0
      %1309 = vmatprep.subr.bf16.mxu0 0
      %1310 = vmatpush1.bf16.msra.mxu0 0
      %1311 = vmatprep.subr.bf16.mxu0 0
      %1312 = vmatpush1.bf16.msra.mxu0 %v1295
      %1313 = vmatprep.subr.bf16.mxu0 0
      %1314 = vmatpush2.bf16.msra.mxu0 0
      %1315 = vmatprep.subr.bf16.mxu0 0
      %1316 = vmatpush2.bf16.msra.mxu0 0
      %1317 = vmatprep.subr.bf16.mxu0 0
      %1318 = vmatpush2.bf16.msra.mxu0 0
      %1319 = vmatprep.subr.bf16.mxu0 0
      %1320 = vmatpush2.bf16.msra.mxu0 0
      %1321 = vmatprep.subr.bf16.mxu0 0
      %1322 = vmatpush2.bf16.msra.mxu0 0
      %1323 = vmatprep.subr.bf16.mxu0 0
      %1324 = vmatpush2.bf16.msra.mxu0 0
      %1325 = vmatprep.subr.bf16.mxu0 0
      %1326 = vmatpush2.bf16.msra.mxu0 0
      %1327 = vmatprep.subr.bf16.mxu0 0
      %1328 = vmatpush2.bf16.msra.mxu0 0
      %1329 = vmatprep.mubr.bf16.mxu0 0
      %1330 = vmatmul.mubr.bf16.gmra.mxu0 %v1292
      %v1331 = vpop.f32.mrf.mxu0
      %v1332 = vadd.f32 0.0, %v1331
      %v1333 = vpop.f32.mrf.mxu0
      %v1334 = vpop.f32.mrf.mxu0
      %v1335 = vpop.f32.mrf.mxu0
      %1336 = vdwg.mxu0
      %v1338 = vsel %vm916, %v1197, 0
      %v1341 = vsel %vm1201, %v904, 0
      %1343 = vmatprep.subr.bf16.mxu0 0
      %1344 = vmatpush1.bf16.msra.mxu0 0
      %1345 = vmatprep.subr.bf16.mxu0 0
      %1346 = vmatpush1.bf16.msra.mxu0 0
      %1347 = vmatprep.subr.bf16.mxu0 0
      %1348 = vmatpush1.bf16.msra.mxu0 0
      %1349 = vmatprep.subr.bf16.mxu0 0
      %1350 = vmatpush1.bf16.msra.mxu0 0
      %1351 = vmatprep.subr.bf16.mxu0 0
      %1352 = vmatpush1.bf16.msra.mxu0 0
      %1353 = vmatprep.subr.bf16.mxu0 0
      %1354 = vmatpush1.bf16.msra.mxu0 0
      %1355 = vmatprep.subr.bf16.mxu0 0
      %1356 = vmatpush1.bf16.msra.mxu0 0
      %1357 = vmatprep.subr.bf16.mxu0 0
      %1358 = vmatpush1.bf16.msra.mxu0 %v1341
      %1359 = vmatprep.subr.bf16.mxu0 0
      %1360 = vmatpush2.bf16.msra.mxu0 0
      %1361 = vmatprep.subr.bf16.mxu0 0
      %1362 = vmatpush2.bf16.msra.mxu0 0
      %1363 = vmatprep.subr.bf16.mxu0 0
      %1364 = vmatpush2.bf16.msra.mxu0 0
      %1365 = vmatprep.subr.bf16.mxu0 0
      %1366 = vmatpush2.bf16.msra.mxu0 0
      %1367 = vmatprep.subr.bf16.mxu0 0
      %1368 = vmatpush2.bf16.msra.mxu0 0
      %1369 = vmatprep.subr.bf16.mxu0 0
      %1370 = vmatpush2.bf16.msra.mxu0 0
      %1371 = vmatprep.subr.bf16.mxu0 0
      %1372 = vmatpush2.bf16.msra.mxu0 0
      %1373 = vmatprep.subr.bf16.mxu0 0
      %1374 = vmatpush2.bf16.msra.mxu0 0
      %1375 = vmatprep.mubr.bf16.mxu0 0
      %1376 = vmatmul.mubr.bf16.gmra.mxu0 %v1338
      %v1377 = vpop.f32.mrf.mxu0
      %v1378 = vadd.f32 0.0, %v1377
      %v1379 = vpop.f32.mrf.mxu0
      %v1380 = vpop.f32.mrf.mxu0
      %v1381 = vpop.f32.mrf.mxu0
      %1382 = vdwg.mxu0
      %v1383 = vld [vmem:[#allocation3] sm:$0xff]
      %v1384 = vld [vmem:[#allocation3 + $0x8] sm:$0xff]
      %v1385 = vld [vmem:[#allocation3 + $0x10] sm:$0xff]
      %v1386 = vld [vmem:[#allocation3 + $0x18] sm:$0xff]
      %1388 = vset.pattern.permute.xlu0 0
      %1389 = vperm.xlu0 %1388, %v1126
      %v1390 = vpop.permute.xlu0 %1389
      %1393 = vset.pattern.permute.xlu0 0
      %1394 = vperm.xlu0 %1393, %v1128
      %v1395 = vpop.permute.xlu0 %1394
      %1398 = vset.pattern.permute.xlu0 0
      %1399 = vperm.xlu0 %1398, %v1130
      %v1400 = vpop.permute.xlu0 %1399
      %1403 = vset.pattern.permute.xlu0 0
      %1404 = vperm.xlu0 %1403, %v1132
      %v1405 = vpop.permute.xlu0 %1404
      %v1407 = vmul.f32 %v1390, %v1383
      %v1408 = vmul.f32 %v1395, %v1384
      %v1409 = vmul.f32 %v1400, %v1385
      %v1410 = vmul.f32 %v1405, %v1386
      %v1411 = vadd.f32 %v1407, %v1240
      %v1412 = vadd.f32 %v1408, %v1286
      %v1413 = vadd.f32 %v1409, %v1332
      %v1414 = vadd.f32 %v1410, %v1378
      %1415 = vst.msk [vmem:[#allocation3] sm:$0xff] %vm916, %v1411
      %1416 = vst.msk [vmem:[#allocation3 + $0x8] sm:$0xff] %vm916, %v1412
      %1417 = vst.msk [vmem:[#allocation3 + $0x10] sm:$0xff] %vm916, %v1413
      %1418 = vst.msk [vmem:[#allocation3 + $0x18] sm:$0xff] %vm916, %v1414
      %1419 = vst.msk [vmem:[#allocation4] sm:$0xff] %vm1189, %v1117
      %1420 = vst.msk [vmem:[#allocation4 + $0x8] sm:$0xff] %vm1189, %v1118
      %1421 = vst.msk [vmem:[#allocation4 + $0x10] sm:$0xff] %vm1189, %v1119
      %1422 = vst.msk [vmem:[#allocation4 + $0x18] sm:$0xff] %vm1189, %v1120
      // Predicated region
      $region53: #{encoder_forward.8} parent=47 // pred_check
        %p1423 = pneg %p428
      $region54: #{encoder_forward.8} parent=47 // pred_check_branch
        %1425 = sbr.rel (%p1423) target = $region56
      $region55: #{encoder_forward.8} parent=47 // pred_region
        %v1426 = vld [vmem:[#allocation3] sm:$0xff]
        %v1427 = vld [vmem:[#allocation3 + $0x8] sm:$0xff]
        %v1428 = vld [vmem:[#allocation3 + $0x10] sm:$0xff]
        %v1429 = vld [vmem:[#allocation3 + $0x18] sm:$0xff]
        %v1430 = vld [vmem:[#allocation5] sm:$0xff]
        %v1431 = vld [vmem:[#allocation5 + $0x8] sm:$0xff]
        %v1432 = vld [vmem:[#allocation5 + $0x10] sm:$0xff]
        %v1433 = vld [vmem:[#allocation5 + $0x18] sm:$0xff]
        %v1434 = vrcp.pop %v1430
        %v1435 = vrcp.pop %v1431
        %v1436 = vrcp.pop %v1432
        %v1437 = vrcp.pop %v1433
        %1439 = vset.pattern.permute.xlu0 0
        %1440 = vperm.xlu0 %1439, %v1434
        %v1441 = vpop.permute.xlu0 %1440
        %1444 = vset.pattern.permute.xlu0 0
        %1445 = vperm.xlu0 %1444, %v1435
        %v1446 = vpop.permute.xlu0 %1445
        %1449 = vset.pattern.permute.xlu0 0
        %1450 = vperm.xlu0 %1449, %v1436
        %v1451 = vpop.permute.xlu0 %1450
        %1454 = vset.pattern.permute.xlu0 0
        %1455 = vperm.xlu0 %1454, %v1437
        %v1456 = vpop.permute.xlu0 %1455
        %v1458 = vmul.f32 %v1426, %v1441
        %v1459 = vmul.f32 %v1427, %v1446
        %v1460 = vmul.f32 %v1428, %v1451
        %v1461 = vmul.f32 %v1429, %v1456
        %v1462 = vcombine.low %v1458, %v1460
        %v1463 = vcombine.high %v1458, %v1460
        %v1465 = vunpack.c.l.s4 1983009808
        %v1466 = vunpack.c.0.s8 %v1465
        %v1467 = vlaneseq
        %v1468 = vshrl.u32 %v1467, 7
        %v1469 = vsub.s32 %v1466, %v1468
        %v1470 = vrot.slane %v1462, %v1469
        %v1472 = vunpack.c.l.s4 1983009808
        %v1473 = vunpack.c.0.s8 %v1472
        %v1474 = vlaneseq
        %v1475 = vshrl.u32 %v1474, 7
        %v1476 = vsub.s32 %v1473, %v1475
        %v1477 = vrot.slane %v1463, %v1476
        %v1478 = vcombine.low %v1459, %v1461
        %v1479 = vcombine.high %v1459, %v1461
        %v1481 = vunpack.c.l.s4 1983009808
        %v1482 = vunpack.c.0.s8 %v1481
        %v1483 = vlaneseq
        %v1484 = vshrl.u32 %v1483, 7
        %v1485 = vsub.s32 %v1482, %v1484
        %v1486 = vrot.slane %v1478, %v1485
        %v1488 = vunpack.c.l.s4 1983009808
        %v1489 = vunpack.c.0.s8 %v1488
        %v1490 = vlaneseq
        %v1491 = vshrl.u32 %v1490, 7
        %v1492 = vsub.s32 %v1489, %v1491
        %v1493 = vrot.slane %v1479, %v1492
        %v1494 = vcombine.low %v1470, %v1486
        %v1495 = vcombine.high %v1470, %v1486
        %v1497 = vunpack.c.l.s4 1934713408
        %v1498 = vunpack.c.0.s8 %v1497
        %v1499 = vlaneseq
        %v1500 = vshrl.u32 %v1499, 7
        %v1501 = vsub.s32 %v1498, %v1500
        %v1502 = vrot.slane %v1494, %v1501
        %v1504 = vunpack.c.l.s4 1934713408
        %v1505 = vunpack.c.0.s8 %v1504
        %v1506 = vlaneseq
        %v1507 = vshrl.u32 %v1506, 7
        %v1508 = vsub.s32 %v1505, %v1507
        %v1509 = vrot.slane %v1495, %v1508
        %v1510 = vcombine.low %v1477, %v1493
        %v1511 = vcombine.high %v1477, %v1493
        %v1513 = vunpack.c.l.s4 1934713408
        %v1514 = vunpack.c.0.s8 %v1513
        %v1515 = vlaneseq
        %v1516 = vshrl.u32 %v1515, 7
        %v1517 = vsub.s32 %v1514, %v1516
        %v1518 = vrot.slane %v1510, %v1517
        %v1520 = vunpack.c.l.s4 1934713408
        %v1521 = vunpack.c.0.s8 %v1520
        %v1522 = vlaneseq
        %v1523 = vshrl.u32 %v1522, 7
        %v1524 = vsub.s32 %v1521, %v1523
        %v1525 = vrot.slane %v1511, %v1524
        %v1526 = vcombine.high %v1502, 0.0
        %v1527 = vcombine.high %v1509, 0.0
        %v1528 = vcombine.high %v1518, 0.0
        %v1529 = vcombine.high %v1525, 0.0
        %v1530 = vcombine.low %v1502, %v1509
        %v1532 = vunpack.c.l.s4 1983009808
        %v1533 = vunpack.c.0.s8 %v1532
        %v1534 = vlaneseq
        %v1535 = vshrl.u32 %v1534, 7
        %v1536 = vsub.s32 %v1533, %v1535
        %v1537 = vrot.slane %v1530, %v1536
        %v1538 = vcombine.low %v1526, %v1527
        %v1540 = vunpack.c.l.s4 1983009808
        %v1541 = vunpack.c.0.s8 %v1540
        %v1542 = vlaneseq
        %v1543 = vshrl.u32 %v1542, 7
        %v1544 = vsub.s32 %v1541, %v1543
        %v1545 = vrot.slane %v1538, %v1544
        %v1546 = vcombine.low %v1518, %v1525
        %v1548 = vunpack.c.l.s4 1983009808
        %v1549 = vunpack.c.0.s8 %v1548
        %v1550 = vlaneseq
        %v1551 = vshrl.u32 %v1550, 7
        %v1552 = vsub.s32 %v1549, %v1551
        %v1553 = vrot.slane %v1546, %v1552
        %v1554 = vcombine.low %v1528, %v1529
        %v1556 = vunpack.c.l.s4 1983009808
        %v1557 = vunpack.c.0.s8 %v1556
        %v1558 = vlaneseq
        %v1559 = vshrl.u32 %v1558, 7
        %v1560 = vsub.s32 %v1557, %v1559
        %v1561 = vrot.slane %v1554, %v1560
        %v1562 = vcombine.low %v1537, %v1545
        %v1563 = vcombine.high %v1537, %v1545
        %v1565 = vunpack.c.l.s4 1934713408
        %v1566 = vunpack.c.0.s8 %v1565
        %v1567 = vlaneseq
        %v1568 = vshrl.u32 %v1567, 7
        %v1569 = vsub.s32 %v1566, %v1568
        %v1570 = vrot.slane %v1562, %v1569
        %v1572 = vunpack.c.l.s4 1934713408
        %v1573 = vunpack.c.0.s8 %v1572
        %v1574 = vlaneseq
        %v1575 = vshrl.u32 %v1574, 7
        %v1576 = vsub.s32 %v1573, %v1575
        %v1577 = vrot.slane %v1563, %v1576
        %v1578 = vcombine.low %v1553, %v1561
        %v1579 = vcombine.high %v1553, %v1561
        %v1581 = vunpack.c.l.s4 1934713408
        %v1582 = vunpack.c.0.s8 %v1581
        %v1583 = vlaneseq
        %v1584 = vshrl.u32 %v1583, 7
        %v1585 = vsub.s32 %v1582, %v1584
        %v1586 = vrot.slane %v1578, %v1585
        %v1588 = vunpack.c.l.s4 1934713408
        %v1589 = vunpack.c.0.s8 %v1588
        %v1590 = vlaneseq
        %v1591 = vshrl.u32 %v1590, 7
        %v1592 = vsub.s32 %v1589, %v1591
        %v1593 = vrot.slane %v1579, %v1592
        %v1594 = vcombine.low %v1570, %v1586
        %v1595 = vcombine.high %v1570, %v1586
        %v1596 = vcombine.low %v1577, %v1593
        %v1597 = vcombine.high %v1577, %v1593
        %1599 = vrot.lane.b32.xlu0 %v1595, 8
        %v1600 = vpop.permute.xlu0 %1599
        %1603 = vrot.lane.b32.xlu0 %v1596, 16
        %v1604 = vpop.permute.xlu0 %1603
        %1607 = vrot.lane.b32.xlu0 %v1597, 24
        %v1608 = vpop.permute.xlu0 %1607
        %v1610 = vsel %vm916, %v1594, %v1600
        %vm1611 = vcmask 130048
        %v1612 = vsel %vm1611, %v1610, %v1604
        %vm1613 = vcmask 195584
        %v1614 = vsel %vm1613, %v1612, %v1608
        %v1615 = vpack.c.bf16 %v1614, %v1614
        %v1616 = vld [vmem:[%s4] sm:$0xf]
        %v1617 = vld [vmem:[%s4 + $0x4] sm:$0xf]
        %v1618 = vld [vmem:[%s4 + $0x8] sm:$0xf]
        %v1619 = vld [vmem:[%s4 + $0xc] sm:$0xf]
        %v1620 = vld [vmem:[%s5] sm:$0x1]
        %v1622 = vlaneseq
        %v1623 = vshrl.u32 %v1622, 7
        %v1624 = vsub.s32 0, %v1623
        %v1625 = vrot.slane %v1620, %v1624
        %v1631 = vunpack.c.l.b16 %v1616
        %v1632 = vunpack.c.l.b16 %v1617
        %v1633 = vunpack.c.l.b16 %v1618
        %v1634 = vunpack.c.l.b16 %v1619
        %v1635 = vpack.c.b16 %v1632, %v1631
        %v1636 = vpack.c.b16 %v1634, %v1633
        %vm1639 = vcmask 261120
        %v1641 = vsel %vm1639, %v1615, 0
        %1643 = vmatprep.subr.bf16.mxu0 0
        %1644 = vmatpush1.bf16.msra.mxu0 0
        %1645 = vmatprep.subr.bf16.mxu0 0
        %1646 = vmatpush1.bf16.msra.mxu0 0
        %1647 = vmatprep.subr.bf16.mxu0 0
        %1648 = vmatpush1.bf16.msra.mxu0 0
        %1649 = vmatprep.subr.bf16.mxu0 0
        %1650 = vmatpush1.bf16.msra.mxu0 0
        %1651 = vmatprep.subr.bf16.mxu0 0
        %1652 = vmatpush1.bf16.msra.mxu0 0
        %1653 = vmatprep.subr.bf16.mxu0 0
        %1654 = vmatpush1.bf16.msra.mxu0 0
        %1655 = vmatprep.subr.bf16.mxu0 0
        %1656 = vmatpush1.bf16.msra.mxu0 %v1636
        %1657 = vmatprep.subr.bf16.mxu0 0
        %1658 = vmatpush1.bf16.msra.mxu0 %v1635
        %1659 = vmatprep.subr.bf16.mxu0 0
        %1660 = vmatpush2.bf16.msra.mxu0 0
        %1661 = vmatprep.subr.bf16.mxu0 0
        %1662 = vmatpush2.bf16.msra.mxu0 0
        %1663 = vmatprep.subr.bf16.mxu0 0
        %1664 = vmatpush2.bf16.msra.mxu0 0
        %1665 = vmatprep.subr.bf16.mxu0 0
        %1666 = vmatpush2.bf16.msra.mxu0 0
        %1667 = vmatprep.subr.bf16.mxu0 0
        %1668 = vmatpush2.bf16.msra.mxu0 0
        %1669 = vmatprep.subr.bf16.mxu0 0
        %1670 = vmatpush2.bf16.msra.mxu0 0
        %1671 = vmatprep.subr.bf16.mxu0 0
        %1672 = vmatpush2.bf16.msra.mxu0 0
        %1673 = vmatprep.subr.bf16.mxu0 0
        %1674 = vmatpush2.bf16.msra.mxu0 0
        %1675 = vmatprep.mubr.bf16.mxu0 0
        %1676 = vmatmul.mubr.bf16.gmra.mxu0 %v1641
        %v1677 = vpop.f32.mrf.mxu0
        %v1678 = vadd.f32 %v1625, %v1677
        %v1679 = vpop.f32.mrf.mxu0
        %v1680 = vpop.f32.mrf.mxu0
        %v1681 = vpop.f32.mrf.mxu0
        %1682 = vdwg.mxu0
        %v1683 = vld [vmem:[%s419] sm:$0xff]
        %v1684 = vadd.f32 %v1678, %v1683
        %1685 = vst.msk [vmem:[%s426] sm:$0xff] %vm1639, %v1684
      $region56: #{encoder_forward.8} parent=47 // pred_fallthru
        _
      %p1686 = scmp.lt.s32.totalorder %s23, 1
      %s1687 = scalar_select %p1686, %s23, 1
      %p1688 = scmp.lt.s32.totalorder %s24, 0
      %s1689 = scalar_select %p1688, %s24, 0
      %s1690 = sadd.s32 %s1689, %s1687
      %s1691 = smul.addr %s1690, 8
      %s1692 = scalar_lea.vmem %s7, %s1691
      // Predicated region
      $region57: #{encoder_forward.8} parent=47 // pred_check
        %p1693 = pneg %p239
      $region58: #{encoder_forward.8} parent=47 // pred_check_branch
        %1695 = sbr.rel (%p1693) target = $region60
      $region59: #{encoder_forward.8} parent=47 // pred_region
        _
      $region60: #{encoder_forward.8} parent=47 // pred_fallthru
        _
    $region48: #{encoder_forward.8} parent=5 // pred_fallthru
      _
    %p1696 = scmp.le.s32.totalorder 2, %s13
    // Predicated region
    $region61: #{encoder_forward.8} parent=5 // pred_check
      %p1697 = pneg %p1696
    $region62: #{encoder_forward.8} parent=5 // pred_check_branch
      %1699 = sbr.rel (%p1697) target = $region64
    $region63: #{encoder_forward.8} parent=5 // pred_region
      %s1700 = ssub.s32 %s13, 2
      // Predicated region
      $region65: #{encoder_forward.8} parent=63 // pred_check
        %p1701 = pneg %p245
      $region66: #{encoder_forward.8} parent=63 // pred_check_branch
        %1703 = sbr.rel (%p1701) target = $region68
      $region67: #{encoder_forward.8} parent=63 // pred_region
        %p1704 = scmp.lt.s32.totalorder %s26, 1
        %s1705 = scalar_select %p1704, %s26, 1
        %p1706 = scmp.lt.s32.totalorder %s27, 0
        %s1707 = scalar_select %p1706, %s27, 0
        %s1708 = sadd.s32 %s1707, %s1705
        %s1709 = smul.addr %s1708, 8
        %s1710 = scalar_lea.vmem %s7, %s1709
      $region68: #{encoder_forward.8} parent=63 // pred_fallthru
        _
    $region64: #{encoder_forward.8} parent=5 // pred_fallthru
      _
  $region6: #{encoder_forward.8} parent=0 // loop_footer
    %s17 = sadd.s32 1, %s13
  $region7: #{encoder_forward.8} parent=0 // loop_footer_branch
    %12 = sbr.rel target = $region3
  $region8: #{encoder_forward.8} parent=0 // loop_exit
    _

// kernel: encoder_forward.13
$region0: #{encoder_forward.13}
  #allocation0 [shape = 'u32[]', space=smem, size = 0x4, offset = 0x4, fixed_abs, tag = 'smem constant byte address 0x4 - core index']
  #allocation1 [shape = 'u32[144,128]{1,0:T(1,128)}', space=vmem, size = 0x12000, scoped, tag = 'internal scratch']
  %s0 = inlined_call_operand.vmem [shape: f32[16,32], index: 0, kind: input, shape index: {}]
  %s1 = inlined_call_operand.vmem [shape: f32[1,32], index: 1, kind: input, shape index: {}]
  %s2 = inlined_call_operand.vmem [shape: f32[1,32], index: 2, kind: input, shape index: {}]
  %s3 = inlined_call_operand.hbm [shape: f32[16,32], index: 3, kind: output, shape index: {}]
  %s4 = sld [smem:[#allocation0]]
  $region22: #{encoder_forward.13} parent=0
    _
  %s6 = ssub.s32 1, %s4
  %s7 = scalar_select 0, %s6, %s4
  $region1: #{encoder_forward.13} parent=0
    #allocation2 [shape = 'u8[8192]{0}', space=vmem, size = 0x2000, scoped, tag = 'output window, operand 0, single buffered']
    #allocation3 [shape = 's32[1]{0}', space=sflag, size = 0x4, scoped, tag = 'scoped memory for encoder_forward.13']
    %8 = vsyncpa [#allocation3], 0
    // Predicated region
    $region2: #{encoder_forward.13} parent=1 // pred_check
      _
    $region3: #{encoder_forward.13} parent=1 // pred_check_branch
      %10 = sbr.rel (0) target = $region5
    $region4: #{encoder_forward.13} parent=1 // pred_region
      _
    $region5: #{encoder_forward.13} parent=1 // pred_fallthru
      _
    // Predicated region
    $region6: #{encoder_forward.13} parent=1 // pred_check
      _
    $region7: #{encoder_forward.13} parent=1 // pred_check_branch
      %12 = sbr.rel (0) target = $region9
    $region8: #{encoder_forward.13} parent=1 // pred_region
      _
    $region9: #{encoder_forward.13} parent=1 // pred_fallthru
      _
    // Predicated region
    $region10: #{encoder_forward.13} parent=1 // pred_check
      _
    $region11: #{encoder_forward.13} parent=1 // pred_check_branch
      %14 = sbr.rel (0) target = $region13
    $region12: #{encoder_forward.13} parent=1 // pred_region
      _
    $region13: #{encoder_forward.13} parent=1 // pred_fallthru
      _
    %v15 = vld [vmem:[%s0] sm:$0xff]
    %v16 = vld [vmem:[%s0 + $0x8] sm:$0xff]
    %v17 = vld [vmem:[%s1] sm:$0x1]
    %v18 = vld [vmem:[%s2] sm:$0x1]
    %vm19 = vcmask 261120
    %v20 = vsel %vm19, %v15, 0.0
    %21 = vadd.xlane.f32.xlu0 %v20
    %v22 = vpop.xlane.xlu0 %21
    %v23 = vsel %vm19, %v16, 0.0
    %24 = vadd.xlane.f32.xlu0 %v23
    %v25 = vpop.xlane.xlu0 %24
    %v26 = vrcp.pop 32.0
    %v27 = vmul.f32 %v22, %v26
    %v28 = vmul.f32 %v25, %v26
    %v29 = vsub.f32 %v15, %v27
    %v30 = vsub.f32 %v16, %v28
    %v31 = vmul.f32 %v29, %v29
    %v32 = vmul.f32 %v30, %v30
    %v33 = vsel %vm19, %v31, 0.0
    %34 = vadd.xlane.f32.xlu0 %v33
    %v35 = vpop.xlane.xlu0 %34
    %v36 = vsel %vm19, %v32, 0.0
    %37 = vadd.xlane.f32.xlu0 %v36
    %v38 = vpop.xlane.xlu0 %37
    %v39 = vmul.f32 %v35, %v26
    %v40 = vmul.f32 %v38, %v26
    %v41 = vadd.f32 %v39, 1e-06
    %v42 = vadd.f32 %v40, 1e-06
    %v43 = vrsqrt.pop %v41
    %v44 = vrsqrt.pop %v42
    %v45 = vmul.f32 %v29, %v43
    %v46 = vmul.f32 %v30, %v44
    %v48 = vlaneseq
    %v49 = vshrl.u32 %v48, 7
    %v50 = vsub.s32 0, %v49
    %v51 = vrot.slane %v17, %v50
    %v53 = vmul.f32 %v45, %v51
    %v54 = vmul.f32 %v46, %v51
    %v56 = vlaneseq
    %v57 = vshrl.u32 %v56, 7
    %v58 = vsub.s32 0, %v57
    %v59 = vrot.slane %v18, %v58
    %v61 = vadd.f32 %v53, %v59
    %v62 = vadd.f32 %v54, %v59
    %63 = vst.msk [vmem:[#allocation2] sm:$0xff] %vm19, %v61
    %64 = vst.msk [vmem:[#allocation2 + $0x8] sm:$0xff] %vm19, %v62
    // Predicated region
    $region14: #{encoder_forward.13} parent=1 // pred_check
      _
    $region15: #{encoder_forward.13} parent=1 // pred_check_branch
      %66 = sbr.rel (0) target = $region17
    $region16: #{encoder_forward.13} parent=1 // pred_region
      %s68 = ssub.s32 256, 256
      %69 = vsyncadd [#allocation3], %s68
      %s70 = sshll.u32 [#allocation2], 4
      %s71 = int_to_ptr.vmem [resolvable:$true] %s70
      %76 = dma.vmem_to_hbm [thread:$0]  %s71, 256, %s3, [#allocation3], 128, 128, 8
    $region17: #{encoder_forward.13} parent=1 // pred_fallthru
      _
    // Predicated region
    $region18: #{encoder_forward.13} parent=1 // pred_check
      _
    $region19: #{encoder_forward.13} parent=1 // pred_check_branch
      %78 = sbr.rel (0) target = $region21
    $region20: #{encoder_forward.13} parent=1 // pred_region
      %79 = dma.done [#allocation3], 256
    $region21: #{encoder_forward.13} parent=1 // pred_fallthru
      _
    %80 = vsyncpa [#allocation3], 1

</llo_original>
